<compile_context>
chip_gen: v7x
topology: tpu7x:2x2x1
jax: 0.10.0
libtpu: 0.0.40
codegen_flags: <defaults>
</compile_context>

<pallas_src>
import jax
import jax.numpy as jnp
from jax.experimental import pallas as pl
from jax.experimental.pallas import tpu as pltpu

# ----------------------------- configuration --------------------------------
EMBED_DIM = 32                      # embedding_dim          (module default)
DNN_HIDDEN = [64, 64, 64]           # dnn_hidden_units       (module default)
NUM_GIN_LAYERS = 3                  # num_interaction_layers (module default)
NUM_SUBSPACES = 4                   # num_subspaces          (module default)
VOCAB_SIZES = [10, 20, 30, 15]      # 4 sparse features
NUM_DENSE = 3                       # 3 dense features

NUM_SPARSE = len(VOCAB_SIZES)
DNN_IN = NUM_SPARSE * EMBED_DIM + NUM_DENSE          # 131
DNN_IN_PAD = ((DNN_IN + 7) // 8) * 8                 # 136, sublane aligned
HID = DNN_HIDDEN[-1]                                 # 64
GIN_OUT = NUM_SUBSPACES * EMBED_DIM                  # 128

BATCH = 512                         # grid=(4,) -> >=2 steps per v7x core
TB = 128                            # batch tile on the lane axis
                                    # (raise to 256-512 for production batches)

assert len(DNN_HIDDEN) == 3 and len(set(DNN_HIDDEN)) == 1
assert NUM_GIN_LAYERS == 3
# Stacking the 3 folded GIN weights into one resident array requires layer 0
# (I = num_fields) and layers >0 (I = num_subspaces) to share a shape,
# i.e. F == S, which holds for the module defaults (4 == 4).
assert NUM_SPARSE == NUM_SUBSPACES


# ------------------------------- kernel -------------------------------------
def aoanet_kernel(dnn_in_ref, dw0_ref, dw12_ref, db_ref,
                  wbig_ref, wfc_h_ref, wfc_g_ref, fcb_ref, out_ref):
    f32, bf16 = jnp.float32, jnp.bfloat16
    F, D, S = NUM_SPARSE, EMBED_DIM, NUM_SUBSPACES
    FD = F * D

    xin = dnn_in_ref[...]                                 # (DNN_IN_PAD, TB) f32
    x0 = xin[0:FD, :]                                     # (F*D, TB) f32 Hadamard partner

    # ---- DNN branch: bf16 MXU operands, f32 accumulate / bias / ReLU --------
    h = jnp.dot(dw0_ref[...], xin.astype(bf16), preferred_element_type=f32)
    h = jnp.maximum(h + db_ref[:, 0:1], 0.0)
    h = jnp.dot(dw12_ref[0], h.astype(bf16), preferred_element_type=f32)
    h = jnp.maximum(h + db_ref[:, 1:2], 0.0)
    h = jnp.dot(dw12_ref[1], h.astype(bf16), preferred_element_type=f32)
    h = jnp.maximum(h + db_ref[:, 2:3], 0.0)              # (H, TB)

    # ---- Generalized Interaction Net: one MXU matmul per layer --------------
    # wbig rows are subspace-major (s, f, h): the Hadamard partner is x0
    # itself (no replicated-B0 slab, no (S*F*D, TB) prod materialization).
    xi = x0                                               # (I*D, TB) f32, I=F
    for l in range(NUM_GIN_LAYERS):
        r = jnp.dot(wbig_ref[l], xi.astype(bf16),
                    preferred_element_type=f32)           # (S*F*D, TB)
        subs = []
        for s in range(S):
            prod = x0 * r[s * FD:(s + 1) * FD, :]         # (F*D, TB)
            acc = prod[0:D, :]
            for f in range(1, F):                         # sum over fields
                acc = acc + prod[f * D:(f + 1) * D, :]
            subs.append(acc)                              # (D, TB)
        xi = jnp.concatenate(subs, axis=0)                # (S*D, TB)

    # ---- final fc + sigmoid: split dot, no (FC_IN, TB) concatenate ----------
    logit = (jnp.dot(wfc_h_ref[...], h.astype(bf16), preferred_element_type=f32)
             + jnp.dot(wfc_g_ref[...], xi.astype(bf16), preferred_element_type=f32)
             + fcb_ref[0])
    out_ref[...] = jax.nn.sigmoid(logit)                  # lane-dense (1, TB) store


def aoanet_pred(dnn_in_t, kp):
    """dnn_in_t: (DNN_IN_PAD, B) transposed [emb_flatten, dense, 0-pad]; -> (B, 1)."""
    rows, B = dnn_in_t.shape
    assert rows == DNN_IN_PAD
    n_blk = pl.cdiv(B, TB)
    Bp = n_blk * TB
    if Bp != B:                                           # ragged batch: zero-pad lanes
        dnn_in_t = jnp.pad(dnn_in_t, ((0, 0), (0, Bp - B)))

    def resident(arr):                                    # grid-resident weight
        return pl.BlockSpec(arr.shape, lambda i, nd=arr.ndim: (0,) * nd)

    out_t = pl.pallas_call(
        aoanet_kernel,
        out_shape=jax.ShapeDtypeStruct((1, Bp), jnp.float32),
        grid=(n_blk,),
        in_specs=[
            pl.BlockSpec((DNN_IN_PAD, TB), lambda i: (0, i)),
            resident(kp['dw0']), resident(kp['dw12']), resident(kp['db_pack']),
            resident(kp['wbig']), resident(kp['wfc_h']), resident(kp['wfc_g']),
            pl.BlockSpec(memory_space=pltpu.MemorySpace.SMEM),   # fc bias scalar
        ],
        out_specs=pl.BlockSpec((1, TB), lambda i: (0, i)),
        compiler_params=pltpu.CompilerParams(
            dimension_semantics=("parallel",),
            vmem_limit_bytes=32 * 1024 * 1024),
    )(dnn_in_t, kp['dw0'], kp['dw12'], kp['db_pack'],
      kp['wbig'], kp['wfc_h'], kp['wfc_g'], kp['fc_b'])
    return out_t[0, :B].reshape(B, 1)


# ------------------------------- glue ----------------------------------------
def init_params(key):
    keys = iter(jax.random.split(key, 64))

    def nrm(shape, std):
        return (std * jax.random.normal(next(keys), shape)).astype(jnp.float32)

    def xavier(shape):                       # torch Linear layout (out, in)
        std = (2.0 / (shape[0] + shape[-1])) ** 0.5
        return nrm(shape, std)

    p = {}
    p['emb'] = [xavier((v + 1, EMBED_DIM)) for v in VOCAB_SIZES]
    dims = [DNN_IN] + DNN_HIDDEN
    p['dnn_w'] = [xavier((dims[i + 1], dims[i])) for i in range(len(DNN_HIDDEN))]
    p['dnn_b'] = [nrm((dims[i + 1],), 0.02) for i in range(len(DNN_HIDDEN))]
    # GIN params use small random values so the correctness check exercises the
    # full index algebra (torch's eye/ones init is degenerate).
    F, D, S = NUM_SPARSE, EMBED_DIM, NUM_SUBSPACES
    p['gin_alpha'], p['gin_W'], p['gin_h'] = [], [], []
    for l in range(NUM_GIN_LAYERS):
        I = F if l == 0 else S
        p['gin_alpha'].append(nrm((I * F, S), 0.5))
        p['gin_W'].append(nrm((S, D, D), 0.5))
        p['gin_h'].append(nrm((S, D, 1), 0.5))
    p['fc_w'] = xavier((1, HID + GIN_OUT))
    p['fc_b'] = nrm((1,), 0.02)
    return p


def pack_kernel_params(p):
    """Fold GIN (alpha, W, h) into one subspace-major matmul weight per layer,
    stack/pack the small weights, and pre-cast matmul operands to bf16."""
    F, D, S = NUM_SPARSE, EMBED_DIM, NUM_SUBSPACES
    bf16 = jnp.bfloat16
    kp = {}
    dw0 = jnp.pad(p['dnn_w'][0], ((0, 0), (0, DNN_IN_PAD - DNN_IN)))  # zero cols
    kp['dw0'] = dw0.astype(bf16)                                      # (64, 136)
    kp['dw12'] = jnp.stack(p['dnn_w'][1:], axis=0).astype(bf16)       # (2, 64, 64)
    kp['db_pack'] = jnp.stack(p['dnn_b'], axis=1)                     # (64, 3) f32
    wbig = []
    for alpha, W, hvec in zip(p['gin_alpha'], p['gin_W'], p['gin_h']):
        I = alpha.shape[0] // F
        alphaR = alpha.reshape(I, F, S)                   # alpha[i*F+f, s]
        Wh = W * jnp.transpose(hvec, (0, 2, 1))           # W[s,h,d]*hvec[s,d]
        # subspace-major rows (s, f, h); columns (i, d)
        wbig.append(jnp.einsum('ifs,shd->sfhid', alphaR, Wh)
                    .reshape(S * F * D, I * D))
    kp['wbig'] = jnp.stack(wbig, axis=0).astype(bf16)     # (3, S*F*D, I*D)
    kp['wfc_h'] = p['fc_w'][:, :HID].astype(bf16)         # (1, 64)
    kp['wfc_g'] = p['fc_w'][:, HID:].astype(bf16)         # (1, 128)
    kp['fc_b'] = p['fc_b'].astype(jnp.float32)            # (1,) -> SMEM
    return kp


def forward(params, data, is_training=True):
    sparse, dense = data['sparse'], data['dense']
    B = sparse.shape[0]
    # Embedding lookups / flatten / concat / transpose are plain-JAX glue.
    # TODO(synk): optionally fold the tiny embedding gather into the kernel via
    # scalar-prefetched ids + resident tables to save one HBM round trip.
    feature_emb = jnp.stack(
        [params['emb'][i][sparse[:, i]] for i in range(NUM_SPARSE)], axis=1)
    emb_flat = feature_emb.reshape(B, NUM_SPARSE * EMBED_DIM)
    dnn_in = jnp.concatenate([emb_flat, dense.astype(jnp.float32)], axis=1)
    dnn_in = jnp.pad(dnn_in, ((0, 0), (0, DNN_IN_PAD - DNN_IN)))  # sublane align

    kp = pack_kernel_params(params)
    pred = aoanet_pred(dnn_in.T, kp)                              # (B, 1)

    out = {'pred': pred}
    if is_training:
        p_ = jnp.squeeze(pred, -1)
        y = data['label']
        eps = 1e-7
        out['loss'] = -jnp.mean(y * jnp.log(p_ + eps)
                                + (1.0 - y) * jnp.log(1.0 - p_ + eps))
    return out


# --------------------- pure-JAX reference (torch transcription) --------------
def _gin_layer_ref(B0, Bi, alpha, W, hvec):
    B, F, D = B0.shape
    I = Bi.shape[1]
    b0_rep = jnp.tile(B0, (1, I, 1))                             # (B, I*F, D)
    bi_rep = jnp.tile(Bi, (1, 1, F)).reshape(B, I * F, D)
    outer = jnp.einsum('bnh,bnd->bnhd', b0_rep, bi_rep)          # (B, N, D, D)
    fusion = jnp.matmul(jnp.transpose(outer, (0, 2, 3, 1)), alpha)   # (B, D, D, S)
    fusion = W * jnp.transpose(fusion, (0, 3, 1, 2))             # (B, S, D, D)
    return jnp.matmul(fusion, hvec)[..., 0]                      # (B, S, D)


def aoanet_ref(params, sparse, dense):
    B = sparse.shape[0]
    feature_emb = jnp.stack(
        [params['emb'][i][sparse[:, i]] for i in range(NUM_SPARSE)], axis=1)
    x = jnp.concatenate([feature_emb.reshape(B, -1), dense], axis=1)
    for W, b in zip(params['dnn_w'], params['dnn_b']):
        x = jnp.maximum(x @ W.T + b, 0.0)
    Bi = feature_emb
    for alpha, W, hvec in zip(params['gin_alpha'], params['gin_W'], params['gin_h']):
        Bi = _gin_layer_ref(feature_emb, Bi, alpha, W, hvec)
    z = jnp.concatenate([x, Bi.reshape(B, -1)], axis=1)
    return jax.nn.sigmoid(z @ params['fc_w'].T + params['fc_b'])


if __name__ == "__main__":
    key = jax.random.PRNGKey(0)
    pkey, dkey = jax.random.split(key)
    params = init_params(pkey)

    k1, k2, k3 = jax.random.split(dkey, 3)
    sparse = jnp.stack(
        [jax.random.randint(jax.random.fold_in(k1, i), (BATCH,), 0,
                            VOCAB_SIZES[i] + 1) for i in range(NUM_SPARSE)],
        axis=1)
    dense = jax.random.uniform(k2, (BATCH, NUM_DENSE), dtype=jnp.float32)
    label = jax.random.bernoulli(k3, 0.5, (BATCH,)).astype(jnp.float32)
    data = {'sparse': sparse, 'dense': dense, 'label': label}

    out = forward(params, data, is_training=True)
    pred = jax.block_until_ready(out['pred'])
    jax.block_until_ready(out['loss'])

    ref = jax.block_until_ready(aoanet_ref(params, sparse, dense))
    assert pred.shape == (BATCH, 1)
    # bf16 matmul operands (f32 accumulate) vs f32 reference -> relaxed tol.
    max_err = float(jnp.max(jnp.abs(pred - ref)))
    assert max_err < 5e-3, f"kernel mismatch vs reference: {max_err}"
    print("KERNEL_OK")
</pallas_src>

<mosaic_0001>
module attributes {stable_mosaic.version = 11 : i64} {
  func.func @aoanet_kernel(%arg0: i32, %arg1: memref<136x128xf32, #tpu.memory_space<vmem>>, %arg2: memref<64x136xbf16, #tpu.memory_space<vmem>>, %arg3: memref<2x64x64xbf16, #tpu.memory_space<vmem>>, %arg4: memref<64x3xf32, #tpu.memory_space<vmem>>, %arg5: memref<3x512x128xbf16, #tpu.memory_space<vmem>>, %arg6: memref<1x64xbf16, #tpu.memory_space<vmem>>, %arg7: memref<1x128xbf16, #tpu.memory_space<vmem>>, %arg8: memref<1xf32, #tpu.memory_space<smem>>, %arg9: memref<1x128xf32, #tpu.memory_space<vmem>>) attributes {dimension_semantics = [#tpu.dimension_semantics<parallel>], iteration_bounds = array<i64: 4>, scalar_prefetch = 0 : i64, scratch_operands = 0 : i64, tpu.core_type = #tpu.core_type<tc>, window_params = [{transform_indices = @transform_0, window_bounds = array<i64: 136, 128>}, {pipeline_mode = #tpu.pipeline_mode<synchronous>, transform_indices = @transform_1, window_bounds = array<i64: 64, 136>}, {pipeline_mode = #tpu.pipeline_mode<synchronous>, transform_indices = @transform_2, window_bounds = array<i64: 2, 64, 64>}, {pipeline_mode = #tpu.pipeline_mode<synchronous>, transform_indices = @transform_3, window_bounds = array<i64: 64, 3>}, {pipeline_mode = #tpu.pipeline_mode<synchronous>, transform_indices = @transform_4, window_bounds = array<i64: 3, 512, 128>}, {pipeline_mode = #tpu.pipeline_mode<synchronous>, transform_indices = @transform_5, window_bounds = array<i64: 1, 64>}, {pipeline_mode = #tpu.pipeline_mode<synchronous>, transform_indices = @transform_6, window_bounds = array<i64: 1, 128>}, {transform_indices = @transform_7, window_bounds = array<i64: 1>}, {transform_indices = @transform_8, window_bounds = array<i64: 1, 128>}]} {
    %c0 = arith.constant 0 : index
    %c0_0 = arith.constant 0 : index
    %0 = vector.load %arg1[%c0, %c0_0] : memref<136x128xf32, #tpu.memory_space<vmem>>, vector<136x128xf32>
    %1 = vector.extract_strided_slice %0 {offsets = [0, 0], sizes = [128, 128], strides = [1, 1]} : vector<136x128xf32> to vector<128x128xf32>
    %c0_1 = arith.constant 0 : index
    %c0_2 = arith.constant 0 : index
    %2 = vector.load %arg2[%c0_1, %c0_2] : memref<64x136xbf16, #tpu.memory_space<vmem>>, vector<64x136xbf16>
    %3 = arith.truncf %0 : vector<136x128xf32> to vector<136x128xbf16>
    %cst = arith.constant dense<0.000000e+00> : vector<64x128xf32>
    %4 = tpu.matmul %2, %3, %cst {dimension_numbers = #tpu.dot_dimension_numbers<[1], [0], [0], [1], [0, 0, 1, 1], [], []>} : vector<64x136xbf16>, vector<136x128xbf16>, vector<64x128xf32> -> vector<64x128xf32>
    %c0_3 = arith.constant 0 : index
    %c0_4 = arith.constant 0 : index
    %5 = vector.load %arg4[%c0_3, %c0_4] : memref<64x3xf32, #tpu.memory_space<vmem>>, vector<64x1xf32>
    %6 = vector.broadcast %5 : vector<64x1xf32> to vector<64x128xf32>
    %7 = arith.addf %4, %6 : vector<64x128xf32>
    %cst_5 = arith.constant 0.000000e+00 : f32
    %8 = vector.broadcast %cst_5 : f32 to vector<64x128xf32>
    %9 = arith.maximumf %7, %8 : vector<64x128xf32>
    %c0_6 = arith.constant 0 : index
    %c0_7 = arith.constant 0 : index
    %c0_8 = arith.constant 0 : index
    %10 = vector.load %arg3[%c0_6, %c0_7, %c0_8] : memref<2x64x64xbf16, #tpu.memory_space<vmem>>, vector<1x64x64xbf16>
    %11 = vector.shape_cast %10 : vector<1x64x64xbf16> to vector<64x64xbf16>
    %12 = arith.truncf %9 : vector<64x128xf32> to vector<64x128xbf16>
    %cst_9 = arith.constant dense<0.000000e+00> : vector<64x128xf32>
    %13 = tpu.matmul %11, %12, %cst_9 {dimension_numbers = #tpu.dot_dimension_numbers<[1], [0], [0], [1], [0, 0, 1, 1], [], []>} : vector<64x64xbf16>, vector<64x128xbf16>, vector<64x128xf32> -> vector<64x128xf32>
    %c0_10 = arith.constant 0 : index
    %c1 = arith.constant 1 : index
    %14 = vector.load %arg4[%c0_10, %c1] : memref<64x3xf32, #tpu.memory_space<vmem>>, vector<64x1xf32>
    %15 = vector.broadcast %14 : vector<64x1xf32> to vector<64x128xf32>
    %16 = arith.addf %13, %15 : vector<64x128xf32>
    %cst_11 = arith.constant 0.000000e+00 : f32
    %17 = vector.broadcast %cst_11 : f32 to vector<64x128xf32>
    %18 = arith.maximumf %16, %17 : vector<64x128xf32>
    %c1_12 = arith.constant 1 : index
    %c0_13 = arith.constant 0 : index
    %c0_14 = arith.constant 0 : index
    %19 = vector.load %arg3[%c1_12, %c0_13, %c0_14] : memref<2x64x64xbf16, #tpu.memory_space<vmem>>, vector<1x64x64xbf16>
    %20 = vector.shape_cast %19 : vector<1x64x64xbf16> to vector<64x64xbf16>
    %21 = arith.truncf %18 : vector<64x128xf32> to vector<64x128xbf16>
    %cst_15 = arith.constant dense<0.000000e+00> : vector<64x128xf32>
    %22 = tpu.matmul %20, %21, %cst_15 {dimension_numbers = #tpu.dot_dimension_numbers<[1], [0], [0], [1], [0, 0, 1, 1], [], []>} : vector<64x64xbf16>, vector<64x128xbf16>, vector<64x128xf32> -> vector<64x128xf32>
    %c0_16 = arith.constant 0 : index
    %c2 = arith.constant 2 : index
    %23 = vector.load %arg4[%c0_16, %c2] : memref<64x3xf32, #tpu.memory_space<vmem>>, vector<64x1xf32>
    %24 = vector.broadcast %23 : vector<64x1xf32> to vector<64x128xf32>
    %25 = arith.addf %22, %24 : vector<64x128xf32>
    %cst_17 = arith.constant 0.000000e+00 : f32
    %26 = vector.broadcast %cst_17 : f32 to vector<64x128xf32>
    %27 = arith.maximumf %25, %26 : vector<64x128xf32>
    %c0_18 = arith.constant 0 : index
    %c0_19 = arith.constant 0 : index
    %c0_20 = arith.constant 0 : index
    %28 = vector.load %arg5[%c0_18, %c0_19, %c0_20] : memref<3x512x128xbf16, #tpu.memory_space<vmem>>, vector<1x512x128xbf16>
    %29 = vector.shape_cast %28 : vector<1x512x128xbf16> to vector<512x128xbf16>
    %30 = arith.truncf %1 : vector<128x128xf32> to vector<128x128xbf16>
    %cst_21 = arith.constant dense<0.000000e+00> : vector<512x128xf32>
    %31 = tpu.matmul %29, %30, %cst_21 {dimension_numbers = #tpu.dot_dimension_numbers<[1], [0], [0], [1], [0, 0, 1, 1], [], []>} : vector<512x128xbf16>, vector<128x128xbf16>, vector<512x128xf32> -> vector<512x128xf32>
    %32 = vector.extract_strided_slice %31 {offsets = [0, 0], sizes = [128, 128], strides = [1, 1]} : vector<512x128xf32> to vector<128x128xf32>
    %33 = arith.mulf %1, %32 : vector<128x128xf32>
    %34 = vector.extract_strided_slice %33 {offsets = [0, 0], sizes = [32, 128], strides = [1, 1]} : vector<128x128xf32> to vector<32x128xf32>
    %35 = vector.extract_strided_slice %33 {offsets = [32, 0], sizes = [32, 128], strides = [1, 1]} : vector<128x128xf32> to vector<32x128xf32>
    %36 = arith.addf %34, %35 : vector<32x128xf32>
    %37 = vector.extract_strided_slice %33 {offsets = [64, 0], sizes = [32, 128], strides = [1, 1]} : vector<128x128xf32> to vector<32x128xf32>
    %38 = arith.addf %36, %37 : vector<32x128xf32>
    %39 = vector.extract_strided_slice %33 {offsets = [96, 0], sizes = [32, 128], strides = [1, 1]} : vector<128x128xf32> to vector<32x128xf32>
    %40 = arith.addf %38, %39 : vector<32x128xf32>
    %41 = vector.extract_strided_slice %31 {offsets = [128, 0], sizes = [128, 128], strides = [1, 1]} : vector<512x128xf32> to vector<128x128xf32>
    %42 = arith.mulf %1, %41 : vector<128x128xf32>
    %43 = vector.extract_strided_slice %42 {offsets = [0, 0], sizes = [32, 128], strides = [1, 1]} : vector<128x128xf32> to vector<32x128xf32>
    %44 = vector.extract_strided_slice %42 {offsets = [32, 0], sizes = [32, 128], strides = [1, 1]} : vector<128x128xf32> to vector<32x128xf32>
    %45 = arith.addf %43, %44 : vector<32x128xf32>
    %46 = vector.extract_strided_slice %42 {offsets = [64, 0], sizes = [32, 128], strides = [1, 1]} : vector<128x128xf32> to vector<32x128xf32>
    %47 = arith.addf %45, %46 : vector<32x128xf32>
    %48 = vector.extract_strided_slice %42 {offsets = [96, 0], sizes = [32, 128], strides = [1, 1]} : vector<128x128xf32> to vector<32x128xf32>
    %49 = arith.addf %47, %48 : vector<32x128xf32>
    %50 = vector.extract_strided_slice %31 {offsets = [256, 0], sizes = [128, 128], strides = [1, 1]} : vector<512x128xf32> to vector<128x128xf32>
    %51 = arith.mulf %1, %50 : vector<128x128xf32>
    %52 = vector.extract_strided_slice %51 {offsets = [0, 0], sizes = [32, 128], strides = [1, 1]} : vector<128x128xf32> to vector<32x128xf32>
    %53 = vector.extract_strided_slice %51 {offsets = [32, 0], sizes = [32, 128], strides = [1, 1]} : vector<128x128xf32> to vector<32x128xf32>
    %54 = arith.addf %52, %53 : vector<32x128xf32>
    %55 = vector.extract_strided_slice %51 {offsets = [64, 0], sizes = [32, 128], strides = [1, 1]} : vector<128x128xf32> to vector<32x128xf32>
    %56 = arith.addf %54, %55 : vector<32x128xf32>
    %57 = vector.extract_strided_slice %51 {offsets = [96, 0], sizes = [32, 128], strides = [1, 1]} : vector<128x128xf32> to vector<32x128xf32>
    %58 = arith.addf %56, %57 : vector<32x128xf32>
    %59 = vector.extract_strided_slice %31 {offsets = [384, 0], sizes = [128, 128], strides = [1, 1]} : vector<512x128xf32> to vector<128x128xf32>
    %60 = arith.mulf %1, %59 : vector<128x128xf32>
    %61 = vector.extract_strided_slice %60 {offsets = [0, 0], sizes = [32, 128], strides = [1, 1]} : vector<128x128xf32> to vector<32x128xf32>
    %62 = vector.extract_strided_slice %60 {offsets = [32, 0], sizes = [32, 128], strides = [1, 1]} : vector<128x128xf32> to vector<32x128xf32>
    %63 = arith.addf %61, %62 : vector<32x128xf32>
    %64 = vector.extract_strided_slice %60 {offsets = [64, 0], sizes = [32, 128], strides = [1, 1]} : vector<128x128xf32> to vector<32x128xf32>
    %65 = arith.addf %63, %64 : vector<32x128xf32>
    %66 = vector.extract_strided_slice %60 {offsets = [96, 0], sizes = [32, 128], strides = [1, 1]} : vector<128x128xf32> to vector<32x128xf32>
    %67 = arith.addf %65, %66 : vector<32x128xf32>
    %68 = tpu.concatenate %40, %49, %58, %67 in 0 : vector<32x128xf32>, vector<32x128xf32>, vector<32x128xf32>, vector<32x128xf32> -> vector<128x128xf32>
    %c1_22 = arith.constant 1 : index
    %c0_23 = arith.constant 0 : index
    %c0_24 = arith.constant 0 : index
    %69 = vector.load %arg5[%c1_22, %c0_23, %c0_24] : memref<3x512x128xbf16, #tpu.memory_space<vmem>>, vector<1x512x128xbf16>
    %70 = vector.shape_cast %69 : vector<1x512x128xbf16> to vector<512x128xbf16>
    %71 = arith.truncf %68 : vector<128x128xf32> to vector<128x128xbf16>
    %cst_25 = arith.constant dense<0.000000e+00> : vector<512x128xf32>
    %72 = tpu.matmul %70, %71, %cst_25 {dimension_numbers = #tpu.dot_dimension_numbers<[1], [0], [0], [1], [0, 0, 1, 1], [], []>} : vector<512x128xbf16>, vector<128x128xbf16>, vector<512x128xf32> -> vector<512x128xf32>
    %73 = vector.extract_strided_slice %72 {offsets = [0, 0], sizes = [128, 128], strides = [1, 1]} : vector<512x128xf32> to vector<128x128xf32>
    %74 = arith.mulf %1, %73 : vector<128x128xf32>
    %75 = vector.extract_strided_slice %74 {offsets = [0, 0], sizes = [32, 128], strides = [1, 1]} : vector<128x128xf32> to vector<32x128xf32>
    %76 = vector.extract_strided_slice %74 {offsets = [32, 0], sizes = [32, 128], strides = [1, 1]} : vector<128x128xf32> to vector<32x128xf32>
    %77 = arith.addf %75, %76 : vector<32x128xf32>
    %78 = vector.extract_strided_slice %74 {offsets = [64, 0], sizes = [32, 128], strides = [1, 1]} : vector<128x128xf32> to vector<32x128xf32>
    %79 = arith.addf %77, %78 : vector<32x128xf32>
    %80 = vector.extract_strided_slice %74 {offsets = [96, 0], sizes = [32, 128], strides = [1, 1]} : vector<128x128xf32> to vector<32x128xf32>
    %81 = arith.addf %79, %80 : vector<32x128xf32>
    %82 = vector.extract_strided_slice %72 {offsets = [128, 0], sizes = [128, 128], strides = [1, 1]} : vector<512x128xf32> to vector<128x128xf32>
    %83 = arith.mulf %1, %82 : vector<128x128xf32>
    %84 = vector.extract_strided_slice %83 {offsets = [0, 0], sizes = [32, 128], strides = [1, 1]} : vector<128x128xf32> to vector<32x128xf32>
    %85 = vector.extract_strided_slice %83 {offsets = [32, 0], sizes = [32, 128], strides = [1, 1]} : vector<128x128xf32> to vector<32x128xf32>
    %86 = arith.addf %84, %85 : vector<32x128xf32>
    %87 = vector.extract_strided_slice %83 {offsets = [64, 0], sizes = [32, 128], strides = [1, 1]} : vector<128x128xf32> to vector<32x128xf32>
    %88 = arith.addf %86, %87 : vector<32x128xf32>
    %89 = vector.extract_strided_slice %83 {offsets = [96, 0], sizes = [32, 128], strides = [1, 1]} : vector<128x128xf32> to vector<32x128xf32>
    %90 = arith.addf %88, %89 : vector<32x128xf32>
    %91 = vector.extract_strided_slice %72 {offsets = [256, 0], sizes = [128, 128], strides = [1, 1]} : vector<512x128xf32> to vector<128x128xf32>
    %92 = arith.mulf %1, %91 : vector<128x128xf32>
    %93 = vector.extract_strided_slice %92 {offsets = [0, 0], sizes = [32, 128], strides = [1, 1]} : vector<128x128xf32> to vector<32x128xf32>
    %94 = vector.extract_strided_slice %92 {offsets = [32, 0], sizes = [32, 128], strides = [1, 1]} : vector<128x128xf32> to vector<32x128xf32>
    %95 = arith.addf %93, %94 : vector<32x128xf32>
    %96 = vector.extract_strided_slice %92 {offsets = [64, 0], sizes = [32, 128], strides = [1, 1]} : vector<128x128xf32> to vector<32x128xf32>
    %97 = arith.addf %95, %96 : vector<32x128xf32>
    %98 = vector.extract_strided_slice %92 {offsets = [96, 0], sizes = [32, 128], strides = [1, 1]} : vector<128x128xf32> to vector<32x128xf32>
    %99 = arith.addf %97, %98 : vector<32x128xf32>
    %100 = vector.extract_strided_slice %72 {offsets = [384, 0], sizes = [128, 128], strides = [1, 1]} : vector<512x128xf32> to vector<128x128xf32>
    %101 = arith.mulf %1, %100 : vector<128x128xf32>
    %102 = vector.extract_strided_slice %101 {offsets = [0, 0], sizes = [32, 128], strides = [1, 1]} : vector<128x128xf32> to vector<32x128xf32>
    %103 = vector.extract_strided_slice %101 {offsets = [32, 0], sizes = [32, 128], strides = [1, 1]} : vector<128x128xf32> to vector<32x128xf32>
    %104 = arith.addf %102, %103 : vector<32x128xf32>
    %105 = vector.extract_strided_slice %101 {offsets = [64, 0], sizes = [32, 128], strides = [1, 1]} : vector<128x128xf32> to vector<32x128xf32>
    %106 = arith.addf %104, %105 : vector<32x128xf32>
    %107 = vector.extract_strided_slice %101 {offsets = [96, 0], sizes = [32, 128], strides = [1, 1]} : vector<128x128xf32> to vector<32x128xf32>
    %108 = arith.addf %106, %107 : vector<32x128xf32>
    %109 = tpu.concatenate %81, %90, %99, %108 in 0 : vector<32x128xf32>, vector<32x128xf32>, vector<32x128xf32>, vector<32x128xf32> -> vector<128x128xf32>
    %c2_26 = arith.constant 2 : index
    %c0_27 = arith.constant 0 : index
    %c0_28 = arith.constant 0 : index
    %110 = vector.load %arg5[%c2_26, %c0_27, %c0_28] : memref<3x512x128xbf16, #tpu.memory_space<vmem>>, vector<1x512x128xbf16>
    %111 = vector.shape_cast %110 : vector<1x512x128xbf16> to vector<512x128xbf16>
    %112 = arith.truncf %109 : vector<128x128xf32> to vector<128x128xbf16>
    %cst_29 = arith.constant dense<0.000000e+00> : vector<512x128xf32>
    %113 = tpu.matmul %111, %112, %cst_29 {dimension_numbers = #tpu.dot_dimension_numbers<[1], [0], [0], [1], [0, 0, 1, 1], [], []>} : vector<512x128xbf16>, vector<128x128xbf16>, vector<512x128xf32> -> vector<512x128xf32>
    %114 = vector.extract_strided_slice %113 {offsets = [0, 0], sizes = [128, 128], strides = [1, 1]} : vector<512x128xf32> to vector<128x128xf32>
    %115 = arith.mulf %1, %114 : vector<128x128xf32>
    %116 = vector.extract_strided_slice %115 {offsets = [0, 0], sizes = [32, 128], strides = [1, 1]} : vector<128x128xf32> to vector<32x128xf32>
    %117 = vector.extract_strided_slice %115 {offsets = [32, 0], sizes = [32, 128], strides = [1, 1]} : vector<128x128xf32> to vector<32x128xf32>
    %118 = arith.addf %116, %117 : vector<32x128xf32>
    %119 = vector.extract_strided_slice %115 {offsets = [64, 0], sizes = [32, 128], strides = [1, 1]} : vector<128x128xf32> to vector<32x128xf32>
    %120 = arith.addf %118, %119 : vector<32x128xf32>
    %121 = vector.extract_strided_slice %115 {offsets = [96, 0], sizes = [32, 128], strides = [1, 1]} : vector<128x128xf32> to vector<32x128xf32>
    %122 = arith.addf %120, %121 : vector<32x128xf32>
    %123 = vector.extract_strided_slice %113 {offsets = [128, 0], sizes = [128, 128], strides = [1, 1]} : vector<512x128xf32> to vector<128x128xf32>
    %124 = arith.mulf %1, %123 : vector<128x128xf32>
    %125 = vector.extract_strided_slice %124 {offsets = [0, 0], sizes = [32, 128], strides = [1, 1]} : vector<128x128xf32> to vector<32x128xf32>
    %126 = vector.extract_strided_slice %124 {offsets = [32, 0], sizes = [32, 128], strides = [1, 1]} : vector<128x128xf32> to vector<32x128xf32>
    %127 = arith.addf %125, %126 : vector<32x128xf32>
    %128 = vector.extract_strided_slice %124 {offsets = [64, 0], sizes = [32, 128], strides = [1, 1]} : vector<128x128xf32> to vector<32x128xf32>
    %129 = arith.addf %127, %128 : vector<32x128xf32>
    %130 = vector.extract_strided_slice %124 {offsets = [96, 0], sizes = [32, 128], strides = [1, 1]} : vector<128x128xf32> to vector<32x128xf32>
    %131 = arith.addf %129, %130 : vector<32x128xf32>
    %132 = vector.extract_strided_slice %113 {offsets = [256, 0], sizes = [128, 128], strides = [1, 1]} : vector<512x128xf32> to vector<128x128xf32>
    %133 = arith.mulf %1, %132 : vector<128x128xf32>
    %134 = vector.extract_strided_slice %133 {offsets = [0, 0], sizes = [32, 128], strides = [1, 1]} : vector<128x128xf32> to vector<32x128xf32>
    %135 = vector.extract_strided_slice %133 {offsets = [32, 0], sizes = [32, 128], strides = [1, 1]} : vector<128x128xf32> to vector<32x128xf32>
    %136 = arith.addf %134, %135 : vector<32x128xf32>
    %137 = vector.extract_strided_slice %133 {offsets = [64, 0], sizes = [32, 128], strides = [1, 1]} : vector<128x128xf32> to vector<32x128xf32>
    %138 = arith.addf %136, %137 : vector<32x128xf32>
    %139 = vector.extract_strided_slice %133 {offsets = [96, 0], sizes = [32, 128], strides = [1, 1]} : vector<128x128xf32> to vector<32x128xf32>
    %140 = arith.addf %138, %139 : vector<32x128xf32>
    %141 = vector.extract_strided_slice %113 {offsets = [384, 0], sizes = [128, 128], strides = [1, 1]} : vector<512x128xf32> to vector<128x128xf32>
    %142 = arith.mulf %1, %141 : vector<128x128xf32>
    %143 = vector.extract_strided_slice %142 {offsets = [0, 0], sizes = [32, 128], strides = [1, 1]} : vector<128x128xf32> to vector<32x128xf32>
    %144 = vector.extract_strided_slice %142 {offsets = [32, 0], sizes = [32, 128], strides = [1, 1]} : vector<128x128xf32> to vector<32x128xf32>
    %145 = arith.addf %143, %144 : vector<32x128xf32>
    %146 = vector.extract_strided_slice %142 {offsets = [64, 0], sizes = [32, 128], strides = [1, 1]} : vector<128x128xf32> to vector<32x128xf32>
    %147 = arith.addf %145, %146 : vector<32x128xf32>
    %148 = vector.extract_strided_slice %142 {offsets = [96, 0], sizes = [32, 128], strides = [1, 1]} : vector<128x128xf32> to vector<32x128xf32>
    %149 = arith.addf %147, %148 : vector<32x128xf32>
    %150 = tpu.concatenate %122, %131, %140, %149 in 0 : vector<32x128xf32>, vector<32x128xf32>, vector<32x128xf32>, vector<32x128xf32> -> vector<128x128xf32>
    %c0_30 = arith.constant 0 : index
    %c0_31 = arith.constant 0 : index
    %151 = vector.load %arg6[%c0_30, %c0_31] : memref<1x64xbf16, #tpu.memory_space<vmem>>, vector<1x64xbf16>
    %152 = arith.truncf %27 : vector<64x128xf32> to vector<64x128xbf16>
    %cst_32 = arith.constant dense<0.000000e+00> : vector<1x128xf32>
    %153 = tpu.matmul %151, %152, %cst_32 {dimension_numbers = #tpu.dot_dimension_numbers<[1], [0], [0], [1], [0, 0, 1, 1], [], []>} : vector<1x64xbf16>, vector<64x128xbf16>, vector<1x128xf32> -> vector<1x128xf32>
    %c0_33 = arith.constant 0 : index
    %c0_34 = arith.constant 0 : index
    %154 = vector.load %arg7[%c0_33, %c0_34] : memref<1x128xbf16, #tpu.memory_space<vmem>>, vector<1x128xbf16>
    %155 = arith.truncf %150 : vector<128x128xf32> to vector<128x128xbf16>
    %cst_35 = arith.constant dense<0.000000e+00> : vector<1x128xf32>
    %156 = tpu.matmul %154, %155, %cst_35 {dimension_numbers = #tpu.dot_dimension_numbers<[1], [0], [0], [1], [0, 0, 1, 1], [], []>} : vector<1x128xbf16>, vector<128x128xbf16>, vector<1x128xf32> -> vector<1x128xf32>
    %157 = arith.addf %153, %156 : vector<1x128xf32>
    %c0_36 = arith.constant 0 : index
    %158 = memref.load %arg8[%c0_36] : memref<1xf32, #tpu.memory_space<smem>>
    %159 = vector.broadcast %158 : f32 to vector<1x128xf32>
    %160 = arith.addf %157, %159 : vector<1x128xf32>
    %161 = arith.negf %160 : vector<1x128xf32>
    %162 = math.exp %161 : vector<1x128xf32>
    %cst_37 = arith.constant 1.000000e+00 : f32
    %163 = vector.broadcast %cst_37 : f32 to vector<1x128xf32>
    %164 = arith.addf %163, %162 : vector<1x128xf32>
    %165 = arith.divf %163, %164 : vector<1x128xf32>
    %c0_38 = arith.constant 0 : index
    %c0_39 = arith.constant 0 : index
    %166 = vector.load %arg9[%c0_38, %c0_39] : memref<1x128xf32, #tpu.memory_space<vmem>>, vector<1x128xf32>
    tpu.vector_store %arg9[%c0_38, %c0_39], %165 {strides = array<i32>} : memref<1x128xf32, #tpu.memory_space<vmem>>, vector<1x128xf32>,
    return
  }
  func.func @transform_0(%arg0: i32) -> (i32, i32) {
    %c0_i32 = arith.constant 0 : i32
    %c0_i32_0 = arith.constant 0 : i32
    return %c0_i32, %arg0 : i32, i32
  }
  func.func @transform_1(%arg0: i32) -> (i32, i32) {
    %c0_i32 = arith.constant 0 : i32
    %c0_i32_0 = arith.constant 0 : i32
    %c0_i32_1 = arith.constant 0 : i32
    return %c0_i32, %c0_i32_0 : i32, i32
  }
  func.func @transform_2(%arg0: i32) -> (i32, i32, i32) {
    %c0_i32 = arith.constant 0 : i32
    %c0_i32_0 = arith.constant 0 : i32
    %c0_i32_1 = arith.constant 0 : i32
    %c0_i32_2 = arith.constant 0 : i32
    return %c0_i32, %c0_i32_0, %c0_i32_1 : i32, i32, i32
  }
  func.func @transform_3(%arg0: i32) -> (i32, i32) {
    %c0_i32 = arith.constant 0 : i32
    %c0_i32_0 = arith.constant 0 : i32
    %c0_i32_1 = arith.constant 0 : i32
    return %c0_i32, %c0_i32_0 : i32, i32
  }
  func.func @transform_4(%arg0: i32) -> (i32, i32, i32) {
    %c0_i32 = arith.constant 0 : i32
    %c0_i32_0 = arith.constant 0 : i32
    %c0_i32_1 = arith.constant 0 : i32
    %c0_i32_2 = arith.constant 0 : i32
    return %c0_i32, %c0_i32_0, %c0_i32_1 : i32, i32, i32
  }
  func.func @transform_5(%arg0: i32) -> (i32, i32) {
    %c0_i32 = arith.constant 0 : i32
    %c0_i32_0 = arith.constant 0 : i32
    %c0_i32_1 = arith.constant 0 : i32
    return %c0_i32, %c0_i32_0 : i32, i32
  }
  func.func @transform_6(%arg0: i32) -> (i32, i32) {
    %c0_i32 = arith.constant 0 : i32
    %c0_i32_0 = arith.constant 0 : i32
    %c0_i32_1 = arith.constant 0 : i32
    return %c0_i32, %c0_i32_0 : i32, i32
  }
  func.func @transform_7(%arg0: i32) -> i32 {
    %c0_i32 = arith.constant 0 : i32
    %c0_i32_0 = arith.constant 0 : i32
    return %c0_i32 : i32
  }
  func.func @transform_8(%arg0: i32) -> (i32, i32) {
    %c0_i32 = arith.constant 0 : i32
    %c0_i32_0 = arith.constant 0 : i32
    return %c0_i32, %arg0 : i32, i32
  }
}

</mosaic_0001>

<llo_original>
// kernel: tpu_custom_call.1
$region0: #{tpu_custom_call.1}
  #allocation0 [shape = 'u32[]', space=smem, size = 0x4, offset = 0x4, fixed_abs, tag = 'smem constant byte address 0x4 - core index']
  #allocation1 [shape = 'u32[144,128]{1,0:T(1,128)}', space=vmem, size = 0x12000, scoped, tag = 'internal scratch']
  #allocation2 [shape = 'f32[1]{0:T(128)S(6)}', space=smem, size = 0x200, scoped, tag = 'scoped memory for tpu_custom_call.1']
  %s0 = inlined_call_operand.hbm [shape: f32[136,512], index: 0, kind: input, shape index: {}]
  %s1 = inlined_call_operand.vmem [shape: bf16[64,136], index: 1, kind: input, shape index: {}]
  %s2 = inlined_call_operand.hbm [shape: bf16[2,64,64], index: 2, kind: input, shape index: {}]
  %s3 = inlined_call_operand.vmem [shape: f32[64,3], index: 3, kind: input, shape index: {}]
  %s4 = inlined_call_operand.hbm [shape: bf16[3,512,128], index: 4, kind: input, shape index: {}]
  %s5 = inlined_call_operand.vmem [shape: bf16[1,64], index: 5, kind: input, shape index: {}]
  %s6 = inlined_call_operand.vmem [shape: bf16[1,128], index: 6, kind: input, shape index: {}]
  %s7 = inlined_call_operand.<no memory space> [shape: f32[1], index: 7, kind: input, shape index: {}]
  %s8 = inlined_call_operand.hbm [shape: f32[1,512], index: 8, kind: output, shape index: {}]
  %s9 = sld [smem:[#allocation0]]
  $region77: #{tpu_custom_call.1} parent=0
    _
  %s11 = ssub.s32 1, %s9
  %s12 = scalar_select 0, %s11, %s9
  %13 = sst [smem:[#allocation2]] %s7
  $region1: #{tpu_custom_call.1} parent=0
    #allocation3 [shape = 'u8[139264]{0}', space=vmem, size = 0x22000, scoped, tag = 'input window, operand 0']
    #allocation4 [shape = 's32[2]{0}', space=sflag, size = 0x8, scoped, tag = 'scoped memory for tpu_custom_call.1']
    #allocation5 [shape = 's32[2]{0}', space=sflag, size = 0x8, scoped, tag = 'scoped memory for tpu_custom_call.1']
    #allocation6 [shape = 'u8[32768]{0}', space=vmem, size = 0x8000, scoped, tag = 'input window, operand 2, single buffered']
    #allocation7 [shape = 's32[1]{0}', space=sflag, size = 0x4, scoped, tag = 'scoped memory for tpu_custom_call.1']
    #allocation8 [shape = 'u8[393216]{0}', space=vmem, size = 0x60000, scoped, tag = 'input window, operand 4, single buffered']
    #allocation9 [shape = 'u8[1024]{0}', space=vmem, size = 0x400, scoped, tag = 'output window, operand 0']
    %14 = vsyncpa [#allocation4], 0
    %s15 = scalar_lea.sflag [#allocation4], 1
    %16 = vsyncpa %s15, 0
    %17 = vsyncpa [#allocation7], 0
    %18 = vsyncpa [#allocation5], 0
    %s19 = scalar_lea.sflag [#allocation5], 1
    %20 = vsyncpa %s19, 0
    loop: start=0, step=1, limit=6
    $region2: #{tpu_custom_call.1} parent=1 // loop_pre_header
      _
    $region3: #{tpu_custom_call.1} parent=1 // loop_header
      %s22 = sphi 0, %s26
      %p23 = scmp.ge.s32.totalorder %s22, 6
      %s32 = sphi 0, %s34
      %s35 = sphi 0, %s32
      %s36 = sphi 0, %s35
      %s52 = sphi 0, %s36
      %s56 = sphi 0, %s56
      %s58 = sphi 0, %s56
      %s59 = sphi 0, %s58
      %s73 = sphi 0, %s59
      %s77 = sphi 0, %s77
      %s79 = sphi 0, %s77
      %s80 = sphi 0, %s79
      %s94 = sphi 0, %s80
      %s98 = sphi 0, %s98
      %s100 = sphi 0, %s98
      %s101 = sphi 0, %s100
      %s115 = sphi 0, %s101
      %s119 = sphi 0, %s119
      %s121 = sphi 0, %s119
      %s122 = sphi 0, %s121
      %s136 = sphi 0, %s122
      %s140 = sphi 0, %s140
      %s142 = sphi 0, %s140
      %s143 = sphi 0, %s142
      %s157 = sphi 0, %s143
      %s161 = sphi 0, %s161
      %s163 = sphi 0, %s161
      %s164 = sphi 0, %s163
      %s178 = sphi 0, %s164
      %s182 = sphi 0, %s182
      %s184 = sphi 0, %s182
      %s185 = sphi 0, %s184
      %s199 = sphi 0, %s185
      %s205 = sphi 0, %s207
      %s208 = sphi 0, %s205
      %s209 = sphi 0, %s208
      %s225 = sphi 0, %s209
    $region4: #{tpu_custom_call.1} parent=1 // loop_header_branch
      %25 = sbr.rel (%p23) target = $region8
    $region5: #{tpu_custom_call.1} parent=1 // loop_body
      %s27 = ssub.s32 %s22, 1
      %s28 = ssub.s32 %s22, 2
      %s29 = sadd.s32 %s22, 1
      %s30 = ssub.s32 %s22, %s29
      %p31 = scmp.eq.s32.totalorder %s30, 0
      %s33 = sadd.s32 %s32, 1
      %s34 = scalar_select %p31, %s32, %s33
      %p37 = pneg %p31
      %p38 = scmp.eq.s32.totalorder %s22, 3
      %p39 = por %p37, %p38
      %p40 = scmp.ne.s32.totalorder %s32, %s35
      %p41 = scmp.eq.s32.totalorder %s22, 0
      %p42 = por %p40, %p41
      %p43 = scmp.ne.s32.totalorder %s32, %s35
      %p44 = scmp.eq.s32.totalorder %s27, 3
      %p45 = por %p43, %p44
      %p46 = scmp.ne.s32.totalorder %s35, %s36
      %p47 = scmp.eq.s32.totalorder %s27, 0
      %p48 = por %p46, %p47
      %p49 = scmp.ne.s32.totalorder %s35, %s36
      %p50 = scmp.eq.s32.totalorder %s28, 3
      %p51 = por %p49, %p50
      %p53 = scmp.ne.s32.totalorder %s36, %s52
      %p54 = scmp.eq.s32.totalorder %s28, 0
      %p55 = por %p53, %p54
      %s57 = sadd.s32 %s56, 1
      %p60 = scmp.eq.s32.totalorder %s22, 3
      %p61 = scmp.ne.s32.totalorder %s56, %s58
      %p62 = scmp.eq.s32.totalorder %s22, 0
      %p63 = por %p61, %p62
      %p64 = scmp.ne.s32.totalorder %s56, %s58
      %p65 = scmp.eq.s32.totalorder %s27, 3
      %p66 = por %p64, %p65
      %p67 = scmp.ne.s32.totalorder %s58, %s59
      %p68 = scmp.eq.s32.totalorder %s27, 0
      %p69 = por %p67, %p68
      %p70 = scmp.ne.s32.totalorder %s58, %s59
      %p71 = scmp.eq.s32.totalorder %s28, 3
      %p72 = por %p70, %p71
      %p74 = scmp.ne.s32.totalorder %s59, %s73
      %p75 = scmp.eq.s32.totalorder %s28, 0
      %p76 = por %p74, %p75
      %s78 = sadd.s32 %s77, 1
      %p81 = scmp.eq.s32.totalorder %s22, 3
      %p82 = scmp.ne.s32.totalorder %s77, %s79
      %p83 = scmp.eq.s32.totalorder %s22, 0
      %p84 = por %p82, %p83
      %p85 = scmp.ne.s32.totalorder %s77, %s79
      %p86 = scmp.eq.s32.totalorder %s27, 3
      %p87 = por %p85, %p86
      %p88 = scmp.ne.s32.totalorder %s79, %s80
      %p89 = scmp.eq.s32.totalorder %s27, 0
      %p90 = por %p88, %p89
      %p91 = scmp.ne.s32.totalorder %s79, %s80
      %p92 = scmp.eq.s32.totalorder %s28, 3
      %p93 = por %p91, %p92
      %p95 = scmp.ne.s32.totalorder %s80, %s94
      %p96 = scmp.eq.s32.totalorder %s28, 0
      %p97 = por %p95, %p96
      %s99 = sadd.s32 %s98, 1
      %p102 = scmp.eq.s32.totalorder %s22, 3
      %p103 = scmp.ne.s32.totalorder %s98, %s100
      %p104 = scmp.eq.s32.totalorder %s22, 0
      %p105 = por %p103, %p104
      %p106 = scmp.ne.s32.totalorder %s98, %s100
      %p107 = scmp.eq.s32.totalorder %s27, 3
      %p108 = por %p106, %p107
      %p109 = scmp.ne.s32.totalorder %s100, %s101
      %p110 = scmp.eq.s32.totalorder %s27, 0
      %p111 = por %p109, %p110
      %p112 = scmp.ne.s32.totalorder %s100, %s101
      %p113 = scmp.eq.s32.totalorder %s28, 3
      %p114 = por %p112, %p113
      %p116 = scmp.ne.s32.totalorder %s101, %s115
      %p117 = scmp.eq.s32.totalorder %s28, 0
      %p118 = por %p116, %p117
      %s120 = sadd.s32 %s119, 1
      %p123 = scmp.eq.s32.totalorder %s22, 3
      %p124 = scmp.ne.s32.totalorder %s119, %s121
      %p125 = scmp.eq.s32.totalorder %s22, 0
      %p126 = por %p124, %p125
      %p127 = scmp.ne.s32.totalorder %s119, %s121
      %p128 = scmp.eq.s32.totalorder %s27, 3
      %p129 = por %p127, %p128
      %p130 = scmp.ne.s32.totalorder %s121, %s122
      %p131 = scmp.eq.s32.totalorder %s27, 0
      %p132 = por %p130, %p131
      %p133 = scmp.ne.s32.totalorder %s121, %s122
      %p134 = scmp.eq.s32.totalorder %s28, 3
      %p135 = por %p133, %p134
      %p137 = scmp.ne.s32.totalorder %s122, %s136
      %p138 = scmp.eq.s32.totalorder %s28, 0
      %p139 = por %p137, %p138
      %s141 = sadd.s32 %s140, 1
      %p144 = scmp.eq.s32.totalorder %s22, 3
      %p145 = scmp.ne.s32.totalorder %s140, %s142
      %p146 = scmp.eq.s32.totalorder %s22, 0
      %p147 = por %p145, %p146
      %p148 = scmp.ne.s32.totalorder %s140, %s142
      %p149 = scmp.eq.s32.totalorder %s27, 3
      %p150 = por %p148, %p149
      %p151 = scmp.ne.s32.totalorder %s142, %s143
      %p152 = scmp.eq.s32.totalorder %s27, 0
      %p153 = por %p151, %p152
      %p154 = scmp.ne.s32.totalorder %s142, %s143
      %p155 = scmp.eq.s32.totalorder %s28, 3
      %p156 = por %p154, %p155
      %p158 = scmp.ne.s32.totalorder %s143, %s157
      %p159 = scmp.eq.s32.totalorder %s28, 0
      %p160 = por %p158, %p159
      %s162 = sadd.s32 %s161, 1
      %p165 = scmp.eq.s32.totalorder %s22, 3
      %p166 = scmp.ne.s32.totalorder %s161, %s163
      %p167 = scmp.eq.s32.totalorder %s22, 0
      %p168 = por %p166, %p167
      %p169 = scmp.ne.s32.totalorder %s161, %s163
      %p170 = scmp.eq.s32.totalorder %s27, 3
      %p171 = por %p169, %p170
      %p172 = scmp.ne.s32.totalorder %s163, %s164
      %p173 = scmp.eq.s32.totalorder %s27, 0
      %p174 = por %p172, %p173
      %p175 = scmp.ne.s32.totalorder %s163, %s164
      %p176 = scmp.eq.s32.totalorder %s28, 3
      %p177 = por %p175, %p176
      %p179 = scmp.ne.s32.totalorder %s164, %s178
      %p180 = scmp.eq.s32.totalorder %s28, 0
      %p181 = por %p179, %p180
      %s183 = sadd.s32 %s182, 1
      %p186 = scmp.eq.s32.totalorder %s22, 3
      %p187 = scmp.ne.s32.totalorder %s182, %s184
      %p188 = scmp.eq.s32.totalorder %s22, 0
      %p189 = por %p187, %p188
      %p190 = scmp.ne.s32.totalorder %s182, %s184
      %p191 = scmp.eq.s32.totalorder %s27, 3
      %p192 = por %p190, %p191
      %p193 = scmp.ne.s32.totalorder %s184, %s185
      %p194 = scmp.eq.s32.totalorder %s27, 0
      %p195 = por %p193, %p194
      %p196 = scmp.ne.s32.totalorder %s184, %s185
      %p197 = scmp.eq.s32.totalorder %s28, 3
      %p198 = por %p196, %p197
      %p200 = scmp.ne.s32.totalorder %s185, %s199
      %p201 = scmp.eq.s32.totalorder %s28, 0
      %p202 = por %p200, %p201
      %s203 = ssub.s32 %s22, %s29
      %p204 = scmp.eq.s32.totalorder %s203, 0
      %s206 = sadd.s32 %s205, 1
      %s207 = scalar_select %p204, %s205, %s206
      %p210 = pneg %p204
      %p211 = scmp.eq.s32.totalorder %s22, 3
      %p212 = por %p210, %p211
      %p213 = scmp.ne.s32.totalorder %s205, %s208
      %p214 = scmp.eq.s32.totalorder %s22, 0
      %p215 = por %p213, %p214
      %p216 = scmp.ne.s32.totalorder %s205, %s208
      %p217 = scmp.eq.s32.totalorder %s27, 3
      %p218 = por %p216, %p217
      %p219 = scmp.ne.s32.totalorder %s208, %s209
      %p220 = scmp.eq.s32.totalorder %s27, 0
      %p221 = por %p219, %p220
      %p222 = scmp.ne.s32.totalorder %s208, %s209
      %p223 = scmp.eq.s32.totalorder %s28, 3
      %p224 = por %p222, %p223
      %p226 = scmp.ne.s32.totalorder %s209, %s225
      %p227 = scmp.eq.s32.totalorder %s28, 0
      %p228 = por %p226, %p227
      %p229 = scmp.le.s32.totalorder 1, %s22
      %p230 = scmp.lt.s32.totalorder %s22, 5
      %p231 = pnand %p229, %p230
      %p232 = pneg %p231
      // Predicated region
      $region9: #{tpu_custom_call.1} parent=5 // pred_check
        _
      $region10: #{tpu_custom_call.1} parent=5 // pred_check_branch
        %234 = sbr.rel (%p231) target = $region12
      $region11: #{tpu_custom_call.1} parent=5 // pred_region
        %s235 = ssub.s32 %s22, 1
        // Predicated region
        $region13: #{tpu_custom_call.1} parent=11 // pred_check
          %p236 = pneg %p69
        $region14: #{tpu_custom_call.1} parent=11 // pred_check_branch
          %238 = sbr.rel (%p236) target = $region16
        $region15: #{tpu_custom_call.1} parent=11 // pred_region
          _
        $region16: #{tpu_custom_call.1} parent=11 // pred_fallthru
          _
        // Predicated region
        $region17: #{tpu_custom_call.1} parent=11 // pred_check
          %p239 = pneg %p90
        $region18: #{tpu_custom_call.1} parent=11 // pred_check_branch
          %241 = sbr.rel (%p239) target = $region20
        $region19: #{tpu_custom_call.1} parent=11 // pred_region
          %s243 = ssub.s32 1024, 1024
          %244 = vsyncadd [#allocation7], %s243
          %s245 = sshll.u32 [#allocation6], 4
          %s246 = int_to_ptr.vmem [resolvable:$true] %s245
          %251 = dma.hbm_to_vmem [thread:$0]  %s2, 1024, %s246, [#allocation7], 64, 64, 4
        $region20: #{tpu_custom_call.1} parent=11 // pred_fallthru
          _
        // Predicated region
        $region21: #{tpu_custom_call.1} parent=11 // pred_check
          %p252 = pneg %p111
        $region22: #{tpu_custom_call.1} parent=11 // pred_check_branch
          %254 = sbr.rel (%p252) target = $region24
        $region23: #{tpu_custom_call.1} parent=11 // pred_region
          _
        $region24: #{tpu_custom_call.1} parent=11 // pred_fallthru
          _
        // Predicated region
        $region25: #{tpu_custom_call.1} parent=11 // pred_check
          %p255 = pneg %p132
        $region26: #{tpu_custom_call.1} parent=11 // pred_check_branch
          %257 = sbr.rel (%p255) target = $region28
        $region27: #{tpu_custom_call.1} parent=11 // pred_region
          %s259 = ssub.s32 12288, 12288
          %260 = vsyncadd [#allocation7], %s259
          %s261 = sshll.u32 [#allocation8], 4
          %s262 = int_to_ptr.vmem [resolvable:$true] %s261
          %267 = dma.hbm_to_vmem [thread:$0]  %s4, 12288, %s262, [#allocation7], 64, 64, 4
        $region28: #{tpu_custom_call.1} parent=11 // pred_fallthru
          _
        // Predicated region
        $region29: #{tpu_custom_call.1} parent=11 // pred_check
          %p268 = pneg %p153
        $region30: #{tpu_custom_call.1} parent=11 // pred_check_branch
          %270 = sbr.rel (%p268) target = $region32
        $region31: #{tpu_custom_call.1} parent=11 // pred_region
          _
        $region32: #{tpu_custom_call.1} parent=11 // pred_fallthru
          _
        // Predicated region
        $region33: #{tpu_custom_call.1} parent=11 // pred_check
          %p271 = pneg %p174
        $region34: #{tpu_custom_call.1} parent=11 // pred_check_branch
          %273 = sbr.rel (%p271) target = $region36
        $region35: #{tpu_custom_call.1} parent=11 // pred_region
          _
        $region36: #{tpu_custom_call.1} parent=11 // pred_fallthru
          _
        // Predicated region
        $region37: #{tpu_custom_call.1} parent=11 // pred_check
          %p274 = pneg %p195
        $region38: #{tpu_custom_call.1} parent=11 // pred_check_branch
          %276 = sbr.rel (%p274) target = $region40
        $region39: #{tpu_custom_call.1} parent=11 // pred_region
          _
        $region40: #{tpu_custom_call.1} parent=11 // pred_fallthru
          _
      $region12: #{tpu_custom_call.1} parent=5 // pred_fallthru
        _
      %p277 = scmp.lt.s32.totalorder %s22, 4
      // Predicated region
      $region41: #{tpu_custom_call.1} parent=5 // pred_check
        %p278 = pneg %p277
      $region42: #{tpu_custom_call.1} parent=5 // pred_check_branch
        %280 = sbr.rel (%p278) target = $region44
      $region43: #{tpu_custom_call.1} parent=5 // pred_region
        // Predicated region
        $region45: #{tpu_custom_call.1} parent=43 // pred_check
          %p281 = pneg %p42
        $region46: #{tpu_custom_call.1} parent=43 // pred_check_branch
          %283 = sbr.rel (%p281) target = $region48
        $region47: #{tpu_custom_call.1} parent=43 // pred_region
          %s284 = sand.u32 %s32, 1
          %s285 = scalar_lea.sflag [#allocation4], %s284
          %s286 = sand.u32 %s32, 1
          %s287 = smul.addr %s286, 136
          %s288 = scalar_lea.vmem [#allocation3], %s287
          %s290 = ssub.s32 2176, 2176
          %291 = vsyncadd %s285, %s290
          %s292 = smul.addr %s22, 128
          %s293 = scalar_lea.hbm %s0, %s292
          %s294 = sshll.u32 %s288, 4
          %s295 = int_to_ptr.vmem [resolvable:$true] %s294
          %300 = dma.hbm_to_vmem [thread:$0]  %s293, 2176, %s295, %s285, 512, 128, 8
        $region48: #{tpu_custom_call.1} parent=43 // pred_fallthru
          _
      $region44: #{tpu_custom_call.1} parent=5 // pred_fallthru
        _
      %p301 = scmp.le.s32.totalorder 1, %s22
      %p302 = scmp.lt.s32.totalorder %s22, 5
      %p303 = pnand %p301, %p302
      %p304 = pneg %p303
      // Predicated region
      $region49: #{tpu_custom_call.1} parent=5 // pred_check
        _
      $region50: #{tpu_custom_call.1} parent=5 // pred_check_branch
        %306 = sbr.rel (%p303) target = $region52
      $region51: #{tpu_custom_call.1} parent=5 // pred_region
        %s307 = ssub.s32 %s22, 1
        %s308 = sand.u32 %s35, 1
        %s309 = scalar_lea.sflag [#allocation4], %s308
        %s310 = sand.u32 %s35, 1
        %s311 = smul.addr %s310, 136
        %s312 = scalar_lea.vmem [#allocation3], %s311
        // Predicated region
        $region53: #{tpu_custom_call.1} parent=51 // pred_check
          %p313 = pneg %p48
        $region54: #{tpu_custom_call.1} parent=51 // pred_check_branch
          %315 = sbr.rel (%p313) target = $region56
        $region55: #{tpu_custom_call.1} parent=51 // pred_region
          %316 = dma.done %s309, 2176
        $region56: #{tpu_custom_call.1} parent=51 // pred_fallthru
          _
        // Predicated region
        $region57: #{tpu_custom_call.1} parent=51 // pred_check
          %p317 = pneg %p90
        $region58: #{tpu_custom_call.1} parent=51 // pred_check_branch
          %319 = sbr.rel (%p317) target = $region60
        $region59: #{tpu_custom_call.1} parent=51 // pred_region
          %320 = dma.done [#allocation7], 1024
        $region60: #{tpu_custom_call.1} parent=51 // pred_fallthru
          _
        // Predicated region
        $region61: #{tpu_custom_call.1} parent=51 // pred_check
          %p321 = pneg %p132
        $region62: #{tpu_custom_call.1} parent=51 // pred_check_branch
          %323 = sbr.rel (%p321) target = $region64
        $region63: #{tpu_custom_call.1} parent=51 // pred_region
          %324 = dma.done [#allocation7], 12288
        $region64: #{tpu_custom_call.1} parent=51 // pred_fallthru
          _
        %s325 = sand.u32 %s35, 1
        %s326 = scalar_lea.sflag [#allocation4], %s325
        %s327 = sand.u32 %s35, 1
        %s328 = smul.addr %s327, 136
        %s329 = scalar_lea.vmem [#allocation3], %s328
        %p330 = pneg %p48
        %p331 = pneg %p45
        %p332 = pneg %p69
        %p333 = pneg %p66
        %p334 = pneg %p90
        %p335 = pneg %p87
        %p336 = pneg %p111
        %p337 = pneg %p108
        %p338 = pneg %p132
        %p339 = pneg %p129
        %p340 = pneg %p153
        %p341 = pneg %p150
        %p342 = pneg %p174
        %p343 = pneg %p171
        %p344 = pneg %p195
        %p345 = pneg %p192
        %p346 = pneg %p221
        %p347 = pneg %p218
        %s348 = sand.u32 %s208, 1
        %s349 = scalar_lea.sflag [#allocation5], %s348
        %s350 = sand.u32 %s208, 1
        %s351 = scalar_lea.vmem [#allocation9], %s350
        %v353 = vld [vmem:[%s312] sm:$0xff]
        %v354 = vld [vmem:[%s312 + $0x8] sm:$0xff]
        %v355 = vld [vmem:[%s312 + $0x10] sm:$0xff]
        %v356 = vld [vmem:[%s312 + $0x18] sm:$0xff]
        %v357 = vld [vmem:[%s312 + $0x20] sm:$0xff]
        %v358 = vld [vmem:[%s312 + $0x28] sm:$0xff]
        %v359 = vld [vmem:[%s312 + $0x30] sm:$0xff]
        %v360 = vld [vmem:[%s312 + $0x38] sm:$0xff]
        %v361 = vld [vmem:[%s312 + $0x40] sm:$0xff]
        %v362 = vld [vmem:[%s312 + $0x48] sm:$0xff]
        %v363 = vld [vmem:[%s312 + $0x50] sm:$0xff]
        %v364 = vld [vmem:[%s312 + $0x58] sm:$0xff]
        %v365 = vld [vmem:[%s312 + $0x60] sm:$0xff]
        %v366 = vld [vmem:[%s312 + $0x68] sm:$0xff]
        %v367 = vld [vmem:[%s312 + $0x70] sm:$0xff]
        %v368 = vld [vmem:[%s312 + $0x78] sm:$0xff]
        %v369 = vld [vmem:[%s312 + $0x80] sm:$0xff]
        %v370 = vld [vmem:[%s1] sm:$0xff]
        %v371 = vld [vmem:[%s1 + $0x8] sm:$0xff]
        %v372 = vld [vmem:[%s1 + $0x10] sm:$0xff]
        %v373 = vld [vmem:[%s1 + $0x18] sm:$0xff]
        %v374 = vld [vmem:[%s1 + $0x20] sm:$0xff]
        %v375 = vld [vmem:[%s1 + $0x28] sm:$0xff]
        %v376 = vld [vmem:[%s1 + $0x30] sm:$0xff]
        %v377 = vld [vmem:[%s1 + $0x38] sm:$0xff]
        %v378 = vpack.c.bf16 %v354, %v353
        %v379 = vpack.c.bf16 %v356, %v355
        %v380 = vpack.c.bf16 %v358, %v357
        %v381 = vpack.c.bf16 %v360, %v359
        %v382 = vpack.c.bf16 %v362, %v361
        %v383 = vpack.c.bf16 %v364, %v363
        %v384 = vpack.c.bf16 %v366, %v365
        %v385 = vpack.c.bf16 %v368, %v367
        %v386 = vpack.c.bf16 %v369, %v369
        %v387 = vld [vmem:[%s3] sm:$0xff]
        %v388 = vld [vmem:[%s3 + $0x8] sm:$0xff]
        %v389 = vld [vmem:[%s3 + $0x10] sm:$0xff]
        %v390 = vld [vmem:[%s3 + $0x18] sm:$0xff]
        %v391 = vld [vmem:[%s3 + $0x20] sm:$0xff]
        %v392 = vld [vmem:[%s3 + $0x28] sm:$0xff]
        %v393 = vld [vmem:[%s3 + $0x30] sm:$0xff]
        %v394 = vld [vmem:[%s3 + $0x38] sm:$0xff]
        %396 = vset.pattern.permute.xlu0 0
        %397 = vperm.xlu0 %396, %v387
        %v398 = vpop.permute.xlu0 %397
        %401 = vset.pattern.permute.xlu0 0
        %402 = vperm.xlu0 %401, %v388
        %v403 = vpop.permute.xlu0 %402
        %406 = vset.pattern.permute.xlu0 0
        %407 = vperm.xlu0 %406, %v389
        %v408 = vpop.permute.xlu0 %407
        %411 = vset.pattern.permute.xlu0 0
        %412 = vperm.xlu0 %411, %v390
        %v413 = vpop.permute.xlu0 %412
        %416 = vset.pattern.permute.xlu0 0
        %417 = vperm.xlu0 %416, %v391
        %v418 = vpop.permute.xlu0 %417
        %421 = vset.pattern.permute.xlu0 0
        %422 = vperm.xlu0 %421, %v392
        %v423 = vpop.permute.xlu0 %422
        %426 = vset.pattern.permute.xlu0 0
        %427 = vperm.xlu0 %426, %v393
        %v428 = vpop.permute.xlu0 %427
        %431 = vset.pattern.permute.xlu0 0
        %432 = vperm.xlu0 %431, %v394
        %v433 = vpop.permute.xlu0 %432
        %v443 = vunpack.c.l.b16 %v370
        %v444 = vunpack.c.h.b16 %v370
        %v445 = vunpack.c.l.b16 %v371
        %v446 = vunpack.c.h.b16 %v371
        %v447 = vunpack.c.l.b16 %v372
        %v448 = vunpack.c.h.b16 %v372
        %v449 = vunpack.c.l.b16 %v373
        %v450 = vunpack.c.h.b16 %v373
        %v451 = vunpack.c.l.b16 %v374
        %v452 = vunpack.c.h.b16 %v374
        %v453 = vunpack.c.l.b16 %v375
        %v454 = vunpack.c.h.b16 %v375
        %v455 = vunpack.c.l.b16 %v376
        %v456 = vunpack.c.h.b16 %v376
        %v457 = vunpack.c.l.b16 %v377
        %v458 = vunpack.c.h.b16 %v377
        %v459 = vpack.c.b16 %v445, %v443
        %v460 = vpack.c.b16 %v446, %v444
        %v461 = vpack.c.b16 %v449, %v447
        %v462 = vpack.c.b16 %v450, %v448
        %v463 = vpack.c.b16 %v453, %v451
        %v464 = vpack.c.b16 %v454, %v452
        %v465 = vpack.c.b16 %v457, %v455
        %v466 = vpack.c.b16 %v458, %v456
        %vm471 = vcmask 64512
        %v473 = vsel %vm471, %v460, 0
        %v476 = vsel %vm471, %v462, 0
        %v479 = vsel %vm471, %v464, 0
        %v482 = vsel %vm471, %v466, 0
        %vm484 = vcmask 1043456
        %v486 = vsel %vm484, %v386, 0
        %488 = vmatprep.subr.bf16.mxu0 0
        %489 = vmatpush1.bf16.msra.mxu0 %v378
        %490 = vmatprep.subr.bf16.mxu0 0
        %491 = vmatpush1.bf16.msra.mxu0 %v379
        %492 = vmatprep.subr.bf16.mxu0 0
        %493 = vmatpush1.bf16.msra.mxu0 %v380
        %494 = vmatprep.subr.bf16.mxu0 0
        %495 = vmatpush1.bf16.msra.mxu0 %v381
        %496 = vmatprep.subr.bf16.mxu0 0
        %497 = vmatpush1.bf16.msra.mxu0 %v382
        %498 = vmatprep.subr.bf16.mxu0 0
        %499 = vmatpush1.bf16.msra.mxu0 %v383
        %500 = vmatprep.subr.bf16.mxu0 0
        %501 = vmatpush1.bf16.msra.mxu0 %v384
        %502 = vmatprep.subr.bf16.mxu0 0
        %503 = vmatpush1.bf16.msra.mxu0 %v385
        %504 = vmatprep.subr.bf16.mxu0 0
        %505 = vmatpush1.bf16.msra.mxu0 %v486
        %506 = vmatprep.subr.bf16.mxu0 0
        %507 = vmatpush1.bf16.msra.mxu0 0
        %508 = vmatprep.subr.bf16.mxu0 0
        %509 = vmatpush1.bf16.msra.mxu0 0
        %510 = vmatprep.subr.bf16.mxu0 0
        %511 = vmatpush1.bf16.msra.mxu0 0
        %512 = vmatprep.subr.bf16.mxu0 0
        %513 = vmatpush1.bf16.msra.mxu0 0
        %514 = vmatprep.subr.bf16.mxu0 0
        %515 = vmatpush1.bf16.msra.mxu0 0
        %516 = vmatprep.subr.bf16.mxu0 0
        %517 = vmatpush1.bf16.msra.mxu0 0
        %518 = vmatprep.subr.bf16.mxu0 0
        %519 = vmatpush1.bf16.msra.mxu0 0
        %520 = vmatprep.mubr.bf16.mxu0 %v473
        %521 = vmatmul.mubr.bf16.gmra.mrb[0].mxu0 %v459
        %v522 = vpop.f32.mrb[0].mxu0
        %v523 = vadd.f32 %v398, %v522
        %v524 = vpop.f32.mrb[0].mxu0
        %v525 = vpop.f32.mrb[0].mxu0
        %v526 = vadd.f32 %v403, %v525
        %v527 = vpop.f32.mrb[0].mxu0
        %528 = vmatprep.mubr.bf16.mxu0 %v476
        %529 = vmatmul.mubr.bf16.gmra.mrb[0].mxu0 %v461
        %v530 = vpop.f32.mrb[0].mxu0
        %v531 = vadd.f32 %v408, %v530
        %v532 = vpop.f32.mrb[0].mxu0
        %v533 = vpop.f32.mrb[0].mxu0
        %v534 = vadd.f32 %v413, %v533
        %v535 = vpop.f32.mrb[0].mxu0
        %536 = vmatprep.mubr.bf16.mxu0 %v479
        %537 = vmatmul.mubr.bf16.gmra.mrb[0].mxu0 %v463
        %v538 = vpop.f32.mrb[0].mxu0
        %v539 = vadd.f32 %v418, %v538
        %v540 = vpop.f32.mrb[0].mxu0
        %v541 = vpop.f32.mrb[0].mxu0
        %v542 = vadd.f32 %v423, %v541
        %v543 = vpop.f32.mrb[0].mxu0
        %544 = vmatprep.mubr.bf16.mxu0 %v482
        %545 = vmatmul.mubr.bf16.gmra.mrb[0].mxu0 %v465
        %v546 = vpop.f32.mrb[0].mxu0
        %v547 = vadd.f32 %v428, %v546
        %v548 = vpop.f32.mrb[0].mxu0
        %v549 = vpop.f32.mrb[0].mxu0
        %v550 = vadd.f32 %v433, %v549
        %v551 = vpop.f32.mrb[0].mxu0
        %552 = vdwg.mxu0
        %v553 = vmax.f32 %v523, 0.0
        %v554 = vmax.f32 %v526, 0.0
        %v555 = vmax.f32 %v531, 0.0
        %v556 = vmax.f32 %v534, 0.0
        %v557 = vmax.f32 %v539, 0.0
        %v558 = vmax.f32 %v542, 0.0
        %v559 = vmax.f32 %v547, 0.0
        %v560 = vmax.f32 %v550, 0.0
        %v561 = vld [vmem:[#allocation6] sm:$0xf]
        %v562 = vld [vmem:[#allocation6 + $0x4] sm:$0xf]
        %v563 = vld [vmem:[#allocation6 + $0x8] sm:$0xf]
        %v564 = vld [vmem:[#allocation6 + $0xc] sm:$0xf]
        %v565 = vld [vmem:[#allocation6 + $0x10] sm:$0xf]
        %v566 = vld [vmem:[#allocation6 + $0x14] sm:$0xf]
        %v567 = vld [vmem:[#allocation6 + $0x18] sm:$0xf]
        %v568 = vld [vmem:[#allocation6 + $0x1c] sm:$0xf]
        %v569 = vpack.c.bf16 %v554, %v553
        %v570 = vpack.c.bf16 %v556, %v555
        %v571 = vpack.c.bf16 %v558, %v557
        %v572 = vpack.c.bf16 %v560, %v559
        %573 = vset.pattern.permute.xlu0 1
        %574 = vperm.xlu0 %573, %v387
        %v575 = vpop.permute.xlu0 %574
        %577 = vset.pattern.permute.xlu0 1
        %578 = vperm.xlu0 %577, %v388
        %v579 = vpop.permute.xlu0 %578
        %581 = vset.pattern.permute.xlu0 1
        %582 = vperm.xlu0 %581, %v389
        %v583 = vpop.permute.xlu0 %582
        %585 = vset.pattern.permute.xlu0 1
        %586 = vperm.xlu0 %585, %v390
        %v587 = vpop.permute.xlu0 %586
        %589 = vset.pattern.permute.xlu0 1
        %590 = vperm.xlu0 %589, %v391
        %v591 = vpop.permute.xlu0 %590
        %593 = vset.pattern.permute.xlu0 1
        %594 = vperm.xlu0 %593, %v392
        %v595 = vpop.permute.xlu0 %594
        %597 = vset.pattern.permute.xlu0 1
        %598 = vperm.xlu0 %597, %v393
        %v599 = vpop.permute.xlu0 %598
        %601 = vset.pattern.permute.xlu0 1
        %602 = vperm.xlu0 %601, %v394
        %v603 = vpop.permute.xlu0 %602
        %v613 = vunpack.c.l.b16 %v561
        %v614 = vunpack.c.l.b16 %v562
        %v615 = vunpack.c.l.b16 %v563
        %v616 = vunpack.c.l.b16 %v564
        %v617 = vunpack.c.l.b16 %v565
        %v618 = vunpack.c.l.b16 %v566
        %v619 = vunpack.c.l.b16 %v567
        %v620 = vunpack.c.l.b16 %v568
        %v621 = vpack.c.b16 %v614, %v613
        %v622 = vpack.c.b16 %v616, %v615
        %v623 = vpack.c.b16 %v618, %v617
        %v624 = vpack.c.b16 %v620, %v619
        %vm625 = vcmask 523264
        %v627 = vsel %vm625, %v621, 0
        %v630 = vsel %vm625, %v622, 0
        %v633 = vsel %vm625, %v623, 0
        %v636 = vsel %vm625, %v624, 0
        %638 = vmatprep.subr.bf16.mxu0 0
        %639 = vmatpush1.bf16.msra.mxu0 %v569
        %640 = vmatprep.subr.bf16.mxu0 0
        %641 = vmatpush1.bf16.msra.mxu0 %v570
        %642 = vmatprep.subr.bf16.mxu0 0
        %643 = vmatpush1.bf16.msra.mxu0 %v571
        %644 = vmatprep.subr.bf16.mxu0 0
        %645 = vmatpush1.bf16.msra.mxu0 %v572
        %646 = vmatprep.subr.bf16.mxu0 0
        %647 = vmatpush1.bf16.msra.mxu0 0
        %648 = vmatprep.subr.bf16.mxu0 0
        %649 = vmatpush1.bf16.msra.mxu0 0
        %650 = vmatprep.subr.bf16.mxu0 0
        %651 = vmatpush1.bf16.msra.mxu0 0
        %652 = vmatprep.subr.bf16.mxu0 0
        %653 = vmatpush1.bf16.msra.mxu0 0
        %654 = vmatprep.subr.bf16.mxu0 0
        %655 = vmatpush1.bf16.msra.mxu0 0
        %656 = vmatprep.subr.bf16.mxu0 0
        %657 = vmatpush1.bf16.msra.mxu0 0
        %658 = vmatprep.subr.bf16.mxu0 0
        %659 = vmatpush1.bf16.msra.mxu0 0
        %660 = vmatprep.subr.bf16.mxu0 0
        %661 = vmatpush1.bf16.msra.mxu0 0
        %662 = vmatprep.subr.bf16.mxu0 0
        %663 = vmatpush1.bf16.msra.mxu0 0
        %664 = vmatprep.subr.bf16.mxu0 0
        %665 = vmatpush1.bf16.msra.mxu0 0
        %666 = vmatprep.subr.bf16.mxu0 0
        %667 = vmatpush1.bf16.msra.mxu0 0
        %668 = vmatprep.subr.bf16.mxu0 0
        %669 = vmatpush1.bf16.msra.mxu0 0
        %670 = vmatprep.mubr.bf16.mxu0 0
        %671 = vmatmul.mubr.bf16.gmra.mrb[0].mxu0 %v627
        %v672 = vpop.f32.mrb[0].mxu0
        %v673 = vadd.f32 %v575, %v672
        %v674 = vpop.f32.mrb[0].mxu0
        %v675 = vpop.f32.mrb[0].mxu0
        %v676 = vadd.f32 %v579, %v675
        %v677 = vpop.f32.mrb[0].mxu0
        %678 = vmatprep.mubr.bf16.mxu0 0
        %679 = vmatmul.mubr.bf16.gmra.mrb[0].mxu0 %v630
        %v680 = vpop.f32.mrb[0].mxu0
        %v681 = vadd.f32 %v583, %v680
        %v682 = vpop.f32.mrb[0].mxu0
        %v683 = vpop.f32.mrb[0].mxu0
        %v684 = vadd.f32 %v587, %v683
        %v685 = vpop.f32.mrb[0].mxu0
        %686 = vmatprep.mubr.bf16.mxu0 0
        %687 = vmatmul.mubr.bf16.gmra.mrb[0].mxu0 %v633
        %v688 = vpop.f32.mrb[0].mxu0
        %v689 = vadd.f32 %v591, %v688
        %v690 = vpop.f32.mrb[0].mxu0
        %v691 = vpop.f32.mrb[0].mxu0
        %v692 = vadd.f32 %v595, %v691
        %v693 = vpop.f32.mrb[0].mxu0
        %694 = vmatprep.mubr.bf16.mxu0 0
        %695 = vmatmul.mubr.bf16.gmra.mrb[0].mxu0 %v636
        %v696 = vpop.f32.mrb[0].mxu0
        %v697 = vadd.f32 %v599, %v696
        %v698 = vpop.f32.mrb[0].mxu0
        %v699 = vpop.f32.mrb[0].mxu0
        %v700 = vadd.f32 %v603, %v699
        %v701 = vpop.f32.mrb[0].mxu0
        %702 = vdwg.mxu0
        %v703 = vmax.f32 %v673, 0.0
        %v704 = vmax.f32 %v676, 0.0
        %v705 = vmax.f32 %v681, 0.0
        %v706 = vmax.f32 %v684, 0.0
        %v707 = vmax.f32 %v689, 0.0
        %v708 = vmax.f32 %v692, 0.0
        %v709 = vmax.f32 %v697, 0.0
        %v710 = vmax.f32 %v700, 0.0
        %s711 = scalar_lea.vmem [#allocation6], 32
        %v712 = vld [vmem:[%s711] sm:$0xf]
        %v713 = vld [vmem:[%s711 + $0x4] sm:$0xf]
        %v714 = vld [vmem:[%s711 + $0x8] sm:$0xf]
        %v715 = vld [vmem:[%s711 + $0xc] sm:$0xf]
        %v716 = vld [vmem:[%s711 + $0x10] sm:$0xf]
        %v717 = vld [vmem:[%s711 + $0x14] sm:$0xf]
        %v718 = vld [vmem:[%s711 + $0x18] sm:$0xf]
        %v719 = vld [vmem:[%s711 + $0x1c] sm:$0xf]
        %v720 = vpack.c.bf16 %v704, %v703
        %v721 = vpack.c.bf16 %v706, %v705
        %v722 = vpack.c.bf16 %v708, %v707
        %v723 = vpack.c.bf16 %v710, %v709
        %724 = vset.pattern.permute.xlu0 2
        %725 = vperm.xlu0 %724, %v387
        %v726 = vpop.permute.xlu0 %725
        %728 = vset.pattern.permute.xlu0 2
        %729 = vperm.xlu0 %728, %v388
        %v730 = vpop.permute.xlu0 %729
        %732 = vset.pattern.permute.xlu0 2
        %733 = vperm.xlu0 %732, %v389
        %v734 = vpop.permute.xlu0 %733
        %736 = vset.pattern.permute.xlu0 2
        %737 = vperm.xlu0 %736, %v390
        %v738 = vpop.permute.xlu0 %737
        %740 = vset.pattern.permute.xlu0 2
        %741 = vperm.xlu0 %740, %v391
        %v742 = vpop.permute.xlu0 %741
        %744 = vset.pattern.permute.xlu0 2
        %745 = vperm.xlu0 %744, %v392
        %v746 = vpop.permute.xlu0 %745
        %748 = vset.pattern.permute.xlu0 2
        %749 = vperm.xlu0 %748, %v393
        %v750 = vpop.permute.xlu0 %749
        %752 = vset.pattern.permute.xlu0 2
        %753 = vperm.xlu0 %752, %v394
        %v754 = vpop.permute.xlu0 %753
        %v764 = vunpack.c.l.b16 %v712
        %v765 = vunpack.c.l.b16 %v713
        %v766 = vunpack.c.l.b16 %v714
        %v767 = vunpack.c.l.b16 %v715
        %v768 = vunpack.c.l.b16 %v716
        %v769 = vunpack.c.l.b16 %v717
        %v770 = vunpack.c.l.b16 %v718
        %v771 = vunpack.c.l.b16 %v719
        %v772 = vpack.c.b16 %v765, %v764
        %v773 = vpack.c.b16 %v767, %v766
        %v774 = vpack.c.b16 %v769, %v768
        %v775 = vpack.c.b16 %v771, %v770
        %v777 = vsel %vm625, %v772, 0
        %v780 = vsel %vm625, %v773, 0
        %v783 = vsel %vm625, %v774, 0
        %v786 = vsel %vm625, %v775, 0
        %788 = vmatprep.subr.bf16.mxu0 0
        %789 = vmatpush1.bf16.msra.mxu0 %v720
        %790 = vmatprep.subr.bf16.mxu0 0
        %791 = vmatpush1.bf16.msra.mxu0 %v721
        %792 = vmatprep.subr.bf16.mxu0 0
        %793 = vmatpush1.bf16.msra.mxu0 %v722
        %794 = vmatprep.subr.bf16.mxu0 0
        %795 = vmatpush1.bf16.msra.mxu0 %v723
        %796 = vmatprep.subr.bf16.mxu0 0
        %797 = vmatpush1.bf16.msra.mxu0 0
        %798 = vmatprep.subr.bf16.mxu0 0
        %799 = vmatpush1.bf16.msra.mxu0 0
        %800 = vmatprep.subr.bf16.mxu0 0
        %801 = vmatpush1.bf16.msra.mxu0 0
        %802 = vmatprep.subr.bf16.mxu0 0
        %803 = vmatpush1.bf16.msra.mxu0 0
        %804 = vmatprep.subr.bf16.mxu0 0
        %805 = vmatpush1.bf16.msra.mxu0 0
        %806 = vmatprep.subr.bf16.mxu0 0
        %807 = vmatpush1.bf16.msra.mxu0 0
        %808 = vmatprep.subr.bf16.mxu0 0
        %809 = vmatpush1.bf16.msra.mxu0 0
        %810 = vmatprep.subr.bf16.mxu0 0
        %811 = vmatpush1.bf16.msra.mxu0 0
        %812 = vmatprep.subr.bf16.mxu0 0
        %813 = vmatpush1.bf16.msra.mxu0 0
        %814 = vmatprep.subr.bf16.mxu0 0
        %815 = vmatpush1.bf16.msra.mxu0 0
        %816 = vmatprep.subr.bf16.mxu0 0
        %817 = vmatpush1.bf16.msra.mxu0 0
        %818 = vmatprep.subr.bf16.mxu0 0
        %819 = vmatpush1.bf16.msra.mxu0 0
        %820 = vmatprep.mubr.bf16.mxu0 0
        %821 = vmatmul.mubr.bf16.gmra.mrb[0].mxu0 %v777
        %v822 = vpop.f32.mrb[0].mxu0
        %v823 = vadd.f32 %v726, %v822
        %v824 = vpop.f32.mrb[0].mxu0
        %v825 = vpop.f32.mrb[0].mxu0
        %v826 = vadd.f32 %v730, %v825
        %v827 = vpop.f32.mrb[0].mxu0
        %828 = vmatprep.mubr.bf16.mxu0 0
        %829 = vmatmul.mubr.bf16.gmra.mrb[0].mxu0 %v780
        %v830 = vpop.f32.mrb[0].mxu0
        %v831 = vadd.f32 %v734, %v830
        %v832 = vpop.f32.mrb[0].mxu0
        %v833 = vpop.f32.mrb[0].mxu0
        %v834 = vadd.f32 %v738, %v833
        %v835 = vpop.f32.mrb[0].mxu0
        %836 = vmatprep.mubr.bf16.mxu0 0
        %837 = vmatmul.mubr.bf16.gmra.mrb[0].mxu0 %v783
        %v838 = vpop.f32.mrb[0].mxu0
        %v839 = vadd.f32 %v742, %v838
        %v840 = vpop.f32.mrb[0].mxu0
        %v841 = vpop.f32.mrb[0].mxu0
        %v842 = vadd.f32 %v746, %v841
        %v843 = vpop.f32.mrb[0].mxu0
        %844 = vmatprep.mubr.bf16.mxu0 0
        %845 = vmatmul.mubr.bf16.gmra.mrb[0].mxu0 %v786
        %v846 = vpop.f32.mrb[0].mxu0
        %v847 = vadd.f32 %v750, %v846
        %v848 = vpop.f32.mrb[0].mxu0
        %v849 = vpop.f32.mrb[0].mxu0
        %v850 = vadd.f32 %v754, %v849
        %v851 = vpop.f32.mrb[0].mxu0
        %852 = vdwg.mxu0
        %v853 = vmax.f32 %v823, 0.0
        %v854 = vmax.f32 %v826, 0.0
        %v855 = vmax.f32 %v831, 0.0
        %v856 = vmax.f32 %v834, 0.0
        %v857 = vmax.f32 %v839, 0.0
        %v858 = vmax.f32 %v842, 0.0
        %v859 = vmax.f32 %v847, 0.0
        %v860 = vmax.f32 %v850, 0.0
        %v861 = vld [vmem:[#allocation8] sm:$0xf]
        %v862 = vld [vmem:[#allocation8 + $0x4] sm:$0xf]
        %v863 = vld [vmem:[#allocation8 + $0x8] sm:$0xf]
        %v864 = vld [vmem:[#allocation8 + $0xc] sm:$0xf]
        %v865 = vld [vmem:[#allocation8 + $0x10] sm:$0xf]
        %v866 = vld [vmem:[#allocation8 + $0x14] sm:$0xf]
        %v867 = vld [vmem:[#allocation8 + $0x18] sm:$0xf]
        %v868 = vld [vmem:[#allocation8 + $0x1c] sm:$0xf]
        %v869 = vld [vmem:[#allocation8 + $0x20] sm:$0xf]
        %v870 = vld [vmem:[#allocation8 + $0x24] sm:$0xf]
        %v871 = vld [vmem:[#allocation8 + $0x28] sm:$0xf]
        %v872 = vld [vmem:[#allocation8 + $0x2c] sm:$0xf]
        %v873 = vld [vmem:[#allocation8 + $0x30] sm:$0xf]
        %v874 = vld [vmem:[#allocation8 + $0x34] sm:$0xf]
        %v875 = vld [vmem:[#allocation8 + $0x38] sm:$0xf]
        %v876 = vld [vmem:[#allocation8 + $0x3c] sm:$0xf]
        %v877 = vld [vmem:[#allocation8 + $0x40] sm:$0xf]
        %v878 = vld [vmem:[#allocation8 + $0x44] sm:$0xf]
        %v879 = vld [vmem:[#allocation8 + $0x48] sm:$0xf]
        %v880 = vld [vmem:[#allocation8 + $0x4c] sm:$0xf]
        %v881 = vld [vmem:[#allocation8 + $0x50] sm:$0xf]
        %v882 = vld [vmem:[#allocation8 + $0x54] sm:$0xf]
        %v883 = vld [vmem:[#allocation8 + $0x58] sm:$0xf]
        %v884 = vld [vmem:[#allocation8 + $0x5c] sm:$0xf]
        %v885 = vld [vmem:[#allocation8 + $0x60] sm:$0xf]
        %v886 = vld [vmem:[#allocation8 + $0x64] sm:$0xf]
        %v887 = vld [vmem:[#allocation8 + $0x68] sm:$0xf]
        %v888 = vld [vmem:[#allocation8 + $0x6c] sm:$0xf]
        %v889 = vld [vmem:[#allocation8 + $0x70] sm:$0xf]
        %v890 = vld [vmem:[#allocation8 + $0x74] sm:$0xf]
        %v891 = vld [vmem:[#allocation8 + $0x78] sm:$0xf]
        %v892 = vld [vmem:[#allocation8 + $0x7c] sm:$0xf]
        %v893 = vld [vmem:[#allocation8 + $0x80] sm:$0xf]
        %v894 = vld [vmem:[#allocation8 + $0x84] sm:$0xf]
        %v895 = vld [vmem:[#allocation8 + $0x88] sm:$0xf]
        %v896 = vld [vmem:[#allocation8 + $0x8c] sm:$0xf]
        %v897 = vld [vmem:[#allocation8 + $0x90] sm:$0xf]
        %v898 = vld [vmem:[#allocation8 + $0x94] sm:$0xf]
        %v899 = vld [vmem:[#allocation8 + $0x98] sm:$0xf]
        %v900 = vld [vmem:[#allocation8 + $0x9c] sm:$0xf]
        %v901 = vld [vmem:[#allocation8 + $0xa0] sm:$0xf]
        %v902 = vld [vmem:[#allocation8 + $0xa4] sm:$0xf]
        %v903 = vld [vmem:[#allocation8 + $0xa8] sm:$0xf]
        %v904 = vld [vmem:[#allocation8 + $0xac] sm:$0xf]
        %v905 = vld [vmem:[#allocation8 + $0xb0] sm:$0xf]
        %v906 = vld [vmem:[#allocation8 + $0xb4] sm:$0xf]
        %v907 = vld [vmem:[#allocation8 + $0xb8] sm:$0xf]
        %v908 = vld [vmem:[#allocation8 + $0xbc] sm:$0xf]
        %v909 = vld [vmem:[#allocation8 + $0xc0] sm:$0xf]
        %v910 = vld [vmem:[#allocation8 + $0xc4] sm:$0xf]
        %v911 = vld [vmem:[#allocation8 + $0xc8] sm:$0xf]
        %v912 = vld [vmem:[#allocation8 + $0xcc] sm:$0xf]
        %v913 = vld [vmem:[#allocation8 + $0xd0] sm:$0xf]
        %v914 = vld [vmem:[#allocation8 + $0xd4] sm:$0xf]
        %v915 = vld [vmem:[#allocation8 + $0xd8] sm:$0xf]
        %v916 = vld [vmem:[#allocation8 + $0xdc] sm:$0xf]
        %v917 = vld [vmem:[#allocation8 + $0xe0] sm:$0xf]
        %v918 = vld [vmem:[#allocation8 + $0xe4] sm:$0xf]
        %v919 = vld [vmem:[#allocation8 + $0xe8] sm:$0xf]
        %v920 = vld [vmem:[#allocation8 + $0xec] sm:$0xf]
        %v921 = vld [vmem:[#allocation8 + $0xf0] sm:$0xf]
        %v922 = vld [vmem:[#allocation8 + $0xf4] sm:$0xf]
        %v923 = vld [vmem:[#allocation8 + $0xf8] sm:$0xf]
        %v924 = vld [vmem:[#allocation8 + $0xfc] sm:$0xf]
        %v989 = vunpack.c.l.b16 %v861
        %v990 = vunpack.c.l.b16 %v862
        %v991 = vunpack.c.l.b16 %v863
        %v992 = vunpack.c.l.b16 %v864
        %v993 = vunpack.c.l.b16 %v865
        %v994 = vunpack.c.l.b16 %v866
        %v995 = vunpack.c.l.b16 %v867
        %v996 = vunpack.c.l.b16 %v868
        %v997 = vunpack.c.l.b16 %v869
        %v998 = vunpack.c.l.b16 %v870
        %v999 = vunpack.c.l.b16 %v871
        %v1000 = vunpack.c.l.b16 %v872
        %v1001 = vunpack.c.l.b16 %v873
        %v1002 = vunpack.c.l.b16 %v874
        %v1003 = vunpack.c.l.b16 %v875
        %v1004 = vunpack.c.l.b16 %v876
        %v1005 = vunpack.c.l.b16 %v877
        %v1006 = vunpack.c.l.b16 %v878
        %v1007 = vunpack.c.l.b16 %v879
        %v1008 = vunpack.c.l.b16 %v880
        %v1009 = vunpack.c.l.b16 %v881
        %v1010 = vunpack.c.l.b16 %v882
        %v1011 = vunpack.c.l.b16 %v883
        %v1012 = vunpack.c.l.b16 %v884
        %v1013 = vunpack.c.l.b16 %v885
        %v1014 = vunpack.c.l.b16 %v886
        %v1015 = vunpack.c.l.b16 %v887
        %v1016 = vunpack.c.l.b16 %v888
        %v1017 = vunpack.c.l.b16 %v889
        %v1018 = vunpack.c.l.b16 %v890
        %v1019 = vunpack.c.l.b16 %v891
        %v1020 = vunpack.c.l.b16 %v892
        %v1021 = vunpack.c.l.b16 %v893
        %v1022 = vunpack.c.l.b16 %v894
        %v1023 = vunpack.c.l.b16 %v895
        %v1024 = vunpack.c.l.b16 %v896
        %v1025 = vunpack.c.l.b16 %v897
        %v1026 = vunpack.c.l.b16 %v898
        %v1027 = vunpack.c.l.b16 %v899
        %v1028 = vunpack.c.l.b16 %v900
        %v1029 = vunpack.c.l.b16 %v901
        %v1030 = vunpack.c.l.b16 %v902
        %v1031 = vunpack.c.l.b16 %v903
        %v1032 = vunpack.c.l.b16 %v904
        %v1033 = vunpack.c.l.b16 %v905
        %v1034 = vunpack.c.l.b16 %v906
        %v1035 = vunpack.c.l.b16 %v907
        %v1036 = vunpack.c.l.b16 %v908
        %v1037 = vunpack.c.l.b16 %v909
        %v1038 = vunpack.c.l.b16 %v910
        %v1039 = vunpack.c.l.b16 %v911
        %v1040 = vunpack.c.l.b16 %v912
        %v1041 = vunpack.c.l.b16 %v913
        %v1042 = vunpack.c.l.b16 %v914
        %v1043 = vunpack.c.l.b16 %v915
        %v1044 = vunpack.c.l.b16 %v916
        %v1045 = vunpack.c.l.b16 %v917
        %v1046 = vunpack.c.l.b16 %v918
        %v1047 = vunpack.c.l.b16 %v919
        %v1048 = vunpack.c.l.b16 %v920
        %v1049 = vunpack.c.l.b16 %v921
        %v1050 = vunpack.c.l.b16 %v922
        %v1051 = vunpack.c.l.b16 %v923
        %v1052 = vunpack.c.l.b16 %v924
        %v1053 = vpack.c.b16 %v990, %v989
        %v1054 = vpack.c.b16 %v992, %v991
        %v1055 = vpack.c.b16 %v994, %v993
        %v1056 = vpack.c.b16 %v996, %v995
        %v1057 = vpack.c.b16 %v998, %v997
        %v1058 = vpack.c.b16 %v1000, %v999
        %v1059 = vpack.c.b16 %v1002, %v1001
        %v1060 = vpack.c.b16 %v1004, %v1003
        %v1061 = vpack.c.b16 %v1006, %v1005
        %v1062 = vpack.c.b16 %v1008, %v1007
        %v1063 = vpack.c.b16 %v1010, %v1009
        %v1064 = vpack.c.b16 %v1012, %v1011
        %v1065 = vpack.c.b16 %v1014, %v1013
        %v1066 = vpack.c.b16 %v1016, %v1015
        %v1067 = vpack.c.b16 %v1018, %v1017
        %v1068 = vpack.c.b16 %v1020, %v1019
        %v1069 = vpack.c.b16 %v1022, %v1021
        %v1070 = vpack.c.b16 %v1024, %v1023
        %v1071 = vpack.c.b16 %v1026, %v1025
        %v1072 = vpack.c.b16 %v1028, %v1027
        %v1073 = vpack.c.b16 %v1030, %v1029
        %v1074 = vpack.c.b16 %v1032, %v1031
        %v1075 = vpack.c.b16 %v1034, %v1033
        %v1076 = vpack.c.b16 %v1036, %v1035
        %v1077 = vpack.c.b16 %v1038, %v1037
        %v1078 = vpack.c.b16 %v1040, %v1039
        %v1079 = vpack.c.b16 %v1042, %v1041
        %v1080 = vpack.c.b16 %v1044, %v1043
        %v1081 = vpack.c.b16 %v1046, %v1045
        %v1082 = vpack.c.b16 %v1048, %v1047
        %v1083 = vpack.c.b16 %v1050, %v1049
        %v1084 = vpack.c.b16 %v1052, %v1051
        %1117 = vmatprep.subr.bf16.mxu0 0
        %1118 = vmatpush1.bf16.msra.mxu0 %v378
        %1119 = vmatprep.subr.bf16.mxu0 0
        %1120 = vmatpush1.bf16.msra.mxu0 %v379
        %1121 = vmatprep.subr.bf16.mxu0 0
        %1122 = vmatpush1.bf16.msra.mxu0 %v380
        %1123 = vmatprep.subr.bf16.mxu0 0
        %1124 = vmatpush1.bf16.msra.mxu0 %v381
        %1125 = vmatprep.subr.bf16.mxu0 0
        %1126 = vmatpush1.bf16.msra.mxu0 %v382
        %1127 = vmatprep.subr.bf16.mxu0 0
        %1128 = vmatpush1.bf16.msra.mxu0 %v383
        %1129 = vmatprep.subr.bf16.mxu0 0
        %1130 = vmatpush1.bf16.msra.mxu0 %v384
        %1131 = vmatprep.subr.bf16.mxu0 0
        %1132 = vmatpush1.bf16.msra.mxu0 %v385
        %1133 = vmatprep.subr.bf16.mxu0 0
        %1134 = vmatpush1.bf16.msra.mxu0 0
        %1135 = vmatprep.subr.bf16.mxu0 0
        %1136 = vmatpush1.bf16.msra.mxu0 0
        %1137 = vmatprep.subr.bf16.mxu0 0
        %1138 = vmatpush1.bf16.msra.mxu0 0
        %1139 = vmatprep.subr.bf16.mxu0 0
        %1140 = vmatpush1.bf16.msra.mxu0 0
        %1141 = vmatprep.subr.bf16.mxu0 0
        %1142 = vmatpush1.bf16.msra.mxu0 0
        %1143 = vmatprep.subr.bf16.mxu0 0
        %1144 = vmatpush1.bf16.msra.mxu0 0
        %1145 = vmatprep.subr.bf16.mxu0 0
        %1146 = vmatpush1.bf16.msra.mxu0 0
        %1147 = vmatprep.subr.bf16.mxu0 0
        %1148 = vmatpush1.bf16.msra.mxu0 0
        %1149 = vmatprep.mubr.bf16.mxu0 0
        %1150 = vmatmul.mubr.bf16.gmra.mrb[0].mxu0 %v1053
        %v1151 = vpop.f32.mrb[0].mxu0
        %v1152 = vadd.f32 0.0, %v1151
        %v1153 = vpop.f32.mrb[0].mxu0
        %v1154 = vpop.f32.mrb[0].mxu0
        %v1155 = vadd.f32 0.0, %v1154
        %v1156 = vpop.f32.mrb[0].mxu0
        %1157 = vmatprep.mubr.bf16.mxu0 0
        %1158 = vmatmul.mubr.bf16.gmra.mrb[0].mxu0 %v1054
        %v1159 = vpop.f32.mrb[0].mxu0
        %v1160 = vadd.f32 0.0, %v1159
        %v1161 = vpop.f32.mrb[0].mxu0
        %v1162 = vpop.f32.mrb[0].mxu0
        %v1163 = vadd.f32 0.0, %v1162
        %v1164 = vpop.f32.mrb[0].mxu0
        %1165 = vmatprep.mubr.bf16.mxu0 0
        %1166 = vmatmul.mubr.bf16.gmra.mrb[0].mxu0 %v1055
        %v1167 = vpop.f32.mrb[0].mxu0
        %v1168 = vadd.f32 0.0, %v1167
        %v1169 = vpop.f32.mrb[0].mxu0
        %v1170 = vpop.f32.mrb[0].mxu0
        %v1171 = vadd.f32 0.0, %v1170
        %v1172 = vpop.f32.mrb[0].mxu0
        %1173 = vmatprep.mubr.bf16.mxu0 0
        %1174 = vmatmul.mubr.bf16.gmra.mrb[0].mxu0 %v1056
        %v1175 = vpop.f32.mrb[0].mxu0
        %v1176 = vadd.f32 0.0, %v1175
        %v1177 = vpop.f32.mrb[0].mxu0
        %v1178 = vpop.f32.mrb[0].mxu0
        %v1179 = vadd.f32 0.0, %v1178
        %v1180 = vpop.f32.mrb[0].mxu0
        %1181 = vmatprep.mubr.bf16.mxu0 0
        %1182 = vmatmul.mubr.bf16.gmra.mrb[0].mxu0 %v1057
        %v1183 = vpop.f32.mrb[0].mxu0
        %v1184 = vadd.f32 0.0, %v1183
        %v1185 = vpop.f32.mrb[0].mxu0
        %v1186 = vpop.f32.mrb[0].mxu0
        %v1187 = vadd.f32 0.0, %v1186
        %v1188 = vpop.f32.mrb[0].mxu0
        %1189 = vmatprep.mubr.bf16.mxu0 0
        %1190 = vmatmul.mubr.bf16.gmra.mrb[0].mxu0 %v1058
        %v1191 = vpop.f32.mrb[0].mxu0
        %v1192 = vadd.f32 0.0, %v1191
        %v1193 = vpop.f32.mrb[0].mxu0
        %v1194 = vpop.f32.mrb[0].mxu0
        %v1195 = vadd.f32 0.0, %v1194
        %v1196 = vpop.f32.mrb[0].mxu0
        %1197 = vmatprep.mubr.bf16.mxu0 0
        %1198 = vmatmul.mubr.bf16.gmra.mrb[0].mxu0 %v1059
        %v1199 = vpop.f32.mrb[0].mxu0
        %v1200 = vadd.f32 0.0, %v1199
        %v1201 = vpop.f32.mrb[0].mxu0
        %v1202 = vpop.f32.mrb[0].mxu0
        %v1203 = vadd.f32 0.0, %v1202
        %v1204 = vpop.f32.mrb[0].mxu0
        %1205 = vmatprep.mubr.bf16.mxu0 0
        %1206 = vmatmul.mubr.bf16.gmra.mrb[0].mxu0 %v1060
        %v1207 = vpop.f32.mrb[0].mxu0
        %v1208 = vadd.f32 0.0, %v1207
        %v1209 = vpop.f32.mrb[0].mxu0
        %v1210 = vpop.f32.mrb[0].mxu0
        %v1211 = vadd.f32 0.0, %v1210
        %v1212 = vpop.f32.mrb[0].mxu0
        %1213 = vmatprep.mubr.bf16.mxu0 0
        %1214 = vmatmul.mubr.bf16.gmra.mrb[0].mxu0 %v1061
        %v1215 = vpop.f32.mrb[0].mxu0
        %v1216 = vadd.f32 0.0, %v1215
        %v1217 = vpop.f32.mrb[0].mxu0
        %v1218 = vpop.f32.mrb[0].mxu0
        %v1219 = vadd.f32 0.0, %v1218
        %v1220 = vpop.f32.mrb[0].mxu0
        %1221 = vmatprep.mubr.bf16.mxu0 0
        %1222 = vmatmul.mubr.bf16.gmra.mrb[0].mxu0 %v1062
        %v1223 = vpop.f32.mrb[0].mxu0
        %v1224 = vadd.f32 0.0, %v1223
        %v1225 = vpop.f32.mrb[0].mxu0
        %v1226 = vpop.f32.mrb[0].mxu0
        %v1227 = vadd.f32 0.0, %v1226
        %v1228 = vpop.f32.mrb[0].mxu0
        %1229 = vmatprep.mubr.bf16.mxu0 0
        %1230 = vmatmul.mubr.bf16.gmra.mrb[0].mxu0 %v1063
        %v1231 = vpop.f32.mrb[0].mxu0
        %v1232 = vadd.f32 0.0, %v1231
        %v1233 = vpop.f32.mrb[0].mxu0
        %v1234 = vpop.f32.mrb[0].mxu0
        %v1235 = vadd.f32 0.0, %v1234
        %v1236 = vpop.f32.mrb[0].mxu0
        %1237 = vmatprep.mubr.bf16.mxu0 0
        %1238 = vmatmul.mubr.bf16.gmra.mrb[0].mxu0 %v1064
        %v1239 = vpop.f32.mrb[0].mxu0
        %v1240 = vadd.f32 0.0, %v1239
        %v1241 = vpop.f32.mrb[0].mxu0
        %v1242 = vpop.f32.mrb[0].mxu0
        %v1243 = vadd.f32 0.0, %v1242
        %v1244 = vpop.f32.mrb[0].mxu0
        %1245 = vmatprep.mubr.bf16.mxu0 0
        %1246 = vmatmul.mubr.bf16.gmra.mrb[0].mxu0 %v1065
        %v1247 = vpop.f32.mrb[0].mxu0
        %v1248 = vadd.f32 0.0, %v1247
        %v1249 = vpop.f32.mrb[0].mxu0
        %v1250 = vpop.f32.mrb[0].mxu0
        %v1251 = vadd.f32 0.0, %v1250
        %v1252 = vpop.f32.mrb[0].mxu0
        %1253 = vmatprep.mubr.bf16.mxu0 0
        %1254 = vmatmul.mubr.bf16.gmra.mrb[0].mxu0 %v1066
        %v1255 = vpop.f32.mrb[0].mxu0
        %v1256 = vadd.f32 0.0, %v1255
        %v1257 = vpop.f32.mrb[0].mxu0
        %v1258 = vpop.f32.mrb[0].mxu0
        %v1259 = vadd.f32 0.0, %v1258
        %v1260 = vpop.f32.mrb[0].mxu0
        %1261 = vmatprep.mubr.bf16.mxu0 0
        %1262 = vmatmul.mubr.bf16.gmra.mrb[0].mxu0 %v1067
        %v1263 = vpop.f32.mrb[0].mxu0
        %v1264 = vadd.f32 0.0, %v1263
        %v1265 = vpop.f32.mrb[0].mxu0
        %v1266 = vpop.f32.mrb[0].mxu0
        %v1267 = vadd.f32 0.0, %v1266
        %v1268 = vpop.f32.mrb[0].mxu0
        %1269 = vmatprep.mubr.bf16.mxu0 0
        %1270 = vmatmul.mubr.bf16.gmra.mrb[0].mxu0 %v1068
        %v1271 = vpop.f32.mrb[0].mxu0
        %v1272 = vadd.f32 0.0, %v1271
        %v1273 = vpop.f32.mrb[0].mxu0
        %v1274 = vpop.f32.mrb[0].mxu0
        %v1275 = vadd.f32 0.0, %v1274
        %v1276 = vpop.f32.mrb[0].mxu0
        %1277 = vmatprep.mubr.bf16.mxu0 0
        %1278 = vmatmul.mubr.bf16.gmra.mrb[0].mxu0 %v1069
        %v1279 = vpop.f32.mrb[0].mxu0
        %v1280 = vadd.f32 0.0, %v1279
        %v1281 = vpop.f32.mrb[0].mxu0
        %v1282 = vpop.f32.mrb[0].mxu0
        %v1283 = vadd.f32 0.0, %v1282
        %v1284 = vpop.f32.mrb[0].mxu0
        %1285 = vmatprep.mubr.bf16.mxu0 0
        %1286 = vmatmul.mubr.bf16.gmra.mrb[0].mxu0 %v1070
        %v1287 = vpop.f32.mrb[0].mxu0
        %v1288 = vadd.f32 0.0, %v1287
        %v1289 = vpop.f32.mrb[0].mxu0
        %v1290 = vpop.f32.mrb[0].mxu0
        %v1291 = vadd.f32 0.0, %v1290
        %v1292 = vpop.f32.mrb[0].mxu0
        %1293 = vmatprep.mubr.bf16.mxu0 0
        %1294 = vmatmul.mubr.bf16.gmra.mrb[0].mxu0 %v1071
        %v1295 = vpop.f32.mrb[0].mxu0
        %v1296 = vadd.f32 0.0, %v1295
        %v1297 = vpop.f32.mrb[0].mxu0
        %v1298 = vpop.f32.mrb[0].mxu0
        %v1299 = vadd.f32 0.0, %v1298
        %v1300 = vpop.f32.mrb[0].mxu0
        %1301 = vmatprep.mubr.bf16.mxu0 0
        %1302 = vmatmul.mubr.bf16.gmra.mrb[0].mxu0 %v1072
        %v1303 = vpop.f32.mrb[0].mxu0
        %v1304 = vadd.f32 0.0, %v1303
        %v1305 = vpop.f32.mrb[0].mxu0
        %v1306 = vpop.f32.mrb[0].mxu0
        %v1307 = vadd.f32 0.0, %v1306
        %v1308 = vpop.f32.mrb[0].mxu0
        %1309 = vmatprep.mubr.bf16.mxu0 0
        %1310 = vmatmul.mubr.bf16.gmra.mrb[0].mxu0 %v1073
        %v1311 = vpop.f32.mrb[0].mxu0
        %v1312 = vadd.f32 0.0, %v1311
        %v1313 = vpop.f32.mrb[0].mxu0
        %v1314 = vpop.f32.mrb[0].mxu0
        %v1315 = vadd.f32 0.0, %v1314
        %v1316 = vpop.f32.mrb[0].mxu0
        %1317 = vmatprep.mubr.bf16.mxu0 0
        %1318 = vmatmul.mubr.bf16.gmra.mrb[0].mxu0 %v1074
        %v1319 = vpop.f32.mrb[0].mxu0
        %v1320 = vadd.f32 0.0, %v1319
        %v1321 = vpop.f32.mrb[0].mxu0
        %v1322 = vpop.f32.mrb[0].mxu0
        %v1323 = vadd.f32 0.0, %v1322
        %v1324 = vpop.f32.mrb[0].mxu0
        %1325 = vmatprep.mubr.bf16.mxu0 0
        %1326 = vmatmul.mubr.bf16.gmra.mrb[0].mxu0 %v1075
        %v1327 = vpop.f32.mrb[0].mxu0
        %v1328 = vadd.f32 0.0, %v1327
        %v1329 = vpop.f32.mrb[0].mxu0
        %v1330 = vpop.f32.mrb[0].mxu0
        %v1331 = vadd.f32 0.0, %v1330
        %v1332 = vpop.f32.mrb[0].mxu0
        %1333 = vmatprep.mubr.bf16.mxu0 0
        %1334 = vmatmul.mubr.bf16.gmra.mrb[0].mxu0 %v1076
        %v1335 = vpop.f32.mrb[0].mxu0
        %v1336 = vadd.f32 0.0, %v1335
        %v1337 = vpop.f32.mrb[0].mxu0
        %v1338 = vpop.f32.mrb[0].mxu0
        %v1339 = vadd.f32 0.0, %v1338
        %v1340 = vpop.f32.mrb[0].mxu0
        %1341 = vmatprep.mubr.bf16.mxu0 0
        %1342 = vmatmul.mubr.bf16.gmra.mrb[0].mxu0 %v1077
        %v1343 = vpop.f32.mrb[0].mxu0
        %v1344 = vadd.f32 0.0, %v1343
        %v1345 = vpop.f32.mrb[0].mxu0
        %v1346 = vpop.f32.mrb[0].mxu0
        %v1347 = vadd.f32 0.0, %v1346
        %v1348 = vpop.f32.mrb[0].mxu0
        %1349 = vmatprep.mubr.bf16.mxu0 0
        %1350 = vmatmul.mubr.bf16.gmra.mrb[0].mxu0 %v1078
        %v1351 = vpop.f32.mrb[0].mxu0
        %v1352 = vadd.f32 0.0, %v1351
        %v1353 = vpop.f32.mrb[0].mxu0
        %v1354 = vpop.f32.mrb[0].mxu0
        %v1355 = vadd.f32 0.0, %v1354
        %v1356 = vpop.f32.mrb[0].mxu0
        %1357 = vmatprep.mubr.bf16.mxu0 0
        %1358 = vmatmul.mubr.bf16.gmra.mrb[0].mxu0 %v1079
        %v1359 = vpop.f32.mrb[0].mxu0
        %v1360 = vadd.f32 0.0, %v1359
        %v1361 = vpop.f32.mrb[0].mxu0
        %v1362 = vpop.f32.mrb[0].mxu0
        %v1363 = vadd.f32 0.0, %v1362
        %v1364 = vpop.f32.mrb[0].mxu0
        %1365 = vmatprep.mubr.bf16.mxu0 0
        %1366 = vmatmul.mubr.bf16.gmra.mrb[0].mxu0 %v1080
        %v1367 = vpop.f32.mrb[0].mxu0
        %v1368 = vadd.f32 0.0, %v1367
        %v1369 = vpop.f32.mrb[0].mxu0
        %v1370 = vpop.f32.mrb[0].mxu0
        %v1371 = vadd.f32 0.0, %v1370
        %v1372 = vpop.f32.mrb[0].mxu0
        %1373 = vmatprep.mubr.bf16.mxu0 0
        %1374 = vmatmul.mubr.bf16.gmra.mrb[0].mxu0 %v1081
        %v1375 = vpop.f32.mrb[0].mxu0
        %v1376 = vadd.f32 0.0, %v1375
        %v1377 = vpop.f32.mrb[0].mxu0
        %v1378 = vpop.f32.mrb[0].mxu0
        %v1379 = vadd.f32 0.0, %v1378
        %v1380 = vpop.f32.mrb[0].mxu0
        %1381 = vmatprep.mubr.bf16.mxu0 0
        %1382 = vmatmul.mubr.bf16.gmra.mrb[0].mxu0 %v1082
        %v1383 = vpop.f32.mrb[0].mxu0
        %v1384 = vadd.f32 0.0, %v1383
        %v1385 = vpop.f32.mrb[0].mxu0
        %v1386 = vpop.f32.mrb[0].mxu0
        %v1387 = vadd.f32 0.0, %v1386
        %v1388 = vpop.f32.mrb[0].mxu0
        %1389 = vmatprep.mubr.bf16.mxu0 0
        %1390 = vmatmul.mubr.bf16.gmra.mrb[0].mxu0 %v1083
        %v1391 = vpop.f32.mrb[0].mxu0
        %v1392 = vadd.f32 0.0, %v1391
        %v1393 = vpop.f32.mrb[0].mxu0
        %v1394 = vpop.f32.mrb[0].mxu0
        %v1395 = vadd.f32 0.0, %v1394
        %v1396 = vpop.f32.mrb[0].mxu0
        %1397 = vmatprep.mubr.bf16.mxu0 0
        %1398 = vmatmul.mubr.bf16.gmra.mrb[0].mxu0 %v1084
        %v1399 = vpop.f32.mrb[0].mxu0
        %v1400 = vadd.f32 0.0, %v1399
        %v1401 = vpop.f32.mrb[0].mxu0
        %v1402 = vpop.f32.mrb[0].mxu0
        %v1403 = vadd.f32 0.0, %v1402
        %v1404 = vpop.f32.mrb[0].mxu0
        %1405 = vdwg.mxu0
        %v1406 = vmul.f32 %v353, %v1152
        %v1407 = vmul.f32 %v354, %v1155
        %v1408 = vmul.f32 %v355, %v1160
        %v1409 = vmul.f32 %v356, %v1163
        %v1410 = vmul.f32 %v357, %v1168
        %v1411 = vmul.f32 %v358, %v1171
        %v1412 = vmul.f32 %v359, %v1176
        %v1413 = vmul.f32 %v360, %v1179
        %v1414 = vmul.f32 %v361, %v1184
        %v1415 = vmul.f32 %v362, %v1187
        %v1416 = vmul.f32 %v363, %v1192
        %v1417 = vmul.f32 %v364, %v1195
        %v1418 = vmul.f32 %v365, %v1200
        %v1419 = vmul.f32 %v366, %v1203
        %v1420 = vmul.f32 %v367, %v1208
        %v1421 = vmul.f32 %v368, %v1211
        %v1422 = vadd.f32 %v1406, %v1410
        %v1423 = vadd.f32 %v1407, %v1411
        %v1424 = vadd.f32 %v1408, %v1412
        %v1425 = vadd.f32 %v1409, %v1413
        %v1426 = vadd.f32 %v1422, %v1414
        %v1427 = vadd.f32 %v1423, %v1415
        %v1428 = vadd.f32 %v1424, %v1416
        %v1429 = vadd.f32 %v1425, %v1417
        %v1430 = vadd.f32 %v1426, %v1418
        %v1431 = vadd.f32 %v1427, %v1419
        %v1432 = vadd.f32 %v1428, %v1420
        %v1433 = vadd.f32 %v1429, %v1421
        %v1434 = vmul.f32 %v353, %v1216
        %v1435 = vmul.f32 %v354, %v1219
        %v1436 = vmul.f32 %v355, %v1224
        %v1437 = vmul.f32 %v356, %v1227
        %v1438 = vmul.f32 %v357, %v1232
        %v1439 = vmul.f32 %v358, %v1235
        %v1440 = vmul.f32 %v359, %v1240
        %v1441 = vmul.f32 %v360, %v1243
        %v1442 = vmul.f32 %v361, %v1248
        %v1443 = vmul.f32 %v362, %v1251
        %v1444 = vmul.f32 %v363, %v1256
        %v1445 = vmul.f32 %v364, %v1259
        %v1446 = vmul.f32 %v365, %v1264
        %v1447 = vmul.f32 %v366, %v1267
        %v1448 = vmul.f32 %v367, %v1272
        %v1449 = vmul.f32 %v368, %v1275
        %v1450 = vadd.f32 %v1434, %v1438
        %v1451 = vadd.f32 %v1435, %v1439
        %v1452 = vadd.f32 %v1436, %v1440
        %v1453 = vadd.f32 %v1437, %v1441
        %v1454 = vadd.f32 %v1450, %v1442
        %v1455 = vadd.f32 %v1451, %v1443
        %v1456 = vadd.f32 %v1452, %v1444
        %v1457 = vadd.f32 %v1453, %v1445
        %v1458 = vadd.f32 %v1454, %v1446
        %v1459 = vadd.f32 %v1455, %v1447
        %v1460 = vadd.f32 %v1456, %v1448
        %v1461 = vadd.f32 %v1457, %v1449
        %v1462 = vmul.f32 %v353, %v1280
        %v1463 = vmul.f32 %v354, %v1283
        %v1464 = vmul.f32 %v355, %v1288
        %v1465 = vmul.f32 %v356, %v1291
        %v1466 = vmul.f32 %v357, %v1296
        %v1467 = vmul.f32 %v358, %v1299
        %v1468 = vmul.f32 %v359, %v1304
        %v1469 = vmul.f32 %v360, %v1307
        %v1470 = vmul.f32 %v361, %v1312
        %v1471 = vmul.f32 %v362, %v1315
        %v1472 = vmul.f32 %v363, %v1320
        %v1473 = vmul.f32 %v364, %v1323
        %v1474 = vmul.f32 %v365, %v1328
        %v1475 = vmul.f32 %v366, %v1331
        %v1476 = vmul.f32 %v367, %v1336
        %v1477 = vmul.f32 %v368, %v1339
        %v1478 = vadd.f32 %v1462, %v1466
        %v1479 = vadd.f32 %v1463, %v1467
        %v1480 = vadd.f32 %v1464, %v1468
        %v1481 = vadd.f32 %v1465, %v1469
        %v1482 = vadd.f32 %v1478, %v1470
        %v1483 = vadd.f32 %v1479, %v1471
        %v1484 = vadd.f32 %v1480, %v1472
        %v1485 = vadd.f32 %v1481, %v1473
        %v1486 = vadd.f32 %v1482, %v1474
        %v1487 = vadd.f32 %v1483, %v1475
        %v1488 = vadd.f32 %v1484, %v1476
        %v1489 = vadd.f32 %v1485, %v1477
        %v1490 = vmul.f32 %v353, %v1344
        %v1491 = vmul.f32 %v354, %v1347
        %v1492 = vmul.f32 %v355, %v1352
        %v1493 = vmul.f32 %v356, %v1355
        %v1494 = vmul.f32 %v357, %v1360
        %v1495 = vmul.f32 %v358, %v1363
        %v1496 = vmul.f32 %v359, %v1368
        %v1497 = vmul.f32 %v360, %v1371
        %v1498 = vmul.f32 %v361, %v1376
        %v1499 = vmul.f32 %v362, %v1379
        %v1500 = vmul.f32 %v363, %v1384
        %v1501 = vmul.f32 %v364, %v1387
        %v1502 = vmul.f32 %v365, %v1392
        %v1503 = vmul.f32 %v366, %v1395
        %v1504 = vmul.f32 %v367, %v1400
        %v1505 = vmul.f32 %v368, %v1403
        %v1506 = vadd.f32 %v1490, %v1494
        %v1507 = vadd.f32 %v1491, %v1495
        %v1508 = vadd.f32 %v1492, %v1496
        %v1509 = vadd.f32 %v1493, %v1497
        %v1510 = vadd.f32 %v1506, %v1498
        %v1511 = vadd.f32 %v1507, %v1499
        %v1512 = vadd.f32 %v1508, %v1500
        %v1513 = vadd.f32 %v1509, %v1501
        %v1514 = vadd.f32 %v1510, %v1502
        %v1515 = vadd.f32 %v1511, %v1503
        %v1516 = vadd.f32 %v1512, %v1504
        %v1517 = vadd.f32 %v1513, %v1505
        %s1518 = scalar_lea.vmem [#allocation8], 256
        %v1519 = vld [vmem:[%s1518] sm:$0xf]
        %v1520 = vld [vmem:[%s1518 + $0x4] sm:$0xf]
        %v1521 = vld [vmem:[%s1518 + $0x8] sm:$0xf]
        %v1522 = vld [vmem:[%s1518 + $0xc] sm:$0xf]
        %v1523 = vld [vmem:[%s1518 + $0x10] sm:$0xf]
        %v1524 = vld [vmem:[%s1518 + $0x14] sm:$0xf]
        %v1525 = vld [vmem:[%s1518 + $0x18] sm:$0xf]
        %v1526 = vld [vmem:[%s1518 + $0x1c] sm:$0xf]
        %v1527 = vld [vmem:[%s1518 + $0x20] sm:$0xf]
        %v1528 = vld [vmem:[%s1518 + $0x24] sm:$0xf]
        %v1529 = vld [vmem:[%s1518 + $0x28] sm:$0xf]
        %v1530 = vld [vmem:[%s1518 + $0x2c] sm:$0xf]
        %v1531 = vld [vmem:[%s1518 + $0x30] sm:$0xf]
        %v1532 = vld [vmem:[%s1518 + $0x34] sm:$0xf]
        %v1533 = vld [vmem:[%s1518 + $0x38] sm:$0xf]
        %v1534 = vld [vmem:[%s1518 + $0x3c] sm:$0xf]
        %v1535 = vld [vmem:[%s1518 + $0x40] sm:$0xf]
        %v1536 = vld [vmem:[%s1518 + $0x44] sm:$0xf]
        %v1537 = vld [vmem:[%s1518 + $0x48] sm:$0xf]
        %v1538 = vld [vmem:[%s1518 + $0x4c] sm:$0xf]
        %v1539 = vld [vmem:[%s1518 + $0x50] sm:$0xf]
        %v1540 = vld [vmem:[%s1518 + $0x54] sm:$0xf]
        %v1541 = vld [vmem:[%s1518 + $0x58] sm:$0xf]
        %v1542 = vld [vmem:[%s1518 + $0x5c] sm:$0xf]
        %v1543 = vld [vmem:[%s1518 + $0x60] sm:$0xf]
        %v1544 = vld [vmem:[%s1518 + $0x64] sm:$0xf]
        %v1545 = vld [vmem:[%s1518 + $0x68] sm:$0xf]
        %v1546 = vld [vmem:[%s1518 + $0x6c] sm:$0xf]
        %v1547 = vld [vmem:[%s1518 + $0x70] sm:$0xf]
        %v1548 = vld [vmem:[%s1518 + $0x74] sm:$0xf]
        %v1549 = vld [vmem:[%s1518 + $0x78] sm:$0xf]
        %v1550 = vld [vmem:[%s1518 + $0x7c] sm:$0xf]
        %v1551 = vld [vmem:[%s1518 + $0x80] sm:$0xf]
        %v1552 = vld [vmem:[%s1518 + $0x84] sm:$0xf]
        %v1553 = vld [vmem:[%s1518 + $0x88] sm:$0xf]
        %v1554 = vld [vmem:[%s1518 + $0x8c] sm:$0xf]
        %v1555 = vld [vmem:[%s1518 + $0x90] sm:$0xf]
        %v1556 = vld [vmem:[%s1518 + $0x94] sm:$0xf]
        %v1557 = vld [vmem:[%s1518 + $0x98] sm:$0xf]
        %v1558 = vld [vmem:[%s1518 + $0x9c] sm:$0xf]
        %v1559 = vld [vmem:[%s1518 + $0xa0] sm:$0xf]
        %v1560 = vld [vmem:[%s1518 + $0xa4] sm:$0xf]
        %v1561 = vld [vmem:[%s1518 + $0xa8] sm:$0xf]
        %v1562 = vld [vmem:[%s1518 + $0xac] sm:$0xf]
        %v1563 = vld [vmem:[%s1518 + $0xb0] sm:$0xf]
        %v1564 = vld [vmem:[%s1518 + $0xb4] sm:$0xf]
        %v1565 = vld [vmem:[%s1518 + $0xb8] sm:$0xf]
        %v1566 = vld [vmem:[%s1518 + $0xbc] sm:$0xf]
        %v1567 = vld [vmem:[%s1518 + $0xc0] sm:$0xf]
        %v1568 = vld [vmem:[%s1518 + $0xc4] sm:$0xf]
        %v1569 = vld [vmem:[%s1518 + $0xc8] sm:$0xf]
        %v1570 = vld [vmem:[%s1518 + $0xcc] sm:$0xf]
        %v1571 = vld [vmem:[%s1518 + $0xd0] sm:$0xf]
        %v1572 = vld [vmem:[%s1518 + $0xd4] sm:$0xf]
        %v1573 = vld [vmem:[%s1518 + $0xd8] sm:$0xf]
        %v1574 = vld [vmem:[%s1518 + $0xdc] sm:$0xf]
        %v1575 = vld [vmem:[%s1518 + $0xe0] sm:$0xf]
        %v1576 = vld [vmem:[%s1518 + $0xe4] sm:$0xf]
        %v1577 = vld [vmem:[%s1518 + $0xe8] sm:$0xf]
        %v1578 = vld [vmem:[%s1518 + $0xec] sm:$0xf]
        %v1579 = vld [vmem:[%s1518 + $0xf0] sm:$0xf]
        %v1580 = vld [vmem:[%s1518 + $0xf4] sm:$0xf]
        %v1581 = vld [vmem:[%s1518 + $0xf8] sm:$0xf]
        %v1582 = vld [vmem:[%s1518 + $0xfc] sm:$0xf]
        %v1583 = vpack.c.bf16 %v1431, %v1430
        %v1584 = vpack.c.bf16 %v1433, %v1432
        %v1585 = vpack.c.bf16 %v1459, %v1458
        %v1586 = vpack.c.bf16 %v1461, %v1460
        %v1587 = vpack.c.bf16 %v1487, %v1486
        %v1588 = vpack.c.bf16 %v1489, %v1488
        %v1589 = vpack.c.bf16 %v1515, %v1514
        %v1590 = vpack.c.bf16 %v1517, %v1516
        %v1655 = vunpack.c.l.b16 %v1519
        %v1656 = vunpack.c.l.b16 %v1520
        %v1657 = vunpack.c.l.b16 %v1521
        %v1658 = vunpack.c.l.b16 %v1522
        %v1659 = vunpack.c.l.b16 %v1523
        %v1660 = vunpack.c.l.b16 %v1524
        %v1661 = vunpack.c.l.b16 %v1525
        %v1662 = vunpack.c.l.b16 %v1526
        %v1663 = vunpack.c.l.b16 %v1527
        %v1664 = vunpack.c.l.b16 %v1528
        %v1665 = vunpack.c.l.b16 %v1529
        %v1666 = vunpack.c.l.b16 %v1530
        %v1667 = vunpack.c.l.b16 %v1531
        %v1668 = vunpack.c.l.b16 %v1532
        %v1669 = vunpack.c.l.b16 %v1533
        %v1670 = vunpack.c.l.b16 %v1534
        %v1671 = vunpack.c.l.b16 %v1535
        %v1672 = vunpack.c.l.b16 %v1536
        %v1673 = vunpack.c.l.b16 %v1537
        %v1674 = vunpack.c.l.b16 %v1538
        %v1675 = vunpack.c.l.b16 %v1539
        %v1676 = vunpack.c.l.b16 %v1540
        %v1677 = vunpack.c.l.b16 %v1541
        %v1678 = vunpack.c.l.b16 %v1542
        %v1679 = vunpack.c.l.b16 %v1543
        %v1680 = vunpack.c.l.b16 %v1544
        %v1681 = vunpack.c.l.b16 %v1545
        %v1682 = vunpack.c.l.b16 %v1546
        %v1683 = vunpack.c.l.b16 %v1547
        %v1684 = vunpack.c.l.b16 %v1548
        %v1685 = vunpack.c.l.b16 %v1549
        %v1686 = vunpack.c.l.b16 %v1550
        %v1687 = vunpack.c.l.b16 %v1551
        %v1688 = vunpack.c.l.b16 %v1552
        %v1689 = vunpack.c.l.b16 %v1553
        %v1690 = vunpack.c.l.b16 %v1554
        %v1691 = vunpack.c.l.b16 %v1555
        %v1692 = vunpack.c.l.b16 %v1556
        %v1693 = vunpack.c.l.b16 %v1557
        %v1694 = vunpack.c.l.b16 %v1558
        %v1695 = vunpack.c.l.b16 %v1559
        %v1696 = vunpack.c.l.b16 %v1560
        %v1697 = vunpack.c.l.b16 %v1561
        %v1698 = vunpack.c.l.b16 %v1562
        %v1699 = vunpack.c.l.b16 %v1563
        %v1700 = vunpack.c.l.b16 %v1564
        %v1701 = vunpack.c.l.b16 %v1565
        %v1702 = vunpack.c.l.b16 %v1566
        %v1703 = vunpack.c.l.b16 %v1567
        %v1704 = vunpack.c.l.b16 %v1568
        %v1705 = vunpack.c.l.b16 %v1569
        %v1706 = vunpack.c.l.b16 %v1570
        %v1707 = vunpack.c.l.b16 %v1571
        %v1708 = vunpack.c.l.b16 %v1572
        %v1709 = vunpack.c.l.b16 %v1573
        %v1710 = vunpack.c.l.b16 %v1574
        %v1711 = vunpack.c.l.b16 %v1575
        %v1712 = vunpack.c.l.b16 %v1576
        %v1713 = vunpack.c.l.b16 %v1577
        %v1714 = vunpack.c.l.b16 %v1578
        %v1715 = vunpack.c.l.b16 %v1579
        %v1716 = vunpack.c.l.b16 %v1580
        %v1717 = vunpack.c.l.b16 %v1581
        %v1718 = vunpack.c.l.b16 %v1582
        %v1719 = vpack.c.b16 %v1656, %v1655
        %v1720 = vpack.c.b16 %v1658, %v1657
        %v1721 = vpack.c.b16 %v1660, %v1659
        %v1722 = vpack.c.b16 %v1662, %v1661
        %v1723 = vpack.c.b16 %v1664, %v1663
        %v1724 = vpack.c.b16 %v1666, %v1665
        %v1725 = vpack.c.b16 %v1668, %v1667
        %v1726 = vpack.c.b16 %v1670, %v1669
        %v1727 = vpack.c.b16 %v1672, %v1671
        %v1728 = vpack.c.b16 %v1674, %v1673
        %v1729 = vpack.c.b16 %v1676, %v1675
        %v1730 = vpack.c.b16 %v1678, %v1677
        %v1731 = vpack.c.b16 %v1680, %v1679
        %v1732 = vpack.c.b16 %v1682, %v1681
        %v1733 = vpack.c.b16 %v1684, %v1683
        %v1734 = vpack.c.b16 %v1686, %v1685
        %v1735 = vpack.c.b16 %v1688, %v1687
        %v1736 = vpack.c.b16 %v1690, %v1689
        %v1737 = vpack.c.b16 %v1692, %v1691
        %v1738 = vpack.c.b16 %v1694, %v1693
        %v1739 = vpack.c.b16 %v1696, %v1695
        %v1740 = vpack.c.b16 %v1698, %v1697
        %v1741 = vpack.c.b16 %v1700, %v1699
        %v1742 = vpack.c.b16 %v1702, %v1701
        %v1743 = vpack.c.b16 %v1704, %v1703
        %v1744 = vpack.c.b16 %v1706, %v1705
        %v1745 = vpack.c.b16 %v1708, %v1707
        %v1746 = vpack.c.b16 %v1710, %v1709
        %v1747 = vpack.c.b16 %v1712, %v1711
        %v1748 = vpack.c.b16 %v1714, %v1713
        %v1749 = vpack.c.b16 %v1716, %v1715
        %v1750 = vpack.c.b16 %v1718, %v1717
        %1783 = vmatprep.subr.bf16.mxu0 0
        %1784 = vmatpush1.bf16.msra.mxu0 %v1583
        %1785 = vmatprep.subr.bf16.mxu0 0
        %1786 = vmatpush1.bf16.msra.mxu0 %v1584
        %1787 = vmatprep.subr.bf16.mxu0 0
        %1788 = vmatpush1.bf16.msra.mxu0 %v1585
        %1789 = vmatprep.subr.bf16.mxu0 0
        %1790 = vmatpush1.bf16.msra.mxu0 %v1586
        %1791 = vmatprep.subr.bf16.mxu0 0
        %1792 = vmatpush1.bf16.msra.mxu0 %v1587
        %1793 = vmatprep.subr.bf16.mxu0 0
        %1794 = vmatpush1.bf16.msra.mxu0 %v1588
        %1795 = vmatprep.subr.bf16.mxu0 0
        %1796 = vmatpush1.bf16.msra.mxu0 %v1589
        %1797 = vmatprep.subr.bf16.mxu0 0
        %1798 = vmatpush1.bf16.msra.mxu0 %v1590
        %1799 = vmatprep.subr.bf16.mxu0 0
        %1800 = vmatpush1.bf16.msra.mxu0 0
        %1801 = vmatprep.subr.bf16.mxu0 0
        %1802 = vmatpush1.bf16.msra.mxu0 0
        %1803 = vmatprep.subr.bf16.mxu0 0
        %1804 = vmatpush1.bf16.msra.mxu0 0
        %1805 = vmatprep.subr.bf16.mxu0 0
        %1806 = vmatpush1.bf16.msra.mxu0 0
        %1807 = vmatprep.subr.bf16.mxu0 0
        %1808 = vmatpush1.bf16.msra.mxu0 0
        %1809 = vmatprep.subr.bf16.mxu0 0
        %1810 = vmatpush1.bf16.msra.mxu0 0
        %1811 = vmatprep.subr.bf16.mxu0 0
        %1812 = vmatpush1.bf16.msra.mxu0 0
        %1813 = vmatprep.subr.bf16.mxu0 0
        %1814 = vmatpush1.bf16.msra.mxu0 0
        %1815 = vmatprep.mubr.bf16.mxu0 0
        %1816 = vmatmul.mubr.bf16.gmra.mrb[0].mxu0 %v1719
        %v1817 = vpop.f32.mrb[0].mxu0
        %v1818 = vadd.f32 0.0, %v1817
        %v1819 = vpop.f32.mrb[0].mxu0
        %v1820 = vpop.f32.mrb[0].mxu0
        %v1821 = vadd.f32 0.0, %v1820
        %v1822 = vpop.f32.mrb[0].mxu0
        %1823 = vmatprep.mubr.bf16.mxu0 0
        %1824 = vmatmul.mubr.bf16.gmra.mrb[0].mxu0 %v1720
        %v1825 = vpop.f32.mrb[0].mxu0
        %v1826 = vadd.f32 0.0, %v1825
        %v1827 = vpop.f32.mrb[0].mxu0
        %v1828 = vpop.f32.mrb[0].mxu0
        %v1829 = vadd.f32 0.0, %v1828
        %v1830 = vpop.f32.mrb[0].mxu0
        %1831 = vmatprep.mubr.bf16.mxu0 0
        %1832 = vmatmul.mubr.bf16.gmra.mrb[0].mxu0 %v1721
        %v1833 = vpop.f32.mrb[0].mxu0
        %v1834 = vadd.f32 0.0, %v1833
        %v1835 = vpop.f32.mrb[0].mxu0
        %v1836 = vpop.f32.mrb[0].mxu0
        %v1837 = vadd.f32 0.0, %v1836
        %v1838 = vpop.f32.mrb[0].mxu0
        %1839 = vmatprep.mubr.bf16.mxu0 0
        %1840 = vmatmul.mubr.bf16.gmra.mrb[0].mxu0 %v1722
        %v1841 = vpop.f32.mrb[0].mxu0
        %v1842 = vadd.f32 0.0, %v1841
        %v1843 = vpop.f32.mrb[0].mxu0
        %v1844 = vpop.f32.mrb[0].mxu0
        %v1845 = vadd.f32 0.0, %v1844
        %v1846 = vpop.f32.mrb[0].mxu0
        %1847 = vmatprep.mubr.bf16.mxu0 0
        %1848 = vmatmul.mubr.bf16.gmra.mrb[0].mxu0 %v1723
        %v1849 = vpop.f32.mrb[0].mxu0
        %v1850 = vadd.f32 0.0, %v1849
        %v1851 = vpop.f32.mrb[0].mxu0
        %v1852 = vpop.f32.mrb[0].mxu0
        %v1853 = vadd.f32 0.0, %v1852
        %v1854 = vpop.f32.mrb[0].mxu0
        %1855 = vmatprep.mubr.bf16.mxu0 0
        %1856 = vmatmul.mubr.bf16.gmra.mrb[0].mxu0 %v1724
        %v1857 = vpop.f32.mrb[0].mxu0
        %v1858 = vadd.f32 0.0, %v1857
        %v1859 = vpop.f32.mrb[0].mxu0
        %v1860 = vpop.f32.mrb[0].mxu0
        %v1861 = vadd.f32 0.0, %v1860
        %v1862 = vpop.f32.mrb[0].mxu0
        %1863 = vmatprep.mubr.bf16.mxu0 0
        %1864 = vmatmul.mubr.bf16.gmra.mrb[0].mxu0 %v1725
        %v1865 = vpop.f32.mrb[0].mxu0
        %v1866 = vadd.f32 0.0, %v1865
        %v1867 = vpop.f32.mrb[0].mxu0
        %v1868 = vpop.f32.mrb[0].mxu0
        %v1869 = vadd.f32 0.0, %v1868
        %v1870 = vpop.f32.mrb[0].mxu0
        %1871 = vmatprep.mubr.bf16.mxu0 0
        %1872 = vmatmul.mubr.bf16.gmra.mrb[0].mxu0 %v1726
        %v1873 = vpop.f32.mrb[0].mxu0
        %v1874 = vadd.f32 0.0, %v1873
        %v1875 = vpop.f32.mrb[0].mxu0
        %v1876 = vpop.f32.mrb[0].mxu0
        %v1877 = vadd.f32 0.0, %v1876
        %v1878 = vpop.f32.mrb[0].mxu0
        %1879 = vmatprep.mubr.bf16.mxu0 0
        %1880 = vmatmul.mubr.bf16.gmra.mrb[0].mxu0 %v1727
        %v1881 = vpop.f32.mrb[0].mxu0
        %v1882 = vadd.f32 0.0, %v1881
        %v1883 = vpop.f32.mrb[0].mxu0
        %v1884 = vpop.f32.mrb[0].mxu0
        %v1885 = vadd.f32 0.0, %v1884
        %v1886 = vpop.f32.mrb[0].mxu0
        %1887 = vmatprep.mubr.bf16.mxu0 0
        %1888 = vmatmul.mubr.bf16.gmra.mrb[0].mxu0 %v1728
        %v1889 = vpop.f32.mrb[0].mxu0
        %v1890 = vadd.f32 0.0, %v1889
        %v1891 = vpop.f32.mrb[0].mxu0
        %v1892 = vpop.f32.mrb[0].mxu0
        %v1893 = vadd.f32 0.0, %v1892
        %v1894 = vpop.f32.mrb[0].mxu0
        %1895 = vmatprep.mubr.bf16.mxu0 0
        %1896 = vmatmul.mubr.bf16.gmra.mrb[0].mxu0 %v1729
        %v1897 = vpop.f32.mrb[0].mxu0
        %v1898 = vadd.f32 0.0, %v1897
        %v1899 = vpop.f32.mrb[0].mxu0
        %v1900 = vpop.f32.mrb[0].mxu0
        %v1901 = vadd.f32 0.0, %v1900
        %v1902 = vpop.f32.mrb[0].mxu0
        %1903 = vmatprep.mubr.bf16.mxu0 0
        %1904 = vmatmul.mubr.bf16.gmra.mrb[0].mxu0 %v1730
        %v1905 = vpop.f32.mrb[0].mxu0
        %v1906 = vadd.f32 0.0, %v1905
        %v1907 = vpop.f32.mrb[0].mxu0
        %v1908 = vpop.f32.mrb[0].mxu0
        %v1909 = vadd.f32 0.0, %v1908
        %v1910 = vpop.f32.mrb[0].mxu0
        %1911 = vmatprep.mubr.bf16.mxu0 0
        %1912 = vmatmul.mubr.bf16.gmra.mrb[0].mxu0 %v1731
        %v1913 = vpop.f32.mrb[0].mxu0
        %v1914 = vadd.f32 0.0, %v1913
        %v1915 = vpop.f32.mrb[0].mxu0
        %v1916 = vpop.f32.mrb[0].mxu0
        %v1917 = vadd.f32 0.0, %v1916
        %v1918 = vpop.f32.mrb[0].mxu0
        %1919 = vmatprep.mubr.bf16.mxu0 0
        %1920 = vmatmul.mubr.bf16.gmra.mrb[0].mxu0 %v1732
        %v1921 = vpop.f32.mrb[0].mxu0
        %v1922 = vadd.f32 0.0, %v1921
        %v1923 = vpop.f32.mrb[0].mxu0
        %v1924 = vpop.f32.mrb[0].mxu0
        %v1925 = vadd.f32 0.0, %v1924
        %v1926 = vpop.f32.mrb[0].mxu0
        %1927 = vmatprep.mubr.bf16.mxu0 0
        %1928 = vmatmul.mubr.bf16.gmra.mrb[0].mxu0 %v1733
        %v1929 = vpop.f32.mrb[0].mxu0
        %v1930 = vadd.f32 0.0, %v1929
        %v1931 = vpop.f32.mrb[0].mxu0
        %v1932 = vpop.f32.mrb[0].mxu0
        %v1933 = vadd.f32 0.0, %v1932
        %v1934 = vpop.f32.mrb[0].mxu0
        %1935 = vmatprep.mubr.bf16.mxu0 0
        %1936 = vmatmul.mubr.bf16.gmra.mrb[0].mxu0 %v1734
        %v1937 = vpop.f32.mrb[0].mxu0
        %v1938 = vadd.f32 0.0, %v1937
        %v1939 = vpop.f32.mrb[0].mxu0
        %v1940 = vpop.f32.mrb[0].mxu0
        %v1941 = vadd.f32 0.0, %v1940
        %v1942 = vpop.f32.mrb[0].mxu0
        %1943 = vmatprep.mubr.bf16.mxu0 0
        %1944 = vmatmul.mubr.bf16.gmra.mrb[0].mxu0 %v1735
        %v1945 = vpop.f32.mrb[0].mxu0
        %v1946 = vadd.f32 0.0, %v1945
        %v1947 = vpop.f32.mrb[0].mxu0
        %v1948 = vpop.f32.mrb[0].mxu0
        %v1949 = vadd.f32 0.0, %v1948
        %v1950 = vpop.f32.mrb[0].mxu0
        %1951 = vmatprep.mubr.bf16.mxu0 0
        %1952 = vmatmul.mubr.bf16.gmra.mrb[0].mxu0 %v1736
        %v1953 = vpop.f32.mrb[0].mxu0
        %v1954 = vadd.f32 0.0, %v1953
        %v1955 = vpop.f32.mrb[0].mxu0
        %v1956 = vpop.f32.mrb[0].mxu0
        %v1957 = vadd.f32 0.0, %v1956
        %v1958 = vpop.f32.mrb[0].mxu0
        %1959 = vmatprep.mubr.bf16.mxu0 0
        %1960 = vmatmul.mubr.bf16.gmra.mrb[0].mxu0 %v1737
        %v1961 = vpop.f32.mrb[0].mxu0
        %v1962 = vadd.f32 0.0, %v1961
        %v1963 = vpop.f32.mrb[0].mxu0
        %v1964 = vpop.f32.mrb[0].mxu0
        %v1965 = vadd.f32 0.0, %v1964
        %v1966 = vpop.f32.mrb[0].mxu0
        %1967 = vmatprep.mubr.bf16.mxu0 0
        %1968 = vmatmul.mubr.bf16.gmra.mrb[0].mxu0 %v1738
        %v1969 = vpop.f32.mrb[0].mxu0
        %v1970 = vadd.f32 0.0, %v1969
        %v1971 = vpop.f32.mrb[0].mxu0
        %v1972 = vpop.f32.mrb[0].mxu0
        %v1973 = vadd.f32 0.0, %v1972
        %v1974 = vpop.f32.mrb[0].mxu0
        %1975 = vmatprep.mubr.bf16.mxu0 0
        %1976 = vmatmul.mubr.bf16.gmra.mrb[0].mxu0 %v1739
        %v1977 = vpop.f32.mrb[0].mxu0
        %v1978 = vadd.f32 0.0, %v1977
        %v1979 = vpop.f32.mrb[0].mxu0
        %v1980 = vpop.f32.mrb[0].mxu0
        %v1981 = vadd.f32 0.0, %v1980
        %v1982 = vpop.f32.mrb[0].mxu0
        %1983 = vmatprep.mubr.bf16.mxu0 0
        %1984 = vmatmul.mubr.bf16.gmra.mrb[0].mxu0 %v1740
        %v1985 = vpop.f32.mrb[0].mxu0
        %v1986 = vadd.f32 0.0, %v1985
        %v1987 = vpop.f32.mrb[0].mxu0
        %v1988 = vpop.f32.mrb[0].mxu0
        %v1989 = vadd.f32 0.0, %v1988
        %v1990 = vpop.f32.mrb[0].mxu0
        %1991 = vmatprep.mubr.bf16.mxu0 0
        %1992 = vmatmul.mubr.bf16.gmra.mrb[0].mxu0 %v1741
        %v1993 = vpop.f32.mrb[0].mxu0
        %v1994 = vadd.f32 0.0, %v1993
        %v1995 = vpop.f32.mrb[0].mxu0
        %v1996 = vpop.f32.mrb[0].mxu0
        %v1997 = vadd.f32 0.0, %v1996
        %v1998 = vpop.f32.mrb[0].mxu0
        %1999 = vmatprep.mubr.bf16.mxu0 0
        %2000 = vmatmul.mubr.bf16.gmra.mrb[0].mxu0 %v1742
        %v2001 = vpop.f32.mrb[0].mxu0
        %v2002 = vadd.f32 0.0, %v2001
        %v2003 = vpop.f32.mrb[0].mxu0
        %v2004 = vpop.f32.mrb[0].mxu0
        %v2005 = vadd.f32 0.0, %v2004
        %v2006 = vpop.f32.mrb[0].mxu0
        %2007 = vmatprep.mubr.bf16.mxu0 0
        %2008 = vmatmul.mubr.bf16.gmra.mrb[0].mxu0 %v1743
        %v2009 = vpop.f32.mrb[0].mxu0
        %v2010 = vadd.f32 0.0, %v2009
        %v2011 = vpop.f32.mrb[0].mxu0
        %v2012 = vpop.f32.mrb[0].mxu0
        %v2013 = vadd.f32 0.0, %v2012
        %v2014 = vpop.f32.mrb[0].mxu0
        %2015 = vmatprep.mubr.bf16.mxu0 0
        %2016 = vmatmul.mubr.bf16.gmra.mrb[0].mxu0 %v1744
        %v2017 = vpop.f32.mrb[0].mxu0
        %v2018 = vadd.f32 0.0, %v2017
        %v2019 = vpop.f32.mrb[0].mxu0
        %v2020 = vpop.f32.mrb[0].mxu0
        %v2021 = vadd.f32 0.0, %v2020
        %v2022 = vpop.f32.mrb[0].mxu0
        %2023 = vmatprep.mubr.bf16.mxu0 0
        %2024 = vmatmul.mubr.bf16.gmra.mrb[0].mxu0 %v1745
        %v2025 = vpop.f32.mrb[0].mxu0
        %v2026 = vadd.f32 0.0, %v2025
        %v2027 = vpop.f32.mrb[0].mxu0
        %v2028 = vpop.f32.mrb[0].mxu0
        %v2029 = vadd.f32 0.0, %v2028
        %v2030 = vpop.f32.mrb[0].mxu0
        %2031 = vmatprep.mubr.bf16.mxu0 0
        %2032 = vmatmul.mubr.bf16.gmra.mrb[0].mxu0 %v1746
        %v2033 = vpop.f32.mrb[0].mxu0
        %v2034 = vadd.f32 0.0, %v2033
        %v2035 = vpop.f32.mrb[0].mxu0
        %v2036 = vpop.f32.mrb[0].mxu0
        %v2037 = vadd.f32 0.0, %v2036
        %v2038 = vpop.f32.mrb[0].mxu0
        %2039 = vmatprep.mubr.bf16.mxu0 0
        %2040 = vmatmul.mubr.bf16.gmra.mrb[0].mxu0 %v1747
        %v2041 = vpop.f32.mrb[0].mxu0
        %v2042 = vadd.f32 0.0, %v2041
        %v2043 = vpop.f32.mrb[0].mxu0
        %v2044 = vpop.f32.mrb[0].mxu0
        %v2045 = vadd.f32 0.0, %v2044
        %v2046 = vpop.f32.mrb[0].mxu0
        %2047 = vmatprep.mubr.bf16.mxu0 0
        %2048 = vmatmul.mubr.bf16.gmra.mrb[0].mxu0 %v1748
        %v2049 = vpop.f32.mrb[0].mxu0
        %v2050 = vadd.f32 0.0, %v2049
        %v2051 = vpop.f32.mrb[0].mxu0
        %v2052 = vpop.f32.mrb[0].mxu0
        %v2053 = vadd.f32 0.0, %v2052
        %v2054 = vpop.f32.mrb[0].mxu0
        %2055 = vmatprep.mubr.bf16.mxu0 0
        %2056 = vmatmul.mubr.bf16.gmra.mrb[0].mxu0 %v1749
        %v2057 = vpop.f32.mrb[0].mxu0
        %v2058 = vadd.f32 0.0, %v2057
        %v2059 = vpop.f32.mrb[0].mxu0
        %v2060 = vpop.f32.mrb[0].mxu0
        %v2061 = vadd.f32 0.0, %v2060
        %v2062 = vpop.f32.mrb[0].mxu0
        %2063 = vmatprep.mubr.bf16.mxu0 0
        %2064 = vmatmul.mubr.bf16.gmra.mrb[0].mxu0 %v1750
        %v2065 = vpop.f32.mrb[0].mxu0
        %v2066 = vadd.f32 0.0, %v2065
        %v2067 = vpop.f32.mrb[0].mxu0
        %v2068 = vpop.f32.mrb[0].mxu0
        %v2069 = vadd.f32 0.0, %v2068
        %v2070 = vpop.f32.mrb[0].mxu0
        %2071 = vdwg.mxu0
        %v2072 = vmul.f32 %v353, %v1818
        %v2073 = vmul.f32 %v354, %v1821
        %v2074 = vmul.f32 %v355, %v1826
        %v2075 = vmul.f32 %v356, %v1829
        %v2076 = vmul.f32 %v357, %v1834
        %v2077 = vmul.f32 %v358, %v1837
        %v2078 = vmul.f32 %v359, %v1842
        %v2079 = vmul.f32 %v360, %v1845
        %v2080 = vmul.f32 %v361, %v1850
        %v2081 = vmul.f32 %v362, %v1853
        %v2082 = vmul.f32 %v363, %v1858
        %v2083 = vmul.f32 %v364, %v1861
        %v2084 = vmul.f32 %v365, %v1866
        %v2085 = vmul.f32 %v366, %v1869
        %v2086 = vmul.f32 %v367, %v1874
        %v2087 = vmul.f32 %v368, %v1877
        %v2088 = vadd.f32 %v2072, %v2076
        %v2089 = vadd.f32 %v2073, %v2077
        %v2090 = vadd.f32 %v2074, %v2078
        %v2091 = vadd.f32 %v2075, %v2079
        %v2092 = vadd.f32 %v2088, %v2080
        %v2093 = vadd.f32 %v2089, %v2081
        %v2094 = vadd.f32 %v2090, %v2082
        %v2095 = vadd.f32 %v2091, %v2083
        %v2096 = vadd.f32 %v2092, %v2084
        %v2097 = vadd.f32 %v2093, %v2085
        %v2098 = vadd.f32 %v2094, %v2086
        %v2099 = vadd.f32 %v2095, %v2087
        %v2100 = vmul.f32 %v353, %v1882
        %v2101 = vmul.f32 %v354, %v1885
        %v2102 = vmul.f32 %v355, %v1890
        %v2103 = vmul.f32 %v356, %v1893
        %v2104 = vmul.f32 %v357, %v1898
        %v2105 = vmul.f32 %v358, %v1901
        %v2106 = vmul.f32 %v359, %v1906
        %v2107 = vmul.f32 %v360, %v1909
        %v2108 = vmul.f32 %v361, %v1914
        %v2109 = vmul.f32 %v362, %v1917
        %v2110 = vmul.f32 %v363, %v1922
        %v2111 = vmul.f32 %v364, %v1925
        %v2112 = vmul.f32 %v365, %v1930
        %v2113 = vmul.f32 %v366, %v1933
        %v2114 = vmul.f32 %v367, %v1938
        %v2115 = vmul.f32 %v368, %v1941
        %v2116 = vadd.f32 %v2100, %v2104
        %v2117 = vadd.f32 %v2101, %v2105
        %v2118 = vadd.f32 %v2102, %v2106
        %v2119 = vadd.f32 %v2103, %v2107
        %v2120 = vadd.f32 %v2116, %v2108
        %v2121 = vadd.f32 %v2117, %v2109
        %v2122 = vadd.f32 %v2118, %v2110
        %v2123 = vadd.f32 %v2119, %v2111
        %v2124 = vadd.f32 %v2120, %v2112
        %v2125 = vadd.f32 %v2121, %v2113
        %v2126 = vadd.f32 %v2122, %v2114
        %v2127 = vadd.f32 %v2123, %v2115
        %v2128 = vmul.f32 %v353, %v1946
        %v2129 = vmul.f32 %v354, %v1949
        %v2130 = vmul.f32 %v355, %v1954
        %v2131 = vmul.f32 %v356, %v1957
        %v2132 = vmul.f32 %v357, %v1962
        %v2133 = vmul.f32 %v358, %v1965
        %v2134 = vmul.f32 %v359, %v1970
        %v2135 = vmul.f32 %v360, %v1973
        %v2136 = vmul.f32 %v361, %v1978
        %v2137 = vmul.f32 %v362, %v1981
        %v2138 = vmul.f32 %v363, %v1986
        %v2139 = vmul.f32 %v364, %v1989
        %v2140 = vmul.f32 %v365, %v1994
        %v2141 = vmul.f32 %v366, %v1997
        %v2142 = vmul.f32 %v367, %v2002
        %v2143 = vmul.f32 %v368, %v2005
        %v2144 = vadd.f32 %v2128, %v2132
        %v2145 = vadd.f32 %v2129, %v2133
        %v2146 = vadd.f32 %v2130, %v2134
        %v2147 = vadd.f32 %v2131, %v2135
        %v2148 = vadd.f32 %v2144, %v2136
        %v2149 = vadd.f32 %v2145, %v2137
        %v2150 = vadd.f32 %v2146, %v2138
        %v2151 = vadd.f32 %v2147, %v2139
        %v2152 = vadd.f32 %v2148, %v2140
        %v2153 = vadd.f32 %v2149, %v2141
        %v2154 = vadd.f32 %v2150, %v2142
        %v2155 = vadd.f32 %v2151, %v2143
        %v2156 = vmul.f32 %v353, %v2010
        %v2157 = vmul.f32 %v354, %v2013
        %v2158 = vmul.f32 %v355, %v2018
        %v2159 = vmul.f32 %v356, %v2021
        %v2160 = vmul.f32 %v357, %v2026
        %v2161 = vmul.f32 %v358, %v2029
        %v2162 = vmul.f32 %v359, %v2034
        %v2163 = vmul.f32 %v360, %v2037
        %v2164 = vmul.f32 %v361, %v2042
        %v2165 = vmul.f32 %v362, %v2045
        %v2166 = vmul.f32 %v363, %v2050
        %v2167 = vmul.f32 %v364, %v2053
        %v2168 = vmul.f32 %v365, %v2058
        %v2169 = vmul.f32 %v366, %v2061
        %v2170 = vmul.f32 %v367, %v2066
        %v2171 = vmul.f32 %v368, %v2069
        %v2172 = vadd.f32 %v2156, %v2160
        %v2173 = vadd.f32 %v2157, %v2161
        %v2174 = vadd.f32 %v2158, %v2162
        %v2175 = vadd.f32 %v2159, %v2163
        %v2176 = vadd.f32 %v2172, %v2164
        %v2177 = vadd.f32 %v2173, %v2165
        %v2178 = vadd.f32 %v2174, %v2166
        %v2179 = vadd.f32 %v2175, %v2167
        %v2180 = vadd.f32 %v2176, %v2168
        %v2181 = vadd.f32 %v2177, %v2169
        %v2182 = vadd.f32 %v2178, %v2170
        %v2183 = vadd.f32 %v2179, %v2171
        %s2184 = scalar_lea.vmem [#allocation8], 512
        %v2185 = vld [vmem:[%s2184] sm:$0xf]
        %v2186 = vld [vmem:[%s2184 + $0x4] sm:$0xf]
        %v2187 = vld [vmem:[%s2184 + $0x8] sm:$0xf]
        %v2188 = vld [vmem:[%s2184 + $0xc] sm:$0xf]
        %v2189 = vld [vmem:[%s2184 + $0x10] sm:$0xf]
        %v2190 = vld [vmem:[%s2184 + $0x14] sm:$0xf]
        %v2191 = vld [vmem:[%s2184 + $0x18] sm:$0xf]
        %v2192 = vld [vmem:[%s2184 + $0x1c] sm:$0xf]
        %v2193 = vld [vmem:[%s2184 + $0x20] sm:$0xf]
        %v2194 = vld [vmem:[%s2184 + $0x24] sm:$0xf]
        %v2195 = vld [vmem:[%s2184 + $0x28] sm:$0xf]
        %v2196 = vld [vmem:[%s2184 + $0x2c] sm:$0xf]
        %v2197 = vld [vmem:[%s2184 + $0x30] sm:$0xf]
        %v2198 = vld [vmem:[%s2184 + $0x34] sm:$0xf]
        %v2199 = vld [vmem:[%s2184 + $0x38] sm:$0xf]
        %v2200 = vld [vmem:[%s2184 + $0x3c] sm:$0xf]
        %v2201 = vld [vmem:[%s2184 + $0x40] sm:$0xf]
        %v2202 = vld [vmem:[%s2184 + $0x44] sm:$0xf]
        %v2203 = vld [vmem:[%s2184 + $0x48] sm:$0xf]
        %v2204 = vld [vmem:[%s2184 + $0x4c] sm:$0xf]
        %v2205 = vld [vmem:[%s2184 + $0x50] sm:$0xf]
        %v2206 = vld [vmem:[%s2184 + $0x54] sm:$0xf]
        %v2207 = vld [vmem:[%s2184 + $0x58] sm:$0xf]
        %v2208 = vld [vmem:[%s2184 + $0x5c] sm:$0xf]
        %v2209 = vld [vmem:[%s2184 + $0x60] sm:$0xf]
        %v2210 = vld [vmem:[%s2184 + $0x64] sm:$0xf]
        %v2211 = vld [vmem:[%s2184 + $0x68] sm:$0xf]
        %v2212 = vld [vmem:[%s2184 + $0x6c] sm:$0xf]
        %v2213 = vld [vmem:[%s2184 + $0x70] sm:$0xf]
        %v2214 = vld [vmem:[%s2184 + $0x74] sm:$0xf]
        %v2215 = vld [vmem:[%s2184 + $0x78] sm:$0xf]
        %v2216 = vld [vmem:[%s2184 + $0x7c] sm:$0xf]
        %v2217 = vld [vmem:[%s2184 + $0x80] sm:$0xf]
        %v2218 = vld [vmem:[%s2184 + $0x84] sm:$0xf]
        %v2219 = vld [vmem:[%s2184 + $0x88] sm:$0xf]
        %v2220 = vld [vmem:[%s2184 + $0x8c] sm:$0xf]
        %v2221 = vld [vmem:[%s2184 + $0x90] sm:$0xf]
        %v2222 = vld [vmem:[%s2184 + $0x94] sm:$0xf]
        %v2223 = vld [vmem:[%s2184 + $0x98] sm:$0xf]
        %v2224 = vld [vmem:[%s2184 + $0x9c] sm:$0xf]
        %v2225 = vld [vmem:[%s2184 + $0xa0] sm:$0xf]
        %v2226 = vld [vmem:[%s2184 + $0xa4] sm:$0xf]
        %v2227 = vld [vmem:[%s2184 + $0xa8] sm:$0xf]
        %v2228 = vld [vmem:[%s2184 + $0xac] sm:$0xf]
        %v2229 = vld [vmem:[%s2184 + $0xb0] sm:$0xf]
        %v2230 = vld [vmem:[%s2184 + $0xb4] sm:$0xf]
        %v2231 = vld [vmem:[%s2184 + $0xb8] sm:$0xf]
        %v2232 = vld [vmem:[%s2184 + $0xbc] sm:$0xf]
        %v2233 = vld [vmem:[%s2184 + $0xc0] sm:$0xf]
        %v2234 = vld [vmem:[%s2184 + $0xc4] sm:$0xf]
        %v2235 = vld [vmem:[%s2184 + $0xc8] sm:$0xf]
        %v2236 = vld [vmem:[%s2184 + $0xcc] sm:$0xf]
        %v2237 = vld [vmem:[%s2184 + $0xd0] sm:$0xf]
        %v2238 = vld [vmem:[%s2184 + $0xd4] sm:$0xf]
        %v2239 = vld [vmem:[%s2184 + $0xd8] sm:$0xf]
        %v2240 = vld [vmem:[%s2184 + $0xdc] sm:$0xf]
        %v2241 = vld [vmem:[%s2184 + $0xe0] sm:$0xf]
        %v2242 = vld [vmem:[%s2184 + $0xe4] sm:$0xf]
        %v2243 = vld [vmem:[%s2184 + $0xe8] sm:$0xf]
        %v2244 = vld [vmem:[%s2184 + $0xec] sm:$0xf]
        %v2245 = vld [vmem:[%s2184 + $0xf0] sm:$0xf]
        %v2246 = vld [vmem:[%s2184 + $0xf4] sm:$0xf]
        %v2247 = vld [vmem:[%s2184 + $0xf8] sm:$0xf]
        %v2248 = vld [vmem:[%s2184 + $0xfc] sm:$0xf]
        %v2249 = vpack.c.bf16 %v2097, %v2096
        %v2250 = vpack.c.bf16 %v2099, %v2098
        %v2251 = vpack.c.bf16 %v2125, %v2124
        %v2252 = vpack.c.bf16 %v2127, %v2126
        %v2253 = vpack.c.bf16 %v2153, %v2152
        %v2254 = vpack.c.bf16 %v2155, %v2154
        %v2255 = vpack.c.bf16 %v2181, %v2180
        %v2256 = vpack.c.bf16 %v2183, %v2182
        %v2321 = vunpack.c.l.b16 %v2185
        %v2322 = vunpack.c.l.b16 %v2186
        %v2323 = vunpack.c.l.b16 %v2187
        %v2324 = vunpack.c.l.b16 %v2188
        %v2325 = vunpack.c.l.b16 %v2189
        %v2326 = vunpack.c.l.b16 %v2190
        %v2327 = vunpack.c.l.b16 %v2191
        %v2328 = vunpack.c.l.b16 %v2192
        %v2329 = vunpack.c.l.b16 %v2193
        %v2330 = vunpack.c.l.b16 %v2194
        %v2331 = vunpack.c.l.b16 %v2195
        %v2332 = vunpack.c.l.b16 %v2196
        %v2333 = vunpack.c.l.b16 %v2197
        %v2334 = vunpack.c.l.b16 %v2198
        %v2335 = vunpack.c.l.b16 %v2199
        %v2336 = vunpack.c.l.b16 %v2200
        %v2337 = vunpack.c.l.b16 %v2201
        %v2338 = vunpack.c.l.b16 %v2202
        %v2339 = vunpack.c.l.b16 %v2203
        %v2340 = vunpack.c.l.b16 %v2204
        %v2341 = vunpack.c.l.b16 %v2205
        %v2342 = vunpack.c.l.b16 %v2206
        %v2343 = vunpack.c.l.b16 %v2207
        %v2344 = vunpack.c.l.b16 %v2208
        %v2345 = vunpack.c.l.b16 %v2209
        %v2346 = vunpack.c.l.b16 %v2210
        %v2347 = vunpack.c.l.b16 %v2211
        %v2348 = vunpack.c.l.b16 %v2212
        %v2349 = vunpack.c.l.b16 %v2213
        %v2350 = vunpack.c.l.b16 %v2214
        %v2351 = vunpack.c.l.b16 %v2215
        %v2352 = vunpack.c.l.b16 %v2216
        %v2353 = vunpack.c.l.b16 %v2217
        %v2354 = vunpack.c.l.b16 %v2218
        %v2355 = vunpack.c.l.b16 %v2219
        %v2356 = vunpack.c.l.b16 %v2220
        %v2357 = vunpack.c.l.b16 %v2221
        %v2358 = vunpack.c.l.b16 %v2222
        %v2359 = vunpack.c.l.b16 %v2223
        %v2360 = vunpack.c.l.b16 %v2224
        %v2361 = vunpack.c.l.b16 %v2225
        %v2362 = vunpack.c.l.b16 %v2226
        %v2363 = vunpack.c.l.b16 %v2227
        %v2364 = vunpack.c.l.b16 %v2228
        %v2365 = vunpack.c.l.b16 %v2229
        %v2366 = vunpack.c.l.b16 %v2230
        %v2367 = vunpack.c.l.b16 %v2231
        %v2368 = vunpack.c.l.b16 %v2232
        %v2369 = vunpack.c.l.b16 %v2233
        %v2370 = vunpack.c.l.b16 %v2234
        %v2371 = vunpack.c.l.b16 %v2235
        %v2372 = vunpack.c.l.b16 %v2236
        %v2373 = vunpack.c.l.b16 %v2237
        %v2374 = vunpack.c.l.b16 %v2238
        %v2375 = vunpack.c.l.b16 %v2239
        %v2376 = vunpack.c.l.b16 %v2240
        %v2377 = vunpack.c.l.b16 %v2241
        %v2378 = vunpack.c.l.b16 %v2242
        %v2379 = vunpack.c.l.b16 %v2243
        %v2380 = vunpack.c.l.b16 %v2244
        %v2381 = vunpack.c.l.b16 %v2245
        %v2382 = vunpack.c.l.b16 %v2246
        %v2383 = vunpack.c.l.b16 %v2247
        %v2384 = vunpack.c.l.b16 %v2248
        %v2385 = vpack.c.b16 %v2322, %v2321
        %v2386 = vpack.c.b16 %v2324, %v2323
        %v2387 = vpack.c.b16 %v2326, %v2325
        %v2388 = vpack.c.b16 %v2328, %v2327
        %v2389 = vpack.c.b16 %v2330, %v2329
        %v2390 = vpack.c.b16 %v2332, %v2331
        %v2391 = vpack.c.b16 %v2334, %v2333
        %v2392 = vpack.c.b16 %v2336, %v2335
        %v2393 = vpack.c.b16 %v2338, %v2337
        %v2394 = vpack.c.b16 %v2340, %v2339
        %v2395 = vpack.c.b16 %v2342, %v2341
        %v2396 = vpack.c.b16 %v2344, %v2343
        %v2397 = vpack.c.b16 %v2346, %v2345
        %v2398 = vpack.c.b16 %v2348, %v2347
        %v2399 = vpack.c.b16 %v2350, %v2349
        %v2400 = vpack.c.b16 %v2352, %v2351
        %v2401 = vpack.c.b16 %v2354, %v2353
        %v2402 = vpack.c.b16 %v2356, %v2355
        %v2403 = vpack.c.b16 %v2358, %v2357
        %v2404 = vpack.c.b16 %v2360, %v2359
        %v2405 = vpack.c.b16 %v2362, %v2361
        %v2406 = vpack.c.b16 %v2364, %v2363
        %v2407 = vpack.c.b16 %v2366, %v2365
        %v2408 = vpack.c.b16 %v2368, %v2367
        %v2409 = vpack.c.b16 %v2370, %v2369
        %v2410 = vpack.c.b16 %v2372, %v2371
        %v2411 = vpack.c.b16 %v2374, %v2373
        %v2412 = vpack.c.b16 %v2376, %v2375
        %v2413 = vpack.c.b16 %v2378, %v2377
        %v2414 = vpack.c.b16 %v2380, %v2379
        %v2415 = vpack.c.b16 %v2382, %v2381
        %v2416 = vpack.c.b16 %v2384, %v2383
        %2449 = vmatprep.subr.bf16.mxu0 0
        %2450 = vmatpush1.bf16.msra.mxu0 %v2249
        %2451 = vmatprep.subr.bf16.mxu0 0
        %2452 = vmatpush1.bf16.msra.mxu0 %v2250
        %2453 = vmatprep.subr.bf16.mxu0 0
        %2454 = vmatpush1.bf16.msra.mxu0 %v2251
        %2455 = vmatprep.subr.bf16.mxu0 0
        %2456 = vmatpush1.bf16.msra.mxu0 %v2252
        %2457 = vmatprep.subr.bf16.mxu0 0
        %2458 = vmatpush1.bf16.msra.mxu0 %v2253
        %2459 = vmatprep.subr.bf16.mxu0 0
        %2460 = vmatpush1.bf16.msra.mxu0 %v2254
        %2461 = vmatprep.subr.bf16.mxu0 0
        %2462 = vmatpush1.bf16.msra.mxu0 %v2255
        %2463 = vmatprep.subr.bf16.mxu0 0
        %2464 = vmatpush1.bf16.msra.mxu0 %v2256
        %2465 = vmatprep.subr.bf16.mxu0 0
        %2466 = vmatpush1.bf16.msra.mxu0 0
        %2467 = vmatprep.subr.bf16.mxu0 0
        %2468 = vmatpush1.bf16.msra.mxu0 0
        %2469 = vmatprep.subr.bf16.mxu0 0
        %2470 = vmatpush1.bf16.msra.mxu0 0
        %2471 = vmatprep.subr.bf16.mxu0 0
        %2472 = vmatpush1.bf16.msra.mxu0 0
        %2473 = vmatprep.subr.bf16.mxu0 0
        %2474 = vmatpush1.bf16.msra.mxu0 0
        %2475 = vmatprep.subr.bf16.mxu0 0
        %2476 = vmatpush1.bf16.msra.mxu0 0
        %2477 = vmatprep.subr.bf16.mxu0 0
        %2478 = vmatpush1.bf16.msra.mxu0 0
        %2479 = vmatprep.subr.bf16.mxu0 0
        %2480 = vmatpush1.bf16.msra.mxu0 0
        %2481 = vmatprep.mubr.bf16.mxu0 0
        %2482 = vmatmul.mubr.bf16.gmra.mrb[0].mxu0 %v2385
        %v2483 = vpop.f32.mrb[0].mxu0
        %v2484 = vadd.f32 0.0, %v2483
        %v2485 = vpop.f32.mrb[0].mxu0
        %v2486 = vpop.f32.mrb[0].mxu0
        %v2487 = vadd.f32 0.0, %v2486
        %v2488 = vpop.f32.mrb[0].mxu0
        %2489 = vmatprep.mubr.bf16.mxu0 0
        %2490 = vmatmul.mubr.bf16.gmra.mrb[0].mxu0 %v2386
        %v2491 = vpop.f32.mrb[0].mxu0
        %v2492 = vadd.f32 0.0, %v2491
        %v2493 = vpop.f32.mrb[0].mxu0
        %v2494 = vpop.f32.mrb[0].mxu0
        %v2495 = vadd.f32 0.0, %v2494
        %v2496 = vpop.f32.mrb[0].mxu0
        %2497 = vmatprep.mubr.bf16.mxu0 0
        %2498 = vmatmul.mubr.bf16.gmra.mrb[0].mxu0 %v2387
        %v2499 = vpop.f32.mrb[0].mxu0
        %v2500 = vadd.f32 0.0, %v2499
        %v2501 = vpop.f32.mrb[0].mxu0
        %v2502 = vpop.f32.mrb[0].mxu0
        %v2503 = vadd.f32 0.0, %v2502
        %v2504 = vpop.f32.mrb[0].mxu0
        %2505 = vmatprep.mubr.bf16.mxu0 0
        %2506 = vmatmul.mubr.bf16.gmra.mrb[0].mxu0 %v2388
        %v2507 = vpop.f32.mrb[0].mxu0
        %v2508 = vadd.f32 0.0, %v2507
        %v2509 = vpop.f32.mrb[0].mxu0
        %v2510 = vpop.f32.mrb[0].mxu0
        %v2511 = vadd.f32 0.0, %v2510
        %v2512 = vpop.f32.mrb[0].mxu0
        %2513 = vmatprep.mubr.bf16.mxu0 0
        %2514 = vmatmul.mubr.bf16.gmra.mrb[0].mxu0 %v2389
        %v2515 = vpop.f32.mrb[0].mxu0
        %v2516 = vadd.f32 0.0, %v2515
        %v2517 = vpop.f32.mrb[0].mxu0
        %v2518 = vpop.f32.mrb[0].mxu0
        %v2519 = vadd.f32 0.0, %v2518
        %v2520 = vpop.f32.mrb[0].mxu0
        %2521 = vmatprep.mubr.bf16.mxu0 0
        %2522 = vmatmul.mubr.bf16.gmra.mrb[0].mxu0 %v2390
        %v2523 = vpop.f32.mrb[0].mxu0
        %v2524 = vadd.f32 0.0, %v2523
        %v2525 = vpop.f32.mrb[0].mxu0
        %v2526 = vpop.f32.mrb[0].mxu0
        %v2527 = vadd.f32 0.0, %v2526
        %v2528 = vpop.f32.mrb[0].mxu0
        %2529 = vmatprep.mubr.bf16.mxu0 0
        %2530 = vmatmul.mubr.bf16.gmra.mrb[0].mxu0 %v2391
        %v2531 = vpop.f32.mrb[0].mxu0
        %v2532 = vadd.f32 0.0, %v2531
        %v2533 = vpop.f32.mrb[0].mxu0
        %v2534 = vpop.f32.mrb[0].mxu0
        %v2535 = vadd.f32 0.0, %v2534
        %v2536 = vpop.f32.mrb[0].mxu0
        %2537 = vmatprep.mubr.bf16.mxu0 0
        %2538 = vmatmul.mubr.bf16.gmra.mrb[0].mxu0 %v2392
        %v2539 = vpop.f32.mrb[0].mxu0
        %v2540 = vadd.f32 0.0, %v2539
        %v2541 = vpop.f32.mrb[0].mxu0
        %v2542 = vpop.f32.mrb[0].mxu0
        %v2543 = vadd.f32 0.0, %v2542
        %v2544 = vpop.f32.mrb[0].mxu0
        %2545 = vmatprep.mubr.bf16.mxu0 0
        %2546 = vmatmul.mubr.bf16.gmra.mrb[0].mxu0 %v2393
        %v2547 = vpop.f32.mrb[0].mxu0
        %v2548 = vadd.f32 0.0, %v2547
        %v2549 = vpop.f32.mrb[0].mxu0
        %v2550 = vpop.f32.mrb[0].mxu0
        %v2551 = vadd.f32 0.0, %v2550
        %v2552 = vpop.f32.mrb[0].mxu0
        %2553 = vmatprep.mubr.bf16.mxu0 0
        %2554 = vmatmul.mubr.bf16.gmra.mrb[0].mxu0 %v2394
        %v2555 = vpop.f32.mrb[0].mxu0
        %v2556 = vadd.f32 0.0, %v2555
        %v2557 = vpop.f32.mrb[0].mxu0
        %v2558 = vpop.f32.mrb[0].mxu0
        %v2559 = vadd.f32 0.0, %v2558
        %v2560 = vpop.f32.mrb[0].mxu0
        %2561 = vmatprep.mubr.bf16.mxu0 0
        %2562 = vmatmul.mubr.bf16.gmra.mrb[0].mxu0 %v2395
        %v2563 = vpop.f32.mrb[0].mxu0
        %v2564 = vadd.f32 0.0, %v2563
        %v2565 = vpop.f32.mrb[0].mxu0
        %v2566 = vpop.f32.mrb[0].mxu0
        %v2567 = vadd.f32 0.0, %v2566
        %v2568 = vpop.f32.mrb[0].mxu0
        %2569 = vmatprep.mubr.bf16.mxu0 0
        %2570 = vmatmul.mubr.bf16.gmra.mrb[0].mxu0 %v2396
        %v2571 = vpop.f32.mrb[0].mxu0
        %v2572 = vadd.f32 0.0, %v2571
        %v2573 = vpop.f32.mrb[0].mxu0
        %v2574 = vpop.f32.mrb[0].mxu0
        %v2575 = vadd.f32 0.0, %v2574
        %v2576 = vpop.f32.mrb[0].mxu0
        %2577 = vmatprep.mubr.bf16.mxu0 0
        %2578 = vmatmul.mubr.bf16.gmra.mrb[0].mxu0 %v2397
        %v2579 = vpop.f32.mrb[0].mxu0
        %v2580 = vadd.f32 0.0, %v2579
        %v2581 = vpop.f32.mrb[0].mxu0
        %v2582 = vpop.f32.mrb[0].mxu0
        %v2583 = vadd.f32 0.0, %v2582
        %v2584 = vpop.f32.mrb[0].mxu0
        %2585 = vmatprep.mubr.bf16.mxu0 0
        %2586 = vmatmul.mubr.bf16.gmra.mrb[0].mxu0 %v2398
        %v2587 = vpop.f32.mrb[0].mxu0
        %v2588 = vadd.f32 0.0, %v2587
        %v2589 = vpop.f32.mrb[0].mxu0
        %v2590 = vpop.f32.mrb[0].mxu0
        %v2591 = vadd.f32 0.0, %v2590
        %v2592 = vpop.f32.mrb[0].mxu0
        %2593 = vmatprep.mubr.bf16.mxu0 0
        %2594 = vmatmul.mubr.bf16.gmra.mrb[0].mxu0 %v2399
        %v2595 = vpop.f32.mrb[0].mxu0
        %v2596 = vadd.f32 0.0, %v2595
        %v2597 = vpop.f32.mrb[0].mxu0
        %v2598 = vpop.f32.mrb[0].mxu0
        %v2599 = vadd.f32 0.0, %v2598
        %v2600 = vpop.f32.mrb[0].mxu0
        %2601 = vmatprep.mubr.bf16.mxu0 0
        %2602 = vmatmul.mubr.bf16.gmra.mrb[0].mxu0 %v2400
        %v2603 = vpop.f32.mrb[0].mxu0
        %v2604 = vadd.f32 0.0, %v2603
        %v2605 = vpop.f32.mrb[0].mxu0
        %v2606 = vpop.f32.mrb[0].mxu0
        %v2607 = vadd.f32 0.0, %v2606
        %v2608 = vpop.f32.mrb[0].mxu0
        %2609 = vmatprep.mubr.bf16.mxu0 0
        %2610 = vmatmul.mubr.bf16.gmra.mrb[0].mxu0 %v2401
        %v2611 = vpop.f32.mrb[0].mxu0
        %v2612 = vadd.f32 0.0, %v2611
        %v2613 = vpop.f32.mrb[0].mxu0
        %v2614 = vpop.f32.mrb[0].mxu0
        %v2615 = vadd.f32 0.0, %v2614
        %v2616 = vpop.f32.mrb[0].mxu0
        %2617 = vmatprep.mubr.bf16.mxu0 0
        %2618 = vmatmul.mubr.bf16.gmra.mrb[0].mxu0 %v2402
        %v2619 = vpop.f32.mrb[0].mxu0
        %v2620 = vadd.f32 0.0, %v2619
        %v2621 = vpop.f32.mrb[0].mxu0
        %v2622 = vpop.f32.mrb[0].mxu0
        %v2623 = vadd.f32 0.0, %v2622
        %v2624 = vpop.f32.mrb[0].mxu0
        %2625 = vmatprep.mubr.bf16.mxu0 0
        %2626 = vmatmul.mubr.bf16.gmra.mrb[0].mxu0 %v2403
        %v2627 = vpop.f32.mrb[0].mxu0
        %v2628 = vadd.f32 0.0, %v2627
        %v2629 = vpop.f32.mrb[0].mxu0
        %v2630 = vpop.f32.mrb[0].mxu0
        %v2631 = vadd.f32 0.0, %v2630
        %v2632 = vpop.f32.mrb[0].mxu0
        %2633 = vmatprep.mubr.bf16.mxu0 0
        %2634 = vmatmul.mubr.bf16.gmra.mrb[0].mxu0 %v2404
        %v2635 = vpop.f32.mrb[0].mxu0
        %v2636 = vadd.f32 0.0, %v2635
        %v2637 = vpop.f32.mrb[0].mxu0
        %v2638 = vpop.f32.mrb[0].mxu0
        %v2639 = vadd.f32 0.0, %v2638
        %v2640 = vpop.f32.mrb[0].mxu0
        %2641 = vmatprep.mubr.bf16.mxu0 0
        %2642 = vmatmul.mubr.bf16.gmra.mrb[0].mxu0 %v2405
        %v2643 = vpop.f32.mrb[0].mxu0
        %v2644 = vadd.f32 0.0, %v2643
        %v2645 = vpop.f32.mrb[0].mxu0
        %v2646 = vpop.f32.mrb[0].mxu0
        %v2647 = vadd.f32 0.0, %v2646
        %v2648 = vpop.f32.mrb[0].mxu0
        %2649 = vmatprep.mubr.bf16.mxu0 0
        %2650 = vmatmul.mubr.bf16.gmra.mrb[0].mxu0 %v2406
        %v2651 = vpop.f32.mrb[0].mxu0
        %v2652 = vadd.f32 0.0, %v2651
        %v2653 = vpop.f32.mrb[0].mxu0
        %v2654 = vpop.f32.mrb[0].mxu0
        %v2655 = vadd.f32 0.0, %v2654
        %v2656 = vpop.f32.mrb[0].mxu0
        %2657 = vmatprep.mubr.bf16.mxu0 0
        %2658 = vmatmul.mubr.bf16.gmra.mrb[0].mxu0 %v2407
        %v2659 = vpop.f32.mrb[0].mxu0
        %v2660 = vadd.f32 0.0, %v2659
        %v2661 = vpop.f32.mrb[0].mxu0
        %v2662 = vpop.f32.mrb[0].mxu0
        %v2663 = vadd.f32 0.0, %v2662
        %v2664 = vpop.f32.mrb[0].mxu0
        %2665 = vmatprep.mubr.bf16.mxu0 0
        %2666 = vmatmul.mubr.bf16.gmra.mrb[0].mxu0 %v2408
        %v2667 = vpop.f32.mrb[0].mxu0
        %v2668 = vadd.f32 0.0, %v2667
        %v2669 = vpop.f32.mrb[0].mxu0
        %v2670 = vpop.f32.mrb[0].mxu0
        %v2671 = vadd.f32 0.0, %v2670
        %v2672 = vpop.f32.mrb[0].mxu0
        %2673 = vmatprep.mubr.bf16.mxu0 0
        %2674 = vmatmul.mubr.bf16.gmra.mrb[0].mxu0 %v2409
        %v2675 = vpop.f32.mrb[0].mxu0
        %v2676 = vadd.f32 0.0, %v2675
        %v2677 = vpop.f32.mrb[0].mxu0
        %v2678 = vpop.f32.mrb[0].mxu0
        %v2679 = vadd.f32 0.0, %v2678
        %v2680 = vpop.f32.mrb[0].mxu0
        %2681 = vmatprep.mubr.bf16.mxu0 0
        %2682 = vmatmul.mubr.bf16.gmra.mrb[0].mxu0 %v2410
        %v2683 = vpop.f32.mrb[0].mxu0
        %v2684 = vadd.f32 0.0, %v2683
        %v2685 = vpop.f32.mrb[0].mxu0
        %v2686 = vpop.f32.mrb[0].mxu0
        %v2687 = vadd.f32 0.0, %v2686
        %v2688 = vpop.f32.mrb[0].mxu0
        %2689 = vmatprep.mubr.bf16.mxu0 0
        %2690 = vmatmul.mubr.bf16.gmra.mrb[0].mxu0 %v2411
        %v2691 = vpop.f32.mrb[0].mxu0
        %v2692 = vadd.f32 0.0, %v2691
        %v2693 = vpop.f32.mrb[0].mxu0
        %v2694 = vpop.f32.mrb[0].mxu0
        %v2695 = vadd.f32 0.0, %v2694
        %v2696 = vpop.f32.mrb[0].mxu0
        %2697 = vmatprep.mubr.bf16.mxu0 0
        %2698 = vmatmul.mubr.bf16.gmra.mrb[0].mxu0 %v2412
        %v2699 = vpop.f32.mrb[0].mxu0
        %v2700 = vadd.f32 0.0, %v2699
        %v2701 = vpop.f32.mrb[0].mxu0
        %v2702 = vpop.f32.mrb[0].mxu0
        %v2703 = vadd.f32 0.0, %v2702
        %v2704 = vpop.f32.mrb[0].mxu0
        %2705 = vmatprep.mubr.bf16.mxu0 0
        %2706 = vmatmul.mubr.bf16.gmra.mrb[0].mxu0 %v2413
        %v2707 = vpop.f32.mrb[0].mxu0
        %v2708 = vadd.f32 0.0, %v2707
        %v2709 = vpop.f32.mrb[0].mxu0
        %v2710 = vpop.f32.mrb[0].mxu0
        %v2711 = vadd.f32 0.0, %v2710
        %v2712 = vpop.f32.mrb[0].mxu0
        %2713 = vmatprep.mubr.bf16.mxu0 0
        %2714 = vmatmul.mubr.bf16.gmra.mrb[0].mxu0 %v2414
        %v2715 = vpop.f32.mrb[0].mxu0
        %v2716 = vadd.f32 0.0, %v2715
        %v2717 = vpop.f32.mrb[0].mxu0
        %v2718 = vpop.f32.mrb[0].mxu0
        %v2719 = vadd.f32 0.0, %v2718
        %v2720 = vpop.f32.mrb[0].mxu0
        %2721 = vmatprep.mubr.bf16.mxu0 0
        %2722 = vmatmul.mubr.bf16.gmra.mrb[0].mxu0 %v2415
        %v2723 = vpop.f32.mrb[0].mxu0
        %v2724 = vadd.f32 0.0, %v2723
        %v2725 = vpop.f32.mrb[0].mxu0
        %v2726 = vpop.f32.mrb[0].mxu0
        %v2727 = vadd.f32 0.0, %v2726
        %v2728 = vpop.f32.mrb[0].mxu0
        %2729 = vmatprep.mubr.bf16.mxu0 0
        %2730 = vmatmul.mubr.bf16.gmra.mrb[0].mxu0 %v2416
        %v2731 = vpop.f32.mrb[0].mxu0
        %v2732 = vadd.f32 0.0, %v2731
        %v2733 = vpop.f32.mrb[0].mxu0
        %v2734 = vpop.f32.mrb[0].mxu0
        %v2735 = vadd.f32 0.0, %v2734
        %v2736 = vpop.f32.mrb[0].mxu0
        %2737 = vdwg.mxu0
        %v2738 = vmul.f32 %v353, %v2484
        %v2739 = vmul.f32 %v354, %v2487
        %v2740 = vmul.f32 %v355, %v2492
        %v2741 = vmul.f32 %v356, %v2495
        %v2742 = vmul.f32 %v357, %v2500
        %v2743 = vmul.f32 %v358, %v2503
        %v2744 = vmul.f32 %v359, %v2508
        %v2745 = vmul.f32 %v360, %v2511
        %v2746 = vmul.f32 %v361, %v2516
        %v2747 = vmul.f32 %v362, %v2519
        %v2748 = vmul.f32 %v363, %v2524
        %v2749 = vmul.f32 %v364, %v2527
        %v2750 = vmul.f32 %v365, %v2532
        %v2751 = vmul.f32 %v366, %v2535
        %v2752 = vmul.f32 %v367, %v2540
        %v2753 = vmul.f32 %v368, %v2543
        %v2754 = vadd.f32 %v2738, %v2742
        %v2755 = vadd.f32 %v2739, %v2743
        %v2756 = vadd.f32 %v2740, %v2744
        %v2757 = vadd.f32 %v2741, %v2745
        %v2758 = vadd.f32 %v2754, %v2746
        %v2759 = vadd.f32 %v2755, %v2747
        %v2760 = vadd.f32 %v2756, %v2748
        %v2761 = vadd.f32 %v2757, %v2749
        %v2762 = vadd.f32 %v2758, %v2750
        %v2763 = vadd.f32 %v2759, %v2751
        %v2764 = vadd.f32 %v2760, %v2752
        %v2765 = vadd.f32 %v2761, %v2753
        %v2766 = vmul.f32 %v353, %v2548
        %v2767 = vmul.f32 %v354, %v2551
        %v2768 = vmul.f32 %v355, %v2556
        %v2769 = vmul.f32 %v356, %v2559
        %v2770 = vmul.f32 %v357, %v2564
        %v2771 = vmul.f32 %v358, %v2567
        %v2772 = vmul.f32 %v359, %v2572
        %v2773 = vmul.f32 %v360, %v2575
        %v2774 = vmul.f32 %v361, %v2580
        %v2775 = vmul.f32 %v362, %v2583
        %v2776 = vmul.f32 %v363, %v2588
        %v2777 = vmul.f32 %v364, %v2591
        %v2778 = vmul.f32 %v365, %v2596
        %v2779 = vmul.f32 %v366, %v2599
        %v2780 = vmul.f32 %v367, %v2604
        %v2781 = vmul.f32 %v368, %v2607
        %v2782 = vadd.f32 %v2766, %v2770
        %v2783 = vadd.f32 %v2767, %v2771
        %v2784 = vadd.f32 %v2768, %v2772
        %v2785 = vadd.f32 %v2769, %v2773
        %v2786 = vadd.f32 %v2782, %v2774
        %v2787 = vadd.f32 %v2783, %v2775
        %v2788 = vadd.f32 %v2784, %v2776
        %v2789 = vadd.f32 %v2785, %v2777
        %v2790 = vadd.f32 %v2786, %v2778
        %v2791 = vadd.f32 %v2787, %v2779
        %v2792 = vadd.f32 %v2788, %v2780
        %v2793 = vadd.f32 %v2789, %v2781
        %v2794 = vmul.f32 %v353, %v2612
        %v2795 = vmul.f32 %v354, %v2615
        %v2796 = vmul.f32 %v355, %v2620
        %v2797 = vmul.f32 %v356, %v2623
        %v2798 = vmul.f32 %v357, %v2628
        %v2799 = vmul.f32 %v358, %v2631
        %v2800 = vmul.f32 %v359, %v2636
        %v2801 = vmul.f32 %v360, %v2639
        %v2802 = vmul.f32 %v361, %v2644
        %v2803 = vmul.f32 %v362, %v2647
        %v2804 = vmul.f32 %v363, %v2652
        %v2805 = vmul.f32 %v364, %v2655
        %v2806 = vmul.f32 %v365, %v2660
        %v2807 = vmul.f32 %v366, %v2663
        %v2808 = vmul.f32 %v367, %v2668
        %v2809 = vmul.f32 %v368, %v2671
        %v2810 = vadd.f32 %v2794, %v2798
        %v2811 = vadd.f32 %v2795, %v2799
        %v2812 = vadd.f32 %v2796, %v2800
        %v2813 = vadd.f32 %v2797, %v2801
        %v2814 = vadd.f32 %v2810, %v2802
        %v2815 = vadd.f32 %v2811, %v2803
        %v2816 = vadd.f32 %v2812, %v2804
        %v2817 = vadd.f32 %v2813, %v2805
        %v2818 = vadd.f32 %v2814, %v2806
        %v2819 = vadd.f32 %v2815, %v2807
        %v2820 = vadd.f32 %v2816, %v2808
        %v2821 = vadd.f32 %v2817, %v2809
        %v2822 = vmul.f32 %v353, %v2676
        %v2823 = vmul.f32 %v354, %v2679
        %v2824 = vmul.f32 %v355, %v2684
        %v2825 = vmul.f32 %v356, %v2687
        %v2826 = vmul.f32 %v357, %v2692
        %v2827 = vmul.f32 %v358, %v2695
        %v2828 = vmul.f32 %v359, %v2700
        %v2829 = vmul.f32 %v360, %v2703
        %v2830 = vmul.f32 %v361, %v2708
        %v2831 = vmul.f32 %v362, %v2711
        %v2832 = vmul.f32 %v363, %v2716
        %v2833 = vmul.f32 %v364, %v2719
        %v2834 = vmul.f32 %v365, %v2724
        %v2835 = vmul.f32 %v366, %v2727
        %v2836 = vmul.f32 %v367, %v2732
        %v2837 = vmul.f32 %v368, %v2735
        %v2838 = vadd.f32 %v2822, %v2826
        %v2839 = vadd.f32 %v2823, %v2827
        %v2840 = vadd.f32 %v2824, %v2828
        %v2841 = vadd.f32 %v2825, %v2829
        %v2842 = vadd.f32 %v2838, %v2830
        %v2843 = vadd.f32 %v2839, %v2831
        %v2844 = vadd.f32 %v2840, %v2832
        %v2845 = vadd.f32 %v2841, %v2833
        %v2846 = vadd.f32 %v2842, %v2834
        %v2847 = vadd.f32 %v2843, %v2835
        %v2848 = vadd.f32 %v2844, %v2836
        %v2849 = vadd.f32 %v2845, %v2837
        %v2850 = vld [vmem:[%s5] sm:$0x1]
        %v2851 = vpack.c.bf16 %v854, %v853
        %v2852 = vpack.c.bf16 %v856, %v855
        %v2853 = vpack.c.bf16 %v858, %v857
        %v2854 = vpack.c.bf16 %v860, %v859
        %v2855 = vld [vmem:[%s6] sm:$0x1]
        %v2856 = vpack.c.bf16 %v2763, %v2762
        %v2857 = vpack.c.bf16 %v2765, %v2764
        %v2858 = vpack.c.bf16 %v2791, %v2790
        %v2859 = vpack.c.bf16 %v2793, %v2792
        %v2860 = vpack.c.bf16 %v2819, %v2818
        %v2861 = vpack.c.bf16 %v2821, %v2820
        %v2862 = vpack.c.bf16 %v2847, %v2846
        %v2863 = vpack.c.bf16 %v2849, %v2848
        %2864 = vmatprep.subr.bf16.mxu0 0
        %2865 = vmatpush1.bf16.msra.mxu0 %v2856
        %2866 = vmatprep.subr.bf16.mxu0 0
        %2867 = vmatpush1.bf16.msra.mxu0 %v2857
        %2868 = vmatprep.subr.bf16.mxu0 0
        %2869 = vmatpush1.bf16.msra.mxu0 %v2858
        %2870 = vmatprep.subr.bf16.mxu0 0
        %2871 = vmatpush1.bf16.msra.mxu0 %v2859
        %2872 = vmatprep.subr.bf16.mxu0 0
        %2873 = vmatpush1.bf16.msra.mxu0 %v2860
        %2874 = vmatprep.subr.bf16.mxu0 0
        %2875 = vmatpush1.bf16.msra.mxu0 %v2861
        %2876 = vmatprep.subr.bf16.mxu0 0
        %2877 = vmatpush1.bf16.msra.mxu0 %v2862
        %2878 = vmatprep.subr.bf16.mxu0 0
        %2879 = vmatpush1.bf16.msra.mxu0 %v2863
        %2880 = vmatprep.subr.bf16.mxu0 0
        %2881 = vmatpush1.bf16.msra.mxu0 0
        %2882 = vmatprep.subr.bf16.mxu0 0
        %2883 = vmatpush1.bf16.msra.mxu0 0
        %2884 = vmatprep.subr.bf16.mxu0 0
        %2885 = vmatpush1.bf16.msra.mxu0 0
        %2886 = vmatprep.subr.bf16.mxu0 0
        %2887 = vmatpush1.bf16.msra.mxu0 0
        %2888 = vmatprep.subr.bf16.mxu0 0
        %2889 = vmatpush1.bf16.msra.mxu0 0
        %2890 = vmatprep.subr.bf16.mxu0 0
        %2891 = vmatpush1.bf16.msra.mxu0 0
        %2892 = vmatprep.subr.bf16.mxu0 0
        %2893 = vmatpush1.bf16.msra.mxu0 0
        %2894 = vmatprep.subr.bf16.mxu0 0
        %2895 = vmatpush1.bf16.msra.mxu0 0
        %2896 = vmatprep.mubr.bf16.mxu0 0
        %2897 = vmatmul.mubr.bf16.gmra.mrb[0].mxu0 %v2855
        %v2898 = vpop.f32.mrb[0].mxu0
        %v2899 = vadd.f32 0.0, %v2898
        %v2900 = vpop.f32.mrb[0].mxu0
        %v2901 = vpop.f32.mrb[0].mxu0
        %v2902 = vpop.f32.mrb[0].mxu0
        %2903 = vdwg.mxu0
        %v2905 = vsel %vm625, %v2850, 0
        %2907 = vmatprep.subr.bf16.mxu0 0
        %2908 = vmatpush1.bf16.msra.mxu0 %v2851
        %2909 = vmatprep.subr.bf16.mxu0 0
        %2910 = vmatpush1.bf16.msra.mxu0 %v2852
        %2911 = vmatprep.subr.bf16.mxu0 0
        %2912 = vmatpush1.bf16.msra.mxu0 %v2853
        %2913 = vmatprep.subr.bf16.mxu0 0
        %2914 = vmatpush1.bf16.msra.mxu0 %v2854
        %2915 = vmatprep.subr.bf16.mxu0 0
        %2916 = vmatpush1.bf16.msra.mxu0 0
        %2917 = vmatprep.subr.bf16.mxu0 0
        %2918 = vmatpush1.bf16.msra.mxu0 0
        %2919 = vmatprep.subr.bf16.mxu0 0
        %2920 = vmatpush1.bf16.msra.mxu0 0
        %2921 = vmatprep.subr.bf16.mxu0 0
        %2922 = vmatpush1.bf16.msra.mxu0 0
        %2923 = vmatprep.subr.bf16.mxu0 0
        %2924 = vmatpush1.bf16.msra.mxu0 0
        %2925 = vmatprep.subr.bf16.mxu0 0
        %2926 = vmatpush1.bf16.msra.mxu0 0
        %2927 = vmatprep.subr.bf16.mxu0 0
        %2928 = vmatpush1.bf16.msra.mxu0 0
        %2929 = vmatprep.subr.bf16.mxu0 0
        %2930 = vmatpush1.bf16.msra.mxu0 0
        %2931 = vmatprep.subr.bf16.mxu0 0
        %2932 = vmatpush1.bf16.msra.mxu0 0
        %2933 = vmatprep.subr.bf16.mxu0 0
        %2934 = vmatpush1.bf16.msra.mxu0 0
        %2935 = vmatprep.subr.bf16.mxu0 0
        %2936 = vmatpush1.bf16.msra.mxu0 0
        %2937 = vmatprep.subr.bf16.mxu0 0
        %2938 = vmatpush1.bf16.msra.mxu0 0
        %2939 = vmatprep.mubr.bf16.mxu0 0
        %2940 = vmatmul.mubr.bf16.gmra.mrb[0].mxu0 %v2905
        %v2941 = vpop.f32.mrb[0].mxu0
        %v2942 = vadd.f32 %v2899, %v2941
        %v2943 = vpop.f32.mrb[0].mxu0
        %v2944 = vpop.f32.mrb[0].mxu0
        %v2945 = vpop.f32.mrb[0].mxu0
        %2946 = vdwg.mxu0
        %s2947 = sld [smem:[#allocation2]]
        %v2948 = vstv %s2947
        %v2949 = vadd.f32 %v2942, %v2948
        %v2950 = vxor.u32 %v2949, 2147483648
        %v2951 = vmul.f32 %v2950, 1.442695
        %v2952 = vpow.pop %v2951
        %v2953 = vadd.f32 %v2952, 1.0
        %v2954 = vrcp.pop %v2953
        %v2955 = vmul.f32 1.0, %v2954
        %2956 = vst [vmem:[%s351] sm:$0x1] %v2955
        %s2957 = sand.u32 %s208, 1
        %s2958 = scalar_lea.sflag [#allocation5], %s2957
        %s2959 = sand.u32 %s208, 1
        %s2960 = scalar_lea.vmem [#allocation9], %s2959
        // Predicated region
        $region65: #{tpu_custom_call.1} parent=51 // pred_check
          %p2961 = pneg %p218
        $region66: #{tpu_custom_call.1} parent=51 // pred_check_branch
          %2963 = sbr.rel (%p2961) target = $region68
        $region67: #{tpu_custom_call.1} parent=51 // pred_region
          %s2965 = ssub.s32 16, 16
          %2966 = vsyncadd %s2958, %s2965
          %s2967 = smul.addr %s27, 16
          %s2968 = scalar_lea.hbm %s8, %s2967
          %s2970 = sshll.u32 %s2960, 4
          %s2971 = int_to_ptr.vmem [resolvable:$true] %s2970
          %2973 = dma.vmem_to_hbm [thread:$0]  %s2971, 16, %s2968, %s2958
        $region68: #{tpu_custom_call.1} parent=51 // pred_fallthru
          _
      $region52: #{tpu_custom_call.1} parent=5 // pred_fallthru
        _
      %p2974 = scmp.le.s32.totalorder 2, %s22
      // Predicated region
      $region69: #{tpu_custom_call.1} parent=5 // pred_check
        %p2975 = pneg %p2974
      $region70: #{tpu_custom_call.1} parent=5 // pred_check_branch
        %2977 = sbr.rel (%p2975) target = $region72
      $region71: #{tpu_custom_call.1} parent=5 // pred_region
        %s2978 = ssub.s32 %s22, 2
        // Predicated region
        $region73: #{tpu_custom_call.1} parent=71 // pred_check
          %p2979 = pneg %p224
        $region74: #{tpu_custom_call.1} parent=71 // pred_check_branch
          %2981 = sbr.rel (%p2979) target = $region76
        $region75: #{tpu_custom_call.1} parent=71 // pred_region
          %s2982 = sand.u32 %s209, 1
          %s2983 = scalar_lea.sflag [#allocation5], %s2982
          %s2984 = sand.u32 %s209, 1
          %s2985 = scalar_lea.vmem [#allocation9], %s2984
          %2986 = dma.done %s2983, 16
        $region76: #{tpu_custom_call.1} parent=71 // pred_fallthru
          _
      $region72: #{tpu_custom_call.1} parent=5 // pred_fallthru
        _
    $region6: #{tpu_custom_call.1} parent=1 // loop_footer
      %s26 = sadd.s32 1, %s22
    $region7: #{tpu_custom_call.1} parent=1 // loop_footer_branch
      %21 = sbr.rel target = $region3
    $region8: #{tpu_custom_call.1} parent=1 // loop_exit
      _
    %2987 = vsyncpa [#allocation4], 1
    %s2988 = scalar_lea.sflag [#allocation4], 1
    %2989 = vsyncpa %s2988, 1
    %2990 = vsyncpa [#allocation7], 1
    %2991 = vsyncpa [#allocation5], 1
    %s2992 = scalar_lea.sflag [#allocation5], 1
    %2993 = vsyncpa %s2992, 1

</llo_original>
